<compile_context>
chip_gen: v5e
topology: v5e:2x2
jax: 0.10.0
libtpu: 0.0.40
codegen_flags: <defaults>
</compile_context>

<pallas_src>
import functools

import jax
import jax.numpy as jnp
from jax.experimental import pallas as pl
from jax.experimental.pallas import tpu as pltpu

_MIB = 1024 * 1024


# ----------------------------- hardware probing ------------------------------

def _vmem_capacity_bytes() -> int:
    try:
        cap = getattr(pltpu.get_tpu_info(), "vmem_capacity_bytes", None)
        if cap:
            return int(cap)
    except Exception:
        pass
    try:
        if "7" in jax.devices()[0].device_kind.lower():   # v7x: 64 MiB per TensorCore
            return 64 * _MIB
    except Exception:
        pass
    return 128 * _MIB                                      # v4 / v5e / v6e


def _is_v7x() -> bool:
    try:
        return "7" in jax.devices()[0].device_kind.lower()
    except Exception:
        return False


def _round_up(n: int, m: int) -> int:
    return (n + m - 1) // m * m


# ----------------------------- tile selection ---------------------------------

def _vmem_bytes(tm: int, th: int, d: int, wbuf: int) -> int:
    """Rough double-buffered working-set estimate for the kernel."""
    x_out = 2 * (2 * tm * d * 4)            # x (f32) + out (f32) tiles, double-buffered
    weights = 3 * wbuf * d * th * 2         # w1/w3/w2 bf16 tiles, `wbuf`-deep pipeline
    temps = 4 * tm * th * 4                 # a / b / gate f32 temporaries + slack
    return x_out + weights + temps


def _select_hidden_tile(H: int, D: int, vmem_limit: int, th=None) -> int:
    if th is not None:
        assert H % th == 0, "explicit th must divide the hidden dim"
        return th
    th = 512 if vmem_limit >= 80 * _MIB else 256   # bigger tiles on 128 MiB parts (v5e/v6e)
    th = min(th, H)
    while th > 128 and H % th != 0:
        th //= 2
    if H % th != 0:
        th = H                                      # tiny / odd hidden dims: single block
    return th


def _select_token_tile(T: int, D: int, th: int, vmem_limit: int, *,
                       two_core_split: bool, wbuf: int, tm=None) -> int:
    if tm is not None:
        return tm
    # v5e/v6e need large TM for arithmetic intensity (~TM FLOP per weight byte);
    # v7x (3.2 TB/s HBM, 64 MiB VMEM) is near balance at ~256.
    tm = 512 if vmem_limit >= 80 * _MIB else 256
    if T <= tm:
        tm = max(8, _round_up(T, 8))
    if two_core_split and T > 128 and pl.cdiv(T, tm) < 2:
        tm = max(128, _round_up(pl.cdiv(T, 2), 8))  # keep both v7x TensorCores busy
    while tm > 64 and _vmem_bytes(tm, th, D, wbuf) > int(0.8 * vmem_limit):
        tm //= 2                                    # hardening: never exceed the VMEM budget
    return max(8, _round_up(tm, 8))


def _weight_block_spec(block_shape, index_map, *, n_buffers):
    """Weight tile spec; on v7x request a 3-deep pipeline to hide DMA jitter."""
    if n_buffers != 2 and hasattr(pl, "Buffered"):
        try:
            return pl.BlockSpec(block_shape, index_map, pipeline_mode=pl.Buffered(n_buffers))
        except Exception:
            pass
    return pl.BlockSpec(block_shape, index_map)


# ----------------------------- kernel ------------------------------------

def _ffn_kernel(x_ref, w1_ref, w3_ref, w2_ref, o_ref):
    """grid = (token_tiles, hidden_tiles); hidden is the w2-reduction axis (last, 'arbitrary')."""
    h = pl.program_id(1)

    @pl.when(h == 0)
    def _init():
        o_ref[...] = jnp.zeros_like(o_ref)

    xb = x_ref[...].astype(jnp.bfloat16)                                   # (TM, D) bf16 MXU lhs
    a = jnp.dot(xb, w1_ref[...], preferred_element_type=jnp.float32)       # (TM, TH) f32
    b = jnp.dot(xb, w3_ref[...], preferred_element_type=jnp.float32)       # (TM, TH) f32
    g = (a * jax.nn.sigmoid(a)) * b                                        # SwiGLU in f32
    # o_ref's block index is constant across h -> it is the VMEM-resident accumulator.
    o_ref[...] += jnp.dot(g.astype(jnp.bfloat16), w2_ref[...],
                          preferred_element_type=jnp.float32)              # (TM, D) f32


# ----------------------------- module wrapper ------------------------------------

class FeedForwardPallas:
    """Llama3 FeedForward with one-time weight prep (bf16 cast + blocked packing)."""

    def __init__(self, w1, w3, w2, *, th=None):
        D, H = w1.shape
        assert w3.shape == (D, H) and w2.shape == (H, D)
        self.dim, self.hidden = D, H

        self._vmem_limit = min(int(_vmem_capacity_bytes() * 0.75), 100 * _MIB)
        self._is_v7x = _is_v7x()
        self._wbuf = 3 if self._is_v7x else 2

        TH = _select_hidden_tile(H, D, self._vmem_limit, th=th)
        self.th = TH
        nH = H // TH

        # Hoisted parameter prep: cast once, pack w1/w3 as (nH, D, TH) so each hidden block is a
        # contiguous DMA.  w2 row tiles of the (H, D) layout are already contiguous.
        self.w1 = jnp.asarray(w1, jnp.bfloat16).reshape(D, nH, TH).transpose(1, 0, 2)
        self.w3 = jnp.asarray(w3, jnp.bfloat16).reshape(D, nH, TH).transpose(1, 0, 2)
        self.w2 = jnp.asarray(w2, jnp.bfloat16)

    def __call__(self, x, *, tm=None):
        orig_shape = x.shape
        D, H, TH = self.dim, self.hidden, self.th
        assert orig_shape[-1] == D
        T = int(x.size) // D
        xf = jnp.asarray(x, jnp.float32).reshape(T, D)   # f32 on the wire; bf16 cast in-kernel

        TM = _select_token_tile(T, D, TH, self._vmem_limit,
                                two_core_split=self._is_v7x, wbuf=self._wbuf, tm=tm)
        Tp = _round_up(T, TM)
        if Tp != T:
            xf = jnp.pad(xf, ((0, Tp - T), (0, 0)))      # pad tokens; tail sliced off below

        grid = (Tp // TM, H // TH)
        w_spec = functools.partial(_weight_block_spec, n_buffers=self._wbuf)

        out = pl.pallas_call(
            _ffn_kernel,
            grid_spec=pltpu.PrefetchScalarGridSpec(
                num_scalar_prefetch=0,
                grid=grid,
                in_specs=[
                    pl.BlockSpec((TM, D), lambda i, h: (i, 0)),        # x tile, resident across h
                    w_spec((None, D, TH), lambda i, h: (h, 0, 0)),     # w1 block (contiguous)
                    w_spec((None, D, TH), lambda i, h: (h, 0, 0)),     # w3 block (contiguous)
                    w_spec((TH, D), lambda i, h: (h, 0)),              # w2 row tile (contiguous)
                ],
                out_specs=pl.BlockSpec((TM, D), lambda i, h: (i, 0)),  # f32 accumulator
            ),
            out_shape=jax.ShapeDtypeStruct((Tp, D), jnp.float32),
            compiler_params=pltpu.CompilerParams(
                dimension_semantics=("parallel", "arbitrary"),
                vmem_limit_bytes=self._vmem_limit,
            ),
        )(xf, self.w1, self.w3, self.w2)

        if Tp != T:
            out = out[:T]
        return out.reshape(orig_shape)


# ----------------------------- pure-JAX reference ---------------------------

def reference_ffn(x, w1, w3, w2):
    P = jax.lax.Precision.HIGHEST
    a = jnp.einsum("...d,dh->...h", x, w1, precision=P)
    b = jnp.einsum("...d,dh->...h", x, w3, precision=P)
    g = (a * jax.nn.sigmoid(a)) * b
    return jnp.einsum("...h,hd->...d", g, w2, precision=P)


# ----------------------------- main -----------------------------------------

if __name__ == "__main__":
    B, S = 2, 128
    dim = 256
    multiple_of = 128
    ffn_dim_multiplier = None

    # FeedForward.__init__ hidden_dim computation (hidden_dim arg = 4 * dim as in Llama)
    hidden_dim = 4 * dim
    hidden_dim = int(2 * hidden_dim / 3)
    if ffn_dim_multiplier is not None:
        hidden_dim = int(ffn_dim_multiplier * hidden_dim)
    hidden_dim = multiple_of * ((hidden_dim + multiple_of - 1) // multiple_of)   # -> 768

    key = jax.random.PRNGKey(0)
    kx, k1, k2, k3 = jax.random.split(key, 4)

    def init(k, shape):
        return 0.02 * jax.random.normal(k, shape, jnp.float32)

    # nn.Linear weights stored transposed: (in_features, out_features)
    w1 = init(k1, (dim, hidden_dim))
    w2 = init(k2, (hidden_dim, dim))
    w3 = init(k3, (dim, hidden_dim))
    x = jax.random.normal(kx, (B, S, dim), jnp.float32)

    ffn = FeedForwardPallas(w1, w3, w2)      # one-time weight prep (cast + packing)
    out = jax.block_until_ready(ffn(x))

    ref = reference_ffn(x, w1, w3, w2)
    assert out.shape == (B, S, dim)
    # bf16 MXU operands vs f32 HIGHEST reference: inference-grade tolerance.
    assert jnp.allclose(out, ref, rtol=2e-2, atol=2e-3), \
        f"max abs diff {float(jnp.max(jnp.abs(out - ref)))}"

    print("KERNEL_OK")
</pallas_src>

<mosaic_0001>
module attributes {stable_mosaic.version = 11 : i64} {
  func.func @_ffn_kernel(%arg0: i32, %arg1: i32, %arg2: memref<256x256xf32, #tpu.memory_space<vmem>>, %arg3: memref<1x256x256xbf16, #tpu.memory_space<vmem>>, %arg4: memref<1x256x256xbf16, #tpu.memory_space<vmem>>, %arg5: memref<256x256xbf16, #tpu.memory_space<vmem>>, %arg6: memref<256x256xf32, #tpu.memory_space<vmem>>) attributes {dimension_semantics = [#tpu.dimension_semantics<parallel>, #tpu.dimension_semantics<arbitrary>], iteration_bounds = array<i64: 1, 3>, scalar_prefetch = 0 : i64, scratch_operands = 0 : i64, tpu.core_type = #tpu.core_type<tc>, window_params = [{transform_indices = @transform_0, window_bounds = array<i64: 256, 256>}, {transform_indices = @transform_1, window_bounds = array<i64: 1, 256, 256>}, {transform_indices = @transform_2, window_bounds = array<i64: 1, 256, 256>}, {transform_indices = @transform_3, window_bounds = array<i64: 256, 256>}, {transform_indices = @transform_4, window_bounds = array<i64: 256, 256>}]} {
    %c0_i32 = arith.constant 0 : i32
    %0 = arith.cmpi eq, %arg1, %c0_i32 : i32
    %1 = arith.extui %0 : i1 to i32
    %c0_i32_0 = arith.constant 0 : i32
    %2 = arith.cmpi ne, %1, %c0_i32_0 : i32
    scf.if %2 {
      %cst_17 = arith.constant 0.000000e+00 : f32
      %24 = vector.broadcast %cst_17 : f32 to vector<256x256xf32>
      %c0_18 = arith.constant 0 : index
      %c0_19 = arith.constant 0 : index
      %25 = vector.load %arg6[%c0_18, %c0_19] : memref<256x256xf32, #tpu.memory_space<vmem>>, vector<256x256xf32>
      tpu.vector_store %arg6[%c0_18, %c0_19], %24 {strides = array<i32>} : memref<256x256xf32, #tpu.memory_space<vmem>>, vector<256x256xf32>,
    } else {
    }
    %c0 = arith.constant 0 : index
    %c0_1 = arith.constant 0 : index
    %3 = vector.load %arg2[%c0, %c0_1] : memref<256x256xf32, #tpu.memory_space<vmem>>, vector<256x256xf32>
    %4 = arith.truncf %3 : vector<256x256xf32> to vector<256x256xbf16>
    %c0_2 = arith.constant 0 : index
    %c0_3 = arith.constant 0 : index
    %c0_4 = arith.constant 0 : index
    %5 = vector.load %arg3[%c0_2, %c0_3, %c0_4] : memref<1x256x256xbf16, #tpu.memory_space<vmem>>, vector<1x256x256xbf16>
    %6 = vector.shape_cast %5 : vector<1x256x256xbf16> to vector<256x256xbf16>
    %cst = arith.constant dense<0.000000e+00> : vector<256x256xf32>
    %7 = tpu.matmul %4, %6, %cst {dimension_numbers = #tpu.dot_dimension_numbers<[1], [0], [0], [1], [0, 0, 1, 1], [], []>} : vector<256x256xbf16>, vector<256x256xbf16>, vector<256x256xf32> -> vector<256x256xf32>
    %c0_5 = arith.constant 0 : index
    %c0_6 = arith.constant 0 : index
    %c0_7 = arith.constant 0 : index
    %8 = vector.load %arg4[%c0_5, %c0_6, %c0_7] : memref<1x256x256xbf16, #tpu.memory_space<vmem>>, vector<1x256x256xbf16>
    %9 = vector.shape_cast %8 : vector<1x256x256xbf16> to vector<256x256xbf16>
    %cst_8 = arith.constant dense<0.000000e+00> : vector<256x256xf32>
    %10 = tpu.matmul %4, %9, %cst_8 {dimension_numbers = #tpu.dot_dimension_numbers<[1], [0], [0], [1], [0, 0, 1, 1], [], []>} : vector<256x256xbf16>, vector<256x256xbf16>, vector<256x256xf32> -> vector<256x256xf32>
    %11 = arith.negf %7 : vector<256x256xf32>
    %12 = math.exp %11 : vector<256x256xf32>
    %cst_9 = arith.constant 1.000000e+00 : f32
    %13 = vector.broadcast %cst_9 : f32 to vector<256x256xf32>
    %14 = arith.addf %13, %12 : vector<256x256xf32>
    %15 = arith.divf %13, %14 : vector<256x256xf32>
    %16 = arith.mulf %7, %15 : vector<256x256xf32>
    %17 = arith.mulf %16, %10 : vector<256x256xf32>
    %c0_10 = arith.constant 0 : index
    %c0_11 = arith.constant 0 : index
    %18 = vector.load %arg6[%c0_10, %c0_11] : memref<256x256xf32, #tpu.memory_space<vmem>>, vector<256x256xf32>
    %19 = arith.truncf %17 : vector<256x256xf32> to vector<256x256xbf16>
    %c0_12 = arith.constant 0 : index
    %c0_13 = arith.constant 0 : index
    %20 = vector.load %arg5[%c0_12, %c0_13] : memref<256x256xbf16, #tpu.memory_space<vmem>>, vector<256x256xbf16>
    %cst_14 = arith.constant dense<0.000000e+00> : vector<256x256xf32>
    %21 = tpu.matmul %19, %20, %cst_14 {dimension_numbers = #tpu.dot_dimension_numbers<[1], [0], [0], [1], [0, 0, 1, 1], [], []>} : vector<256x256xbf16>, vector<256x256xbf16>, vector<256x256xf32> -> vector<256x256xf32>
    %22 = arith.addf %18, %21 : vector<256x256xf32>
    %c0_15 = arith.constant 0 : index
    %c0_16 = arith.constant 0 : index
    %23 = vector.load %arg6[%c0_15, %c0_16] : memref<256x256xf32, #tpu.memory_space<vmem>>, vector<256x256xf32>
    tpu.vector_store %arg6[%c0_15, %c0_16], %22 {strides = array<i32>} : memref<256x256xf32, #tpu.memory_space<vmem>>, vector<256x256xf32>,
    return
  }
  func.func @transform_0(%arg0: i32, %arg1: i32) -> (i32, i32) {
    %c0_i32 = arith.constant 0 : i32
    %c0_i32_0 = arith.constant 0 : i32
    return %arg0, %c0_i32 : i32, i32
  }
  func.func @transform_1(%arg0: i32, %arg1: i32) -> (i32, i32, i32) {
    %c0_i32 = arith.constant 0 : i32
    %c0_i32_0 = arith.constant 0 : i32
    %c0_i32_1 = arith.constant 0 : i32
    return %arg1, %c0_i32, %c0_i32_0 : i32, i32, i32
  }
  func.func @transform_2(%arg0: i32, %arg1: i32) -> (i32, i32, i32) {
    %c0_i32 = arith.constant 0 : i32
    %c0_i32_0 = arith.constant 0 : i32
    %c0_i32_1 = arith.constant 0 : i32
    return %arg1, %c0_i32, %c0_i32_0 : i32, i32, i32
  }
  func.func @transform_3(%arg0: i32, %arg1: i32) -> (i32, i32) {
    %c0_i32 = arith.constant 0 : i32
    %c0_i32_0 = arith.constant 0 : i32
    return %arg1, %c0_i32 : i32, i32
  }
  func.func @transform_4(%arg0: i32, %arg1: i32) -> (i32, i32) {
    %c0_i32 = arith.constant 0 : i32
    %c0_i32_0 = arith.constant 0 : i32
    return %arg0, %c0_i32 : i32, i32
  }
}

</mosaic_0001>

<llo_original>
// kernel: tpu_custom_call.1
$region0: #{tpu_custom_call.1}
  #allocation0 [shape = 'u32[]', space=smem, size = 0x4, offset = 0x4, fixed_abs, tag = 'smem constant byte address 0x4 - core index']
  #allocation1 [shape = 'u32[72,128]{1,0:T(1,128)}', space=vmem, size = 0x9000, scoped, tag = 'internal scratch']
  %s0 = inlined_call_operand.hbm [shape: f32[256,256], index: 0, kind: input, shape index: {}]
  %s1 = inlined_call_operand.hbm [shape: bf16[3,256,256], index: 1, kind: input, shape index: {}]
  %s2 = inlined_call_operand.hbm [shape: bf16[3,256,256], index: 2, kind: input, shape index: {}]
  %s3 = inlined_call_operand.hbm [shape: bf16[768,256], index: 3, kind: input, shape index: {}]
  %s4 = inlined_call_operand.hbm [shape: f32[256,256], index: 4, kind: output, shape index: {}]
  %s5 = sld [smem:[#allocation0]]
  $region69: #{tpu_custom_call.1} parent=0
    _
  %s7 = ssub.s32 1, %s5
  %s8 = scalar_select 0, %s7, %s5
  $region1: #{tpu_custom_call.1} parent=0
    #allocation2 [shape = 'u8[262144]{0}', space=vmem, size = 0x40000, scoped, tag = 'input window, operand 0, single buffered']
    #allocation3 [shape = 's32[2]{0}', space=sflag, size = 0x8, scoped, tag = 'scoped memory for tpu_custom_call.1']
    #allocation4 [shape = 's32[2]{0}', space=sflag, size = 0x8, scoped, tag = 'scoped memory for tpu_custom_call.1']
    #allocation5 [shape = 'u8[262144]{0}', space=vmem, size = 0x40000, scoped, tag = 'input window, operand 1']
    #allocation6 [shape = 's32[2]{0}', space=sflag, size = 0x8, scoped, tag = 'scoped memory for tpu_custom_call.1']
    #allocation7 [shape = 'u8[262144]{0}', space=vmem, size = 0x40000, scoped, tag = 'input window, operand 2']
    #allocation8 [shape = 'u8[262144]{0}', space=vmem, size = 0x40000, scoped, tag = 'input window, operand 3']
    #allocation9 [shape = 's32[2]{0}', space=sflag, size = 0x8, scoped, tag = 'scoped memory for tpu_custom_call.1']
    #allocation10 [shape = 'u8[262144]{0}', space=vmem, size = 0x40000, scoped, tag = 'output window, operand 0, single buffered']
    %9 = vsyncpa [#allocation3], 0
    %10 = vsyncpa [#allocation6], 0
    %s11 = scalar_lea.sflag [#allocation6], 1
    %12 = vsyncpa %s11, 0
    %13 = vsyncpa [#allocation9], 0
    %s14 = scalar_lea.sflag [#allocation9], 1
    %15 = vsyncpa %s14, 0
    %16 = vsyncpa [#allocation4], 0
    loop: start=0, step=1, limit=5
    $region2: #{tpu_custom_call.1} parent=1 // loop_pre_header
      _
    $region3: #{tpu_custom_call.1} parent=1 // loop_header
      %s18 = sphi 0, %s22
      %p19 = scmp.ge.s32.totalorder %s18, 5
      %s25 = sphi 0, %s37
      %s26 = sphi 0, %s33
      %s27 = sphi 0, %s25
      %s28 = sphi 0, %s26
      %s29 = sphi 0, %s27
      %s30 = sphi 0, %s28
      %s40 = sphi 0, %s42
      %s43 = sphi 0, %s40
      %s44 = sphi 0, %s43
      %s60 = sphi 0, %s44
      %s66 = sphi 0, %s68
      %s69 = sphi 0, %s66
      %s70 = sphi 0, %s69
      %s86 = sphi 0, %s70
      %s92 = sphi 0, %s94
      %s95 = sphi 0, %s92
      %s96 = sphi 0, %s95
      %s112 = sphi 0, %s96
      %s118 = sphi 0, %s120
      %s121 = sphi 0, %s118
      %s122 = sphi 0, %s121
      %s138 = sphi 0, %s122
      %s144 = sphi 0, %s146
      %s147 = sphi 0, %s144
      %s148 = sphi 0, %s147
      %s164 = sphi 0, %s148
    $region4: #{tpu_custom_call.1} parent=1 // loop_header_branch
      %21 = sbr.rel (%p19) target = $region8
    $region5: #{tpu_custom_call.1} parent=1 // loop_body
      %s23 = ssub.s32 %s18, 1
      %s24 = ssub.s32 %s18, 2
      %s31 = sadd.s32 1, %s26
      %p32 = scmp.ge.s32.totalorder %s31, 3
      %s33 = scalar_select %p32, 0, %s31
      %s34 = sadd.s32 1, %s25
      %s35 = scalar_select %p32, %s34, %s25
      %p36 = scmp.ge.s32.totalorder %s35, 1
      %s37 = scalar_select %p36, 0, %s35
      %s38 = ssub.s32 %s25, %s37
      %p39 = scmp.eq.s32.totalorder %s38, 0
      %s41 = sadd.s32 %s40, 1
      %s42 = scalar_select %p39, %s40, %s41
      %p45 = pneg %p39
      %p46 = scmp.eq.s32.totalorder %s18, 2
      %p47 = por %p45, %p46
      %p48 = scmp.ne.s32.totalorder %s40, %s43
      %p49 = scmp.eq.s32.totalorder %s18, 0
      %p50 = por %p48, %p49
      %p51 = scmp.ne.s32.totalorder %s40, %s43
      %p52 = scmp.eq.s32.totalorder %s23, 2
      %p53 = por %p51, %p52
      %p54 = scmp.ne.s32.totalorder %s43, %s44
      %p55 = scmp.eq.s32.totalorder %s23, 0
      %p56 = por %p54, %p55
      %p57 = scmp.ne.s32.totalorder %s43, %s44
      %p58 = scmp.eq.s32.totalorder %s24, 2
      %p59 = por %p57, %p58
      %p61 = scmp.ne.s32.totalorder %s44, %s60
      %p62 = scmp.eq.s32.totalorder %s24, 0
      %p63 = por %p61, %p62
      %s64 = ssub.s32 %s26, %s33
      %p65 = scmp.eq.s32.totalorder %s64, 0
      %s67 = sadd.s32 %s66, 1
      %s68 = scalar_select %p65, %s66, %s67
      %p71 = pneg %p65
      %p72 = scmp.eq.s32.totalorder %s18, 2
      %p73 = por %p71, %p72
      %p74 = scmp.ne.s32.totalorder %s66, %s69
      %p75 = scmp.eq.s32.totalorder %s18, 0
      %p76 = por %p74, %p75
      %p77 = scmp.ne.s32.totalorder %s66, %s69
      %p78 = scmp.eq.s32.totalorder %s23, 2
      %p79 = por %p77, %p78
      %p80 = scmp.ne.s32.totalorder %s69, %s70
      %p81 = scmp.eq.s32.totalorder %s23, 0
      %p82 = por %p80, %p81
      %p83 = scmp.ne.s32.totalorder %s69, %s70
      %p84 = scmp.eq.s32.totalorder %s24, 2
      %p85 = por %p83, %p84
      %p87 = scmp.ne.s32.totalorder %s70, %s86
      %p88 = scmp.eq.s32.totalorder %s24, 0
      %p89 = por %p87, %p88
      %s90 = ssub.s32 %s26, %s33
      %p91 = scmp.eq.s32.totalorder %s90, 0
      %s93 = sadd.s32 %s92, 1
      %s94 = scalar_select %p91, %s92, %s93
      %p97 = pneg %p91
      %p98 = scmp.eq.s32.totalorder %s18, 2
      %p99 = por %p97, %p98
      %p100 = scmp.ne.s32.totalorder %s92, %s95
      %p101 = scmp.eq.s32.totalorder %s18, 0
      %p102 = por %p100, %p101
      %p103 = scmp.ne.s32.totalorder %s92, %s95
      %p104 = scmp.eq.s32.totalorder %s23, 2
      %p105 = por %p103, %p104
      %p106 = scmp.ne.s32.totalorder %s95, %s96
      %p107 = scmp.eq.s32.totalorder %s23, 0
      %p108 = por %p106, %p107
      %p109 = scmp.ne.s32.totalorder %s95, %s96
      %p110 = scmp.eq.s32.totalorder %s24, 2
      %p111 = por %p109, %p110
      %p113 = scmp.ne.s32.totalorder %s96, %s112
      %p114 = scmp.eq.s32.totalorder %s24, 0
      %p115 = por %p113, %p114
      %s116 = ssub.s32 %s26, %s33
      %p117 = scmp.eq.s32.totalorder %s116, 0
      %s119 = sadd.s32 %s118, 1
      %s120 = scalar_select %p117, %s118, %s119
      %p123 = pneg %p117
      %p124 = scmp.eq.s32.totalorder %s18, 2
      %p125 = por %p123, %p124
      %p126 = scmp.ne.s32.totalorder %s118, %s121
      %p127 = scmp.eq.s32.totalorder %s18, 0
      %p128 = por %p126, %p127
      %p129 = scmp.ne.s32.totalorder %s118, %s121
      %p130 = scmp.eq.s32.totalorder %s23, 2
      %p131 = por %p129, %p130
      %p132 = scmp.ne.s32.totalorder %s121, %s122
      %p133 = scmp.eq.s32.totalorder %s23, 0
      %p134 = por %p132, %p133
      %p135 = scmp.ne.s32.totalorder %s121, %s122
      %p136 = scmp.eq.s32.totalorder %s24, 2
      %p137 = por %p135, %p136
      %p139 = scmp.ne.s32.totalorder %s122, %s138
      %p140 = scmp.eq.s32.totalorder %s24, 0
      %p141 = por %p139, %p140
      %s142 = ssub.s32 %s25, %s37
      %p143 = scmp.eq.s32.totalorder %s142, 0
      %s145 = sadd.s32 %s144, 1
      %s146 = scalar_select %p143, %s144, %s145
      %p149 = pneg %p143
      %p150 = scmp.eq.s32.totalorder %s18, 2
      %p151 = por %p149, %p150
      %p152 = scmp.ne.s32.totalorder %s144, %s147
      %p153 = scmp.eq.s32.totalorder %s18, 0
      %p154 = por %p152, %p153
      %p155 = scmp.ne.s32.totalorder %s144, %s147
      %p156 = scmp.eq.s32.totalorder %s23, 2
      %p157 = por %p155, %p156
      %p158 = scmp.ne.s32.totalorder %s147, %s148
      %p159 = scmp.eq.s32.totalorder %s23, 0
      %p160 = por %p158, %p159
      %p161 = scmp.ne.s32.totalorder %s147, %s148
      %p162 = scmp.eq.s32.totalorder %s24, 2
      %p163 = por %p161, %p162
      %p165 = scmp.ne.s32.totalorder %s148, %s164
      %p166 = scmp.eq.s32.totalorder %s24, 0
      %p167 = por %p165, %p166
      %p168 = scmp.le.s32.totalorder 1, %s18
      %p169 = scmp.lt.s32.totalorder %s18, 4
      %p170 = pnand %p168, %p169
      %p171 = pneg %p170
      // Predicated region
      $region9: #{tpu_custom_call.1} parent=5 // pred_check
        _
      $region10: #{tpu_custom_call.1} parent=5 // pred_check_branch
        %173 = sbr.rel (%p170) target = $region12
      $region11: #{tpu_custom_call.1} parent=5 // pred_region
        %s174 = ssub.s32 %s18, 1
        // Predicated region
        $region13: #{tpu_custom_call.1} parent=11 // pred_check
          %p175 = pneg %p56
        $region14: #{tpu_custom_call.1} parent=11 // pred_check_branch
          %177 = sbr.rel (%p175) target = $region16
        $region15: #{tpu_custom_call.1} parent=11 // pred_region
          %s178 = smul.u32 32, %s27
          %180 = vsyncadd [#allocation3], 0
          %s181 = smul.addr %s178, 2
          %s182 = smul.addr %s181, 8
          %s183 = scalar_lea.hbm %s0, %s182
          %s184 = sshll.u32 %s183, 4
          %s185 = int_to_ptr.hbm [resolvable:$true] %s184
          %s186 = sshll.u32 [#allocation2], 4
          %s187 = int_to_ptr.vmem [resolvable:$true] %s186
          %192 = dma.hbm_to_vmem [thread:$0]  %s185, 8192, %s187, [#allocation3], 256, 256, 16
        $region16: #{tpu_custom_call.1} parent=11 // pred_fallthru
          _
      $region12: #{tpu_custom_call.1} parent=5 // pred_fallthru
        _
      %p193 = scmp.lt.s32.totalorder %s18, 3
      // Predicated region
      $region17: #{tpu_custom_call.1} parent=5 // pred_check
        %p194 = pneg %p193
      $region18: #{tpu_custom_call.1} parent=5 // pred_check_branch
        %196 = sbr.rel (%p194) target = $region20
      $region19: #{tpu_custom_call.1} parent=5 // pred_region
        // Predicated region
        $region21: #{tpu_custom_call.1} parent=19 // pred_check
          %p197 = pneg %p76
        $region22: #{tpu_custom_call.1} parent=19 // pred_check_branch
          %199 = sbr.rel (%p197) target = $region24
        $region23: #{tpu_custom_call.1} parent=19 // pred_region
          %s200 = sand.u32 %s18, 1
          %s201 = scalar_lea.sflag [#allocation6], %s200
          %s202 = sand.u32 %s66, 1
          %s203 = smul.addr %s202, 256
          %s204 = scalar_lea.vmem [#allocation5], %s203
          %206 = vsyncadd %s201, 0
          %s207 = smul.addr %s26, 64
          %s208 = smul.addr %s207, 4
          %s209 = scalar_lea.hbm %s1, %s208
          %s210 = sshll.u32 %s209, 4
          %s211 = int_to_ptr.hbm [resolvable:$true] %s210
          %s212 = sshll.u32 %s204, 4
          %s213 = int_to_ptr.vmem [resolvable:$true] %s212
          %218 = dma.hbm_to_vmem [thread:$0]  %s211, 4096, %s213, %s201, 128, 128, 8
        $region24: #{tpu_custom_call.1} parent=19 // pred_fallthru
          _
        // Predicated region
        $region25: #{tpu_custom_call.1} parent=19 // pred_check
          %p219 = pneg %p102
        $region26: #{tpu_custom_call.1} parent=19 // pred_check_branch
          %221 = sbr.rel (%p219) target = $region28
        $region27: #{tpu_custom_call.1} parent=19 // pred_region
          %s222 = sand.u32 %s18, 1
          %s223 = scalar_lea.sflag [#allocation6], %s222
          %s224 = sand.u32 %s92, 1
          %s225 = smul.addr %s224, 256
          %s226 = scalar_lea.vmem [#allocation7], %s225
          %228 = vsyncadd %s223, 0
          %s229 = smul.addr %s26, 64
          %s230 = smul.addr %s229, 4
          %s231 = scalar_lea.hbm %s2, %s230
          %s232 = sshll.u32 %s231, 4
          %s233 = int_to_ptr.hbm [resolvable:$true] %s232
          %s234 = sshll.u32 %s226, 4
          %s235 = int_to_ptr.vmem [resolvable:$true] %s234
          %240 = dma.hbm_to_vmem [thread:$0]  %s233, 4096, %s235, %s223, 128, 128, 8
        $region28: #{tpu_custom_call.1} parent=19 // pred_fallthru
          _
        // Predicated region
        $region29: #{tpu_custom_call.1} parent=19 // pred_check
          %p241 = pneg %p128
        $region30: #{tpu_custom_call.1} parent=19 // pred_check_branch
          %243 = sbr.rel (%p241) target = $region32
        $region31: #{tpu_custom_call.1} parent=19 // pred_region
          %s244 = sand.u32 %s118, 1
          %s245 = scalar_lea.sflag [#allocation9], %s244
          %s246 = sand.u32 %s118, 1
          %s247 = smul.addr %s246, 256
          %s248 = scalar_lea.vmem [#allocation8], %s247
          %s249 = smul.u32 32, %s26
          %251 = vsyncadd %s245, 0
          %s252 = smul.addr %s249, 2
          %s253 = smul.addr %s252, 4
          %s254 = scalar_lea.hbm %s3, %s253
          %s255 = sshll.u32 %s254, 4
          %s256 = int_to_ptr.hbm [resolvable:$true] %s255
          %s257 = sshll.u32 %s248, 4
          %s258 = int_to_ptr.vmem [resolvable:$true] %s257
          %263 = dma.hbm_to_vmem [thread:$0]  %s256, 4096, %s258, %s245, 128, 128, 8
        $region32: #{tpu_custom_call.1} parent=19 // pred_fallthru
          _
      $region20: #{tpu_custom_call.1} parent=5 // pred_fallthru
        _
      %p264 = scmp.le.s32.totalorder 1, %s18
      %p265 = scmp.lt.s32.totalorder %s18, 4
      %p266 = pnand %p264, %p265
      %p267 = pneg %p266
      // Predicated region
      $region33: #{tpu_custom_call.1} parent=5 // pred_check
        _
      $region34: #{tpu_custom_call.1} parent=5 // pred_check_branch
        %269 = sbr.rel (%p266) target = $region36
      $region35: #{tpu_custom_call.1} parent=5 // pred_region
        %s270 = ssub.s32 %s18, 1
        // Predicated region
        $region37: #{tpu_custom_call.1} parent=35 // pred_check
          %p271 = pneg %p56
        $region38: #{tpu_custom_call.1} parent=35 // pred_check_branch
          %273 = sbr.rel (%p271) target = $region40
        $region39: #{tpu_custom_call.1} parent=35 // pred_region
          %275 = dma.done [#allocation3], 8192
        $region40: #{tpu_custom_call.1} parent=35 // pred_fallthru
          _
        %s276 = sand.u32 %s23, 1
        %s277 = scalar_lea.sflag [#allocation6], %s276
        %s278 = sand.u32 %s69, 1
        %s279 = smul.addr %s278, 256
        %s280 = scalar_lea.vmem [#allocation5], %s279
        // Predicated region
        $region41: #{tpu_custom_call.1} parent=35 // pred_check
          %p281 = pneg %p82
        $region42: #{tpu_custom_call.1} parent=35 // pred_check_branch
          %283 = sbr.rel (%p281) target = $region44
        $region43: #{tpu_custom_call.1} parent=35 // pred_region
          %285 = dma.done %s277, 4096
        $region44: #{tpu_custom_call.1} parent=35 // pred_fallthru
          _
        %s286 = sand.u32 %s23, 1
        %s287 = scalar_lea.sflag [#allocation6], %s286
        %s288 = sand.u32 %s95, 1
        %s289 = smul.addr %s288, 256
        %s290 = scalar_lea.vmem [#allocation7], %s289
        // Predicated region
        $region45: #{tpu_custom_call.1} parent=35 // pred_check
          %p291 = pneg %p108
        $region46: #{tpu_custom_call.1} parent=35 // pred_check_branch
          %293 = sbr.rel (%p291) target = $region48
        $region47: #{tpu_custom_call.1} parent=35 // pred_region
          %295 = dma.done %s287, 4096
        $region48: #{tpu_custom_call.1} parent=35 // pred_fallthru
          _
        %s296 = sand.u32 %s121, 1
        %s297 = scalar_lea.sflag [#allocation9], %s296
        %s298 = sand.u32 %s121, 1
        %s299 = smul.addr %s298, 256
        %s300 = scalar_lea.vmem [#allocation8], %s299
        // Predicated region
        $region49: #{tpu_custom_call.1} parent=35 // pred_check
          %p301 = pneg %p134
        $region50: #{tpu_custom_call.1} parent=35 // pred_check_branch
          %303 = sbr.rel (%p301) target = $region52
        $region51: #{tpu_custom_call.1} parent=35 // pred_region
          %305 = dma.done %s297, 4096
        $region52: #{tpu_custom_call.1} parent=35 // pred_fallthru
          _
        %p306 = pneg %p56
        %p307 = pneg %p53
        %s308 = sand.u32 %s23, 1
        %s309 = scalar_lea.sflag [#allocation6], %s308
        %s310 = sand.u32 %s69, 1
        %s311 = smul.addr %s310, 256
        %s312 = scalar_lea.vmem [#allocation5], %s311
        %p313 = pneg %p82
        %p314 = pneg %p79
        %s315 = sand.u32 %s23, 1
        %s316 = scalar_lea.sflag [#allocation6], %s315
        %s317 = sand.u32 %s95, 1
        %s318 = smul.addr %s317, 256
        %s319 = scalar_lea.vmem [#allocation7], %s318
        %p320 = pneg %p108
        %p321 = pneg %p105
        %s322 = sand.u32 %s121, 1
        %s323 = scalar_lea.sflag [#allocation9], %s322
        %s324 = sand.u32 %s121, 1
        %s325 = smul.addr %s324, 256
        %s326 = scalar_lea.vmem [#allocation8], %s325
        %p327 = pneg %p134
        %p328 = pneg %p131
        %p329 = pneg %p160
        %p330 = pneg %p157
        %s331 = smul.u32 32, %s27
        %s332 = smul.u32 32, %s28
        %s333 = smul.u32 32, %s27
        %p334 = scmp.eq.s32.totalorder %s28, 0
        // Predicated region
        $region53: #{tpu_custom_call.1} parent=35 // pred_check
          %p335 = pneg %p334
        $region54: #{tpu_custom_call.1} parent=35 // pred_check_branch
          %337 = sbr.rel (%p335) target = $region56
        $region55: #{tpu_custom_call.1} parent=35 // pred_region
          %338 = vst [vmem:[#allocation10] sm:$0xff] 0.0
          %339 = vst [vmem:[#allocation10 + $0x8] sm:$0xff] 0.0
          %340 = vst [vmem:[#allocation10 + $0x10] sm:$0xff] 0.0
          %341 = vst [vmem:[#allocation10 + $0x18] sm:$0xff] 0.0
          %342 = vst [vmem:[#allocation10 + $0x20] sm:$0xff] 0.0
          %343 = vst [vmem:[#allocation10 + $0x28] sm:$0xff] 0.0
          %344 = vst [vmem:[#allocation10 + $0x30] sm:$0xff] 0.0
          %345 = vst [vmem:[#allocation10 + $0x38] sm:$0xff] 0.0
          %346 = vst [vmem:[#allocation10 + $0x40] sm:$0xff] 0.0
          %347 = vst [vmem:[#allocation10 + $0x48] sm:$0xff] 0.0
          %348 = vst [vmem:[#allocation10 + $0x50] sm:$0xff] 0.0
          %349 = vst [vmem:[#allocation10 + $0x58] sm:$0xff] 0.0
          %350 = vst [vmem:[#allocation10 + $0x60] sm:$0xff] 0.0
          %351 = vst [vmem:[#allocation10 + $0x68] sm:$0xff] 0.0
          %352 = vst [vmem:[#allocation10 + $0x70] sm:$0xff] 0.0
          %353 = vst [vmem:[#allocation10 + $0x78] sm:$0xff] 0.0
          %354 = vst [vmem:[#allocation10 + $0x80] sm:$0xff] 0.0
          %355 = vst [vmem:[#allocation10 + $0x88] sm:$0xff] 0.0
          %356 = vst [vmem:[#allocation10 + $0x90] sm:$0xff] 0.0
          %357 = vst [vmem:[#allocation10 + $0x98] sm:$0xff] 0.0
          %358 = vst [vmem:[#allocation10 + $0xa0] sm:$0xff] 0.0
          %359 = vst [vmem:[#allocation10 + $0xa8] sm:$0xff] 0.0
          %360 = vst [vmem:[#allocation10 + $0xb0] sm:$0xff] 0.0
          %361 = vst [vmem:[#allocation10 + $0xb8] sm:$0xff] 0.0
          %362 = vst [vmem:[#allocation10 + $0xc0] sm:$0xff] 0.0
          %363 = vst [vmem:[#allocation10 + $0xc8] sm:$0xff] 0.0
          %364 = vst [vmem:[#allocation10 + $0xd0] sm:$0xff] 0.0
          %365 = vst [vmem:[#allocation10 + $0xd8] sm:$0xff] 0.0
          %366 = vst [vmem:[#allocation10 + $0xe0] sm:$0xff] 0.0
          %367 = vst [vmem:[#allocation10 + $0xe8] sm:$0xff] 0.0
          %368 = vst [vmem:[#allocation10 + $0xf0] sm:$0xff] 0.0
          %369 = vst [vmem:[#allocation10 + $0xf8] sm:$0xff] 0.0
          %370 = vst [vmem:[#allocation10 + $0x100] sm:$0xff] 0.0
          %371 = vst [vmem:[#allocation10 + $0x108] sm:$0xff] 0.0
          %372 = vst [vmem:[#allocation10 + $0x110] sm:$0xff] 0.0
          %373 = vst [vmem:[#allocation10 + $0x118] sm:$0xff] 0.0
          %374 = vst [vmem:[#allocation10 + $0x120] sm:$0xff] 0.0
          %375 = vst [vmem:[#allocation10 + $0x128] sm:$0xff] 0.0
          %376 = vst [vmem:[#allocation10 + $0x130] sm:$0xff] 0.0
          %377 = vst [vmem:[#allocation10 + $0x138] sm:$0xff] 0.0
          %378 = vst [vmem:[#allocation10 + $0x140] sm:$0xff] 0.0
          %379 = vst [vmem:[#allocation10 + $0x148] sm:$0xff] 0.0
          %380 = vst [vmem:[#allocation10 + $0x150] sm:$0xff] 0.0
          %381 = vst [vmem:[#allocation10 + $0x158] sm:$0xff] 0.0
          %382 = vst [vmem:[#allocation10 + $0x160] sm:$0xff] 0.0
          %383 = vst [vmem:[#allocation10 + $0x168] sm:$0xff] 0.0
          %384 = vst [vmem:[#allocation10 + $0x170] sm:$0xff] 0.0
          %385 = vst [vmem:[#allocation10 + $0x178] sm:$0xff] 0.0
          %386 = vst [vmem:[#allocation10 + $0x180] sm:$0xff] 0.0
          %387 = vst [vmem:[#allocation10 + $0x188] sm:$0xff] 0.0
          %388 = vst [vmem:[#allocation10 + $0x190] sm:$0xff] 0.0
          %389 = vst [vmem:[#allocation10 + $0x198] sm:$0xff] 0.0
          %390 = vst [vmem:[#allocation10 + $0x1a0] sm:$0xff] 0.0
          %391 = vst [vmem:[#allocation10 + $0x1a8] sm:$0xff] 0.0
          %392 = vst [vmem:[#allocation10 + $0x1b0] sm:$0xff] 0.0
          %393 = vst [vmem:[#allocation10 + $0x1b8] sm:$0xff] 0.0
          %394 = vst [vmem:[#allocation10 + $0x1c0] sm:$0xff] 0.0
          %395 = vst [vmem:[#allocation10 + $0x1c8] sm:$0xff] 0.0
          %396 = vst [vmem:[#allocation10 + $0x1d0] sm:$0xff] 0.0
          %397 = vst [vmem:[#allocation10 + $0x1d8] sm:$0xff] 0.0
          %398 = vst [vmem:[#allocation10 + $0x1e0] sm:$0xff] 0.0
          %399 = vst [vmem:[#allocation10 + $0x1e8] sm:$0xff] 0.0
          %400 = vst [vmem:[#allocation10 + $0x1f0] sm:$0xff] 0.0
          %401 = vst [vmem:[#allocation10 + $0x1f8] sm:$0xff] 0.0
        $region56: #{tpu_custom_call.1} parent=35 // pred_fallthru
          _
        %v402 = vld [vmem:[#allocation2] sm:$0xff]
        %v403 = vld [vmem:[#allocation2 + $0x8] sm:$0xff]
        %v404 = vld [vmem:[#allocation2 + $0x10] sm:$0xff]
        %v405 = vld [vmem:[#allocation2 + $0x18] sm:$0xff]
        %v406 = vld [vmem:[#allocation2 + $0x20] sm:$0xff]
        %v407 = vld [vmem:[#allocation2 + $0x28] sm:$0xff]
        %v408 = vld [vmem:[#allocation2 + $0x30] sm:$0xff]
        %v409 = vld [vmem:[#allocation2 + $0x38] sm:$0xff]
        %v410 = vld [vmem:[#allocation2 + $0x40] sm:$0xff]
        %v411 = vld [vmem:[#allocation2 + $0x48] sm:$0xff]
        %v412 = vld [vmem:[#allocation2 + $0x50] sm:$0xff]
        %v413 = vld [vmem:[#allocation2 + $0x58] sm:$0xff]
        %v414 = vld [vmem:[#allocation2 + $0x60] sm:$0xff]
        %v415 = vld [vmem:[#allocation2 + $0x68] sm:$0xff]
        %v416 = vld [vmem:[#allocation2 + $0x70] sm:$0xff]
        %v417 = vld [vmem:[#allocation2 + $0x78] sm:$0xff]
        %v418 = vld [vmem:[#allocation2 + $0x80] sm:$0xff]
        %v419 = vld [vmem:[#allocation2 + $0x88] sm:$0xff]
        %v420 = vld [vmem:[#allocation2 + $0x90] sm:$0xff]
        %v421 = vld [vmem:[#allocation2 + $0x98] sm:$0xff]
        %v422 = vld [vmem:[#allocation2 + $0xa0] sm:$0xff]
        %v423 = vld [vmem:[#allocation2 + $0xa8] sm:$0xff]
        %v424 = vld [vmem:[#allocation2 + $0xb0] sm:$0xff]
        %v425 = vld [vmem:[#allocation2 + $0xb8] sm:$0xff]
        %v426 = vld [vmem:[#allocation2 + $0xc0] sm:$0xff]
        %v427 = vld [vmem:[#allocation2 + $0xc8] sm:$0xff]
        %v428 = vld [vmem:[#allocation2 + $0xd0] sm:$0xff]
        %v429 = vld [vmem:[#allocation2 + $0xd8] sm:$0xff]
        %v430 = vld [vmem:[#allocation2 + $0xe0] sm:$0xff]
        %v431 = vld [vmem:[#allocation2 + $0xe8] sm:$0xff]
        %v432 = vld [vmem:[#allocation2 + $0xf0] sm:$0xff]
        %v433 = vld [vmem:[#allocation2 + $0xf8] sm:$0xff]
        %v434 = vld [vmem:[#allocation2 + $0x100] sm:$0xff]
        %v435 = vld [vmem:[#allocation2 + $0x108] sm:$0xff]
        %v436 = vld [vmem:[#allocation2 + $0x110] sm:$0xff]
        %v437 = vld [vmem:[#allocation2 + $0x118] sm:$0xff]
        %v438 = vld [vmem:[#allocation2 + $0x120] sm:$0xff]
        %v439 = vld [vmem:[#allocation2 + $0x128] sm:$0xff]
        %v440 = vld [vmem:[#allocation2 + $0x130] sm:$0xff]
        %v441 = vld [vmem:[#allocation2 + $0x138] sm:$0xff]
        %v442 = vld [vmem:[#allocation2 + $0x140] sm:$0xff]
        %v443 = vld [vmem:[#allocation2 + $0x148] sm:$0xff]
        %v444 = vld [vmem:[#allocation2 + $0x150] sm:$0xff]
        %v445 = vld [vmem:[#allocation2 + $0x158] sm:$0xff]
        %v446 = vld [vmem:[#allocation2 + $0x160] sm:$0xff]
        %v447 = vld [vmem:[#allocation2 + $0x168] sm:$0xff]
        %v448 = vld [vmem:[#allocation2 + $0x170] sm:$0xff]
        %v449 = vld [vmem:[#allocation2 + $0x178] sm:$0xff]
        %v450 = vld [vmem:[#allocation2 + $0x180] sm:$0xff]
        %v451 = vld [vmem:[#allocation2 + $0x188] sm:$0xff]
        %v452 = vld [vmem:[#allocation2 + $0x190] sm:$0xff]
        %v453 = vld [vmem:[#allocation2 + $0x198] sm:$0xff]
        %v454 = vld [vmem:[#allocation2 + $0x1a0] sm:$0xff]
        %v455 = vld [vmem:[#allocation2 + $0x1a8] sm:$0xff]
        %v456 = vld [vmem:[#allocation2 + $0x1b0] sm:$0xff]
        %v457 = vld [vmem:[#allocation2 + $0x1b8] sm:$0xff]
        %v458 = vld [vmem:[#allocation2 + $0x1c0] sm:$0xff]
        %v459 = vld [vmem:[#allocation2 + $0x1c8] sm:$0xff]
        %v460 = vld [vmem:[#allocation2 + $0x1d0] sm:$0xff]
        %v461 = vld [vmem:[#allocation2 + $0x1d8] sm:$0xff]
        %v462 = vld [vmem:[#allocation2 + $0x1e0] sm:$0xff]
        %v463 = vld [vmem:[#allocation2 + $0x1e8] sm:$0xff]
        %v464 = vld [vmem:[#allocation2 + $0x1f0] sm:$0xff]
        %v465 = vld [vmem:[#allocation2 + $0x1f8] sm:$0xff]
        %v466 = vpack.c.bf16 %v404, %v402
        %v467 = vpack.c.bf16 %v405, %v403
        %v468 = vpack.c.bf16 %v408, %v406
        %v469 = vpack.c.bf16 %v409, %v407
        %v470 = vpack.c.bf16 %v412, %v410
        %v471 = vpack.c.bf16 %v413, %v411
        %v472 = vpack.c.bf16 %v416, %v414
        %v473 = vpack.c.bf16 %v417, %v415
        %v474 = vpack.c.bf16 %v420, %v418
        %v475 = vpack.c.bf16 %v421, %v419
        %v476 = vpack.c.bf16 %v424, %v422
        %v477 = vpack.c.bf16 %v425, %v423
        %v478 = vpack.c.bf16 %v428, %v426
        %v479 = vpack.c.bf16 %v429, %v427
        %v480 = vpack.c.bf16 %v432, %v430
        %v481 = vpack.c.bf16 %v433, %v431
        %v482 = vpack.c.bf16 %v436, %v434
        %v483 = vpack.c.bf16 %v437, %v435
        %v484 = vpack.c.bf16 %v440, %v438
        %v485 = vpack.c.bf16 %v441, %v439
        %v486 = vpack.c.bf16 %v444, %v442
        %v487 = vpack.c.bf16 %v445, %v443
        %v488 = vpack.c.bf16 %v448, %v446
        %v489 = vpack.c.bf16 %v449, %v447
        %v490 = vpack.c.bf16 %v452, %v450
        %v491 = vpack.c.bf16 %v453, %v451
        %v492 = vpack.c.bf16 %v456, %v454
        %v493 = vpack.c.bf16 %v457, %v455
        %v494 = vpack.c.bf16 %v460, %v458
        %v495 = vpack.c.bf16 %v461, %v459
        %v496 = vpack.c.bf16 %v464, %v462
        %v497 = vpack.c.bf16 %v465, %v463
        %v498 = vld [vmem:[%s280] sm:$0xff]
        %v499 = vld [vmem:[%s280 + $0x8] sm:$0xff]
        %v500 = vld [vmem:[%s280 + $0x10] sm:$0xff]
        %v501 = vld [vmem:[%s280 + $0x18] sm:$0xff]
        %v502 = vld [vmem:[%s280 + $0x20] sm:$0xff]
        %v503 = vld [vmem:[%s280 + $0x28] sm:$0xff]
        %v504 = vld [vmem:[%s280 + $0x30] sm:$0xff]
        %v505 = vld [vmem:[%s280 + $0x38] sm:$0xff]
        %v506 = vld [vmem:[%s280 + $0x40] sm:$0xff]
        %v507 = vld [vmem:[%s280 + $0x48] sm:$0xff]
        %v508 = vld [vmem:[%s280 + $0x50] sm:$0xff]
        %v509 = vld [vmem:[%s280 + $0x58] sm:$0xff]
        %v510 = vld [vmem:[%s280 + $0x60] sm:$0xff]
        %v511 = vld [vmem:[%s280 + $0x68] sm:$0xff]
        %v512 = vld [vmem:[%s280 + $0x70] sm:$0xff]
        %v513 = vld [vmem:[%s280 + $0x78] sm:$0xff]
        %v514 = vld [vmem:[%s280 + $0x80] sm:$0xff]
        %v515 = vld [vmem:[%s280 + $0x88] sm:$0xff]
        %v516 = vld [vmem:[%s280 + $0x90] sm:$0xff]
        %v517 = vld [vmem:[%s280 + $0x98] sm:$0xff]
        %v518 = vld [vmem:[%s280 + $0xa0] sm:$0xff]
        %v519 = vld [vmem:[%s280 + $0xa8] sm:$0xff]
        %v520 = vld [vmem:[%s280 + $0xb0] sm:$0xff]
        %v521 = vld [vmem:[%s280 + $0xb8] sm:$0xff]
        %v522 = vld [vmem:[%s280 + $0xc0] sm:$0xff]
        %v523 = vld [vmem:[%s280 + $0xc8] sm:$0xff]
        %v524 = vld [vmem:[%s280 + $0xd0] sm:$0xff]
        %v525 = vld [vmem:[%s280 + $0xd8] sm:$0xff]
        %v526 = vld [vmem:[%s280 + $0xe0] sm:$0xff]
        %v527 = vld [vmem:[%s280 + $0xe8] sm:$0xff]
        %v528 = vld [vmem:[%s280 + $0xf0] sm:$0xff]
        %v529 = vld [vmem:[%s280 + $0xf8] sm:$0xff]
        %v562 = vunpack.c.l.b16 %v498
        %v563 = vunpack.c.h.b16 %v498
        %v564 = vunpack.c.l.b16 %v499
        %v565 = vunpack.c.h.b16 %v499
        %v566 = vunpack.c.l.b16 %v500
        %v567 = vunpack.c.h.b16 %v500
        %v568 = vunpack.c.l.b16 %v501
        %v569 = vunpack.c.h.b16 %v501
        %v570 = vunpack.c.l.b16 %v502
        %v571 = vunpack.c.h.b16 %v502
        %v572 = vunpack.c.l.b16 %v503
        %v573 = vunpack.c.h.b16 %v503
        %v574 = vunpack.c.l.b16 %v504
        %v575 = vunpack.c.h.b16 %v504
        %v576 = vunpack.c.l.b16 %v505
        %v577 = vunpack.c.h.b16 %v505
        %v578 = vunpack.c.l.b16 %v506
        %v579 = vunpack.c.h.b16 %v506
        %v580 = vunpack.c.l.b16 %v507
        %v581 = vunpack.c.h.b16 %v507
        %v582 = vunpack.c.l.b16 %v508
        %v583 = vunpack.c.h.b16 %v508
        %v584 = vunpack.c.l.b16 %v509
        %v585 = vunpack.c.h.b16 %v509
        %v586 = vunpack.c.l.b16 %v510
        %v587 = vunpack.c.h.b16 %v510
        %v588 = vunpack.c.l.b16 %v511
        %v589 = vunpack.c.h.b16 %v511
        %v590 = vunpack.c.l.b16 %v512
        %v591 = vunpack.c.h.b16 %v512
        %v592 = vunpack.c.l.b16 %v513
        %v593 = vunpack.c.h.b16 %v513
        %v594 = vunpack.c.l.b16 %v514
        %v595 = vunpack.c.h.b16 %v514
        %v596 = vunpack.c.l.b16 %v515
        %v597 = vunpack.c.h.b16 %v515
        %v598 = vunpack.c.l.b16 %v516
        %v599 = vunpack.c.h.b16 %v516
        %v600 = vunpack.c.l.b16 %v517
        %v601 = vunpack.c.h.b16 %v517
        %v602 = vunpack.c.l.b16 %v518
        %v603 = vunpack.c.h.b16 %v518
        %v604 = vunpack.c.l.b16 %v519
        %v605 = vunpack.c.h.b16 %v519
        %v606 = vunpack.c.l.b16 %v520
        %v607 = vunpack.c.h.b16 %v520
        %v608 = vunpack.c.l.b16 %v521
        %v609 = vunpack.c.h.b16 %v521
        %v610 = vunpack.c.l.b16 %v522
        %v611 = vunpack.c.h.b16 %v522
        %v612 = vunpack.c.l.b16 %v523
        %v613 = vunpack.c.h.b16 %v523
        %v614 = vunpack.c.l.b16 %v524
        %v615 = vunpack.c.h.b16 %v524
        %v616 = vunpack.c.l.b16 %v525
        %v617 = vunpack.c.h.b16 %v525
        %v618 = vunpack.c.l.b16 %v526
        %v619 = vunpack.c.h.b16 %v526
        %v620 = vunpack.c.l.b16 %v527
        %v621 = vunpack.c.h.b16 %v527
        %v622 = vunpack.c.l.b16 %v528
        %v623 = vunpack.c.h.b16 %v528
        %v624 = vunpack.c.l.b16 %v529
        %v625 = vunpack.c.h.b16 %v529
        %v626 = vpack.c.b16 %v564, %v562
        %v627 = vpack.c.b16 %v565, %v563
        %v628 = vpack.c.b16 %v568, %v566
        %v629 = vpack.c.b16 %v569, %v567
        %v630 = vpack.c.b16 %v572, %v570
        %v631 = vpack.c.b16 %v573, %v571
        %v632 = vpack.c.b16 %v576, %v574
        %v633 = vpack.c.b16 %v577, %v575
        %v634 = vpack.c.b16 %v580, %v578
        %v635 = vpack.c.b16 %v581, %v579
        %v636 = vpack.c.b16 %v584, %v582
        %v637 = vpack.c.b16 %v585, %v583
        %v638 = vpack.c.b16 %v588, %v586
        %v639 = vpack.c.b16 %v589, %v587
        %v640 = vpack.c.b16 %v592, %v590
        %v641 = vpack.c.b16 %v593, %v591
        %v642 = vpack.c.b16 %v596, %v594
        %v643 = vpack.c.b16 %v597, %v595
        %v644 = vpack.c.b16 %v600, %v598
        %v645 = vpack.c.b16 %v601, %v599
        %v646 = vpack.c.b16 %v604, %v602
        %v647 = vpack.c.b16 %v605, %v603
        %v648 = vpack.c.b16 %v608, %v606
        %v649 = vpack.c.b16 %v609, %v607
        %v650 = vpack.c.b16 %v612, %v610
        %v651 = vpack.c.b16 %v613, %v611
        %v652 = vpack.c.b16 %v616, %v614
        %v653 = vpack.c.b16 %v617, %v615
        %v654 = vpack.c.b16 %v620, %v618
        %v655 = vpack.c.b16 %v621, %v619
        %v656 = vpack.c.b16 %v624, %v622
        %v657 = vpack.c.b16 %v625, %v623
        %690 = vmatpush.bf16.msra.mxu0 %v640
        %691 = vmatpush.bf16.msra.mxu0 %v638
        %692 = vmatpush.bf16.msra.mxu0 %v636
        %693 = vmatpush.bf16.msra.mxu0 %v634
        %694 = vmatpush.bf16.msra.mxu0 %v632
        %695 = vmatpush.bf16.msra.mxu0 %v630
        %696 = vmatpush.bf16.msra.mxu0 %v628
        %697 = vmatpush.bf16.msra.mxu0 %v626
        %698 = vmatmul.bf16.gmra.mxu0 %v466
        %v699 = vpop.f32.mrf.mxu0
        %v700 = vadd.f32 0.0, %v699
        %v701 = vpop.f32.mrf.mxu0
        %v702 = vadd.f32 0.0, %v701
        %703 = vmatmul.bf16.gmra.mxu0 %v468
        %v704 = vpop.f32.mrf.mxu0
        %v705 = vadd.f32 0.0, %v704
        %v706 = vpop.f32.mrf.mxu0
        %v707 = vadd.f32 0.0, %v706
        %708 = vmatmul.bf16.gmra.mxu0 %v470
        %v709 = vpop.f32.mrf.mxu0
        %v710 = vadd.f32 0.0, %v709
        %v711 = vpop.f32.mrf.mxu0
        %v712 = vadd.f32 0.0, %v711
        %713 = vmatmul.bf16.gmra.mxu0 %v472
        %v714 = vpop.f32.mrf.mxu0
        %v715 = vadd.f32 0.0, %v714
        %v716 = vpop.f32.mrf.mxu0
        %v717 = vadd.f32 0.0, %v716
        %718 = vmatmul.bf16.gmra.mxu0 %v474
        %v719 = vpop.f32.mrf.mxu0
        %v720 = vadd.f32 0.0, %v719
        %v721 = vpop.f32.mrf.mxu0
        %v722 = vadd.f32 0.0, %v721
        %723 = vmatmul.bf16.gmra.mxu0 %v476
        %v724 = vpop.f32.mrf.mxu0
        %v725 = vadd.f32 0.0, %v724
        %v726 = vpop.f32.mrf.mxu0
        %v727 = vadd.f32 0.0, %v726
        %728 = vmatmul.bf16.gmra.mxu0 %v478
        %v729 = vpop.f32.mrf.mxu0
        %v730 = vadd.f32 0.0, %v729
        %v731 = vpop.f32.mrf.mxu0
        %v732 = vadd.f32 0.0, %v731
        %733 = vmatmul.bf16.gmra.mxu0 %v480
        %v734 = vpop.f32.mrf.mxu0
        %v735 = vadd.f32 0.0, %v734
        %v736 = vpop.f32.mrf.mxu0
        %v737 = vadd.f32 0.0, %v736
        %738 = vmatmul.bf16.gmra.mxu0 %v482
        %v739 = vpop.f32.mrf.mxu0
        %v740 = vadd.f32 0.0, %v739
        %v741 = vpop.f32.mrf.mxu0
        %v742 = vadd.f32 0.0, %v741
        %743 = vmatmul.bf16.gmra.mxu0 %v484
        %v744 = vpop.f32.mrf.mxu0
        %v745 = vadd.f32 0.0, %v744
        %v746 = vpop.f32.mrf.mxu0
        %v747 = vadd.f32 0.0, %v746
        %748 = vmatmul.bf16.gmra.mxu0 %v486
        %v749 = vpop.f32.mrf.mxu0
        %v750 = vadd.f32 0.0, %v749
        %v751 = vpop.f32.mrf.mxu0
        %v752 = vadd.f32 0.0, %v751
        %753 = vmatmul.bf16.gmra.mxu0 %v488
        %v754 = vpop.f32.mrf.mxu0
        %v755 = vadd.f32 0.0, %v754
        %v756 = vpop.f32.mrf.mxu0
        %v757 = vadd.f32 0.0, %v756
        %758 = vmatmul.bf16.gmra.mxu0 %v490
        %v759 = vpop.f32.mrf.mxu0
        %v760 = vadd.f32 0.0, %v759
        %v761 = vpop.f32.mrf.mxu0
        %v762 = vadd.f32 0.0, %v761
        %763 = vmatmul.bf16.gmra.mxu0 %v492
        %v764 = vpop.f32.mrf.mxu0
        %v765 = vadd.f32 0.0, %v764
        %v766 = vpop.f32.mrf.mxu0
        %v767 = vadd.f32 0.0, %v766
        %768 = vmatmul.bf16.gmra.mxu0 %v494
        %v769 = vpop.f32.mrf.mxu0
        %v770 = vadd.f32 0.0, %v769
        %v771 = vpop.f32.mrf.mxu0
        %v772 = vadd.f32 0.0, %v771
        %773 = vmatmul.bf16.gmra.mxu0 %v496
        %v774 = vpop.f32.mrf.mxu0
        %v775 = vadd.f32 0.0, %v774
        %v776 = vpop.f32.mrf.mxu0
        %v777 = vadd.f32 0.0, %v776
        %778 = vdwg.mxu0
        %779 = vmatpush.bf16.msra.mxu0 %v656
        %780 = vmatpush.bf16.msra.mxu0 %v654
        %781 = vmatpush.bf16.msra.mxu0 %v652
        %782 = vmatpush.bf16.msra.mxu0 %v650
        %783 = vmatpush.bf16.msra.mxu0 %v648
        %784 = vmatpush.bf16.msra.mxu0 %v646
        %785 = vmatpush.bf16.msra.mxu0 %v644
        %786 = vmatpush.bf16.msra.mxu0 %v642
        %787 = vmatmul.bf16.gmra.mxu0 %v467
        %v788 = vpop.f32.mrf.mxu0
        %v789 = vadd.f32 %v700, %v788
        %v790 = vpop.f32.mrf.mxu0
        %v791 = vadd.f32 %v702, %v790
        %792 = vmatmul.bf16.gmra.mxu0 %v469
        %v793 = vpop.f32.mrf.mxu0
        %v794 = vadd.f32 %v705, %v793
        %v795 = vpop.f32.mrf.mxu0
        %v796 = vadd.f32 %v707, %v795
        %797 = vmatmul.bf16.gmra.mxu0 %v471
        %v798 = vpop.f32.mrf.mxu0
        %v799 = vadd.f32 %v710, %v798
        %v800 = vpop.f32.mrf.mxu0
        %v801 = vadd.f32 %v712, %v800
        %802 = vmatmul.bf16.gmra.mxu0 %v473
        %v803 = vpop.f32.mrf.mxu0
        %v804 = vadd.f32 %v715, %v803
        %v805 = vpop.f32.mrf.mxu0
        %v806 = vadd.f32 %v717, %v805
        %807 = vmatmul.bf16.gmra.mxu0 %v475
        %v808 = vpop.f32.mrf.mxu0
        %v809 = vadd.f32 %v720, %v808
        %v810 = vpop.f32.mrf.mxu0
        %v811 = vadd.f32 %v722, %v810
        %812 = vmatmul.bf16.gmra.mxu0 %v477
        %v813 = vpop.f32.mrf.mxu0
        %v814 = vadd.f32 %v725, %v813
        %v815 = vpop.f32.mrf.mxu0
        %v816 = vadd.f32 %v727, %v815
        %817 = vmatmul.bf16.gmra.mxu0 %v479
        %v818 = vpop.f32.mrf.mxu0
        %v819 = vadd.f32 %v730, %v818
        %v820 = vpop.f32.mrf.mxu0
        %v821 = vadd.f32 %v732, %v820
        %822 = vmatmul.bf16.gmra.mxu0 %v481
        %v823 = vpop.f32.mrf.mxu0
        %v824 = vadd.f32 %v735, %v823
        %v825 = vpop.f32.mrf.mxu0
        %v826 = vadd.f32 %v737, %v825
        %827 = vmatmul.bf16.gmra.mxu0 %v483
        %v828 = vpop.f32.mrf.mxu0
        %v829 = vadd.f32 %v740, %v828
        %v830 = vpop.f32.mrf.mxu0
        %v831 = vadd.f32 %v742, %v830
        %832 = vmatmul.bf16.gmra.mxu0 %v485
        %v833 = vpop.f32.mrf.mxu0
        %v834 = vadd.f32 %v745, %v833
        %v835 = vpop.f32.mrf.mxu0
        %v836 = vadd.f32 %v747, %v835
        %837 = vmatmul.bf16.gmra.mxu0 %v487
        %v838 = vpop.f32.mrf.mxu0
        %v839 = vadd.f32 %v750, %v838
        %v840 = vpop.f32.mrf.mxu0
        %v841 = vadd.f32 %v752, %v840
        %842 = vmatmul.bf16.gmra.mxu0 %v489
        %v843 = vpop.f32.mrf.mxu0
        %v844 = vadd.f32 %v755, %v843
        %v845 = vpop.f32.mrf.mxu0
        %v846 = vadd.f32 %v757, %v845
        %847 = vmatmul.bf16.gmra.mxu0 %v491
        %v848 = vpop.f32.mrf.mxu0
        %v849 = vadd.f32 %v760, %v848
        %v850 = vpop.f32.mrf.mxu0
        %v851 = vadd.f32 %v762, %v850
        %852 = vmatmul.bf16.gmra.mxu0 %v493
        %v853 = vpop.f32.mrf.mxu0
        %v854 = vadd.f32 %v765, %v853
        %v855 = vpop.f32.mrf.mxu0
        %v856 = vadd.f32 %v767, %v855
        %857 = vmatmul.bf16.gmra.mxu0 %v495
        %v858 = vpop.f32.mrf.mxu0
        %v859 = vadd.f32 %v770, %v858
        %v860 = vpop.f32.mrf.mxu0
        %v861 = vadd.f32 %v772, %v860
        %862 = vmatmul.bf16.gmra.mxu0 %v497
        %v863 = vpop.f32.mrf.mxu0
        %v864 = vadd.f32 %v775, %v863
        %v865 = vpop.f32.mrf.mxu0
        %v866 = vadd.f32 %v777, %v865
        %867 = vdwg.mxu0
        %868 = vmatpush.bf16.msra.mxu0 %v641
        %869 = vmatpush.bf16.msra.mxu0 %v639
        %870 = vmatpush.bf16.msra.mxu0 %v637
        %871 = vmatpush.bf16.msra.mxu0 %v635
        %872 = vmatpush.bf16.msra.mxu0 %v633
        %873 = vmatpush.bf16.msra.mxu0 %v631
        %874 = vmatpush.bf16.msra.mxu0 %v629
        %875 = vmatpush.bf16.msra.mxu0 %v627
        %876 = vmatmul.bf16.gmra.mxu0 %v466
        %v877 = vpop.f32.mrf.mxu0
        %v878 = vadd.f32 0.0, %v877
        %v879 = vpop.f32.mrf.mxu0
        %v880 = vadd.f32 0.0, %v879
        %881 = vmatmul.bf16.gmra.mxu0 %v468
        %v882 = vpop.f32.mrf.mxu0
        %v883 = vadd.f32 0.0, %v882
        %v884 = vpop.f32.mrf.mxu0
        %v885 = vadd.f32 0.0, %v884
        %886 = vmatmul.bf16.gmra.mxu0 %v470
        %v887 = vpop.f32.mrf.mxu0
        %v888 = vadd.f32 0.0, %v887
        %v889 = vpop.f32.mrf.mxu0
        %v890 = vadd.f32 0.0, %v889
        %891 = vmatmul.bf16.gmra.mxu0 %v472
        %v892 = vpop.f32.mrf.mxu0
        %v893 = vadd.f32 0.0, %v892
        %v894 = vpop.f32.mrf.mxu0
        %v895 = vadd.f32 0.0, %v894
        %896 = vmatmul.bf16.gmra.mxu0 %v474
        %v897 = vpop.f32.mrf.mxu0
        %v898 = vadd.f32 0.0, %v897
        %v899 = vpop.f32.mrf.mxu0
        %v900 = vadd.f32 0.0, %v899
        %901 = vmatmul.bf16.gmra.mxu0 %v476
        %v902 = vpop.f32.mrf.mxu0
        %v903 = vadd.f32 0.0, %v902
        %v904 = vpop.f32.mrf.mxu0
        %v905 = vadd.f32 0.0, %v904
        %906 = vmatmul.bf16.gmra.mxu0 %v478
        %v907 = vpop.f32.mrf.mxu0
        %v908 = vadd.f32 0.0, %v907
        %v909 = vpop.f32.mrf.mxu0
        %v910 = vadd.f32 0.0, %v909
        %911 = vmatmul.bf16.gmra.mxu0 %v480
        %v912 = vpop.f32.mrf.mxu0
        %v913 = vadd.f32 0.0, %v912
        %v914 = vpop.f32.mrf.mxu0
        %v915 = vadd.f32 0.0, %v914
        %916 = vmatmul.bf16.gmra.mxu0 %v482
        %v917 = vpop.f32.mrf.mxu0
        %v918 = vadd.f32 0.0, %v917
        %v919 = vpop.f32.mrf.mxu0
        %v920 = vadd.f32 0.0, %v919
        %921 = vmatmul.bf16.gmra.mxu0 %v484
        %v922 = vpop.f32.mrf.mxu0
        %v923 = vadd.f32 0.0, %v922
        %v924 = vpop.f32.mrf.mxu0
        %v925 = vadd.f32 0.0, %v924
        %926 = vmatmul.bf16.gmra.mxu0 %v486
        %v927 = vpop.f32.mrf.mxu0
        %v928 = vadd.f32 0.0, %v927
        %v929 = vpop.f32.mrf.mxu0
        %v930 = vadd.f32 0.0, %v929
        %931 = vmatmul.bf16.gmra.mxu0 %v488
        %v932 = vpop.f32.mrf.mxu0
        %v933 = vadd.f32 0.0, %v932
        %v934 = vpop.f32.mrf.mxu0
        %v935 = vadd.f32 0.0, %v934
        %936 = vmatmul.bf16.gmra.mxu0 %v490
        %v937 = vpop.f32.mrf.mxu0
        %v938 = vadd.f32 0.0, %v937
        %v939 = vpop.f32.mrf.mxu0
        %v940 = vadd.f32 0.0, %v939
        %941 = vmatmul.bf16.gmra.mxu0 %v492
        %v942 = vpop.f32.mrf.mxu0
        %v943 = vadd.f32 0.0, %v942
        %v944 = vpop.f32.mrf.mxu0
        %v945 = vadd.f32 0.0, %v944
        %946 = vmatmul.bf16.gmra.mxu0 %v494
        %v947 = vpop.f32.mrf.mxu0
        %v948 = vadd.f32 0.0, %v947
        %v949 = vpop.f32.mrf.mxu0
        %v950 = vadd.f32 0.0, %v949
        %951 = vmatmul.bf16.gmra.mxu0 %v496
        %v952 = vpop.f32.mrf.mxu0
        %v953 = vadd.f32 0.0, %v952
        %v954 = vpop.f32.mrf.mxu0
        %v955 = vadd.f32 0.0, %v954
        %956 = vdwg.mxu0
        %957 = vmatpush.bf16.msra.mxu0 %v657
        %958 = vmatpush.bf16.msra.mxu0 %v655
        %959 = vmatpush.bf16.msra.mxu0 %v653
        %960 = vmatpush.bf16.msra.mxu0 %v651
        %961 = vmatpush.bf16.msra.mxu0 %v649
        %962 = vmatpush.bf16.msra.mxu0 %v647
        %963 = vmatpush.bf16.msra.mxu0 %v645
        %964 = vmatpush.bf16.msra.mxu0 %v643
        %965 = vmatmul.bf16.gmra.mxu0 %v467
        %v966 = vpop.f32.mrf.mxu0
        %v967 = vadd.f32 %v878, %v966
        %v968 = vpop.f32.mrf.mxu0
        %v969 = vadd.f32 %v880, %v968
        %970 = vmatmul.bf16.gmra.mxu0 %v469
        %v971 = vpop.f32.mrf.mxu0
        %v972 = vadd.f32 %v883, %v971
        %v973 = vpop.f32.mrf.mxu0
        %v974 = vadd.f32 %v885, %v973
        %975 = vmatmul.bf16.gmra.mxu0 %v471
        %v976 = vpop.f32.mrf.mxu0
        %v977 = vadd.f32 %v888, %v976
        %v978 = vpop.f32.mrf.mxu0
        %v979 = vadd.f32 %v890, %v978
        %980 = vmatmul.bf16.gmra.mxu0 %v473
        %v981 = vpop.f32.mrf.mxu0
        %v982 = vadd.f32 %v893, %v981
        %v983 = vpop.f32.mrf.mxu0
        %v984 = vadd.f32 %v895, %v983
        %985 = vmatmul.bf16.gmra.mxu0 %v475
        %v986 = vpop.f32.mrf.mxu0
        %v987 = vadd.f32 %v898, %v986
        %v988 = vpop.f32.mrf.mxu0
        %v989 = vadd.f32 %v900, %v988
        %990 = vmatmul.bf16.gmra.mxu0 %v477
        %v991 = vpop.f32.mrf.mxu0
        %v992 = vadd.f32 %v903, %v991
        %v993 = vpop.f32.mrf.mxu0
        %v994 = vadd.f32 %v905, %v993
        %995 = vmatmul.bf16.gmra.mxu0 %v479
        %v996 = vpop.f32.mrf.mxu0
        %v997 = vadd.f32 %v908, %v996
        %v998 = vpop.f32.mrf.mxu0
        %v999 = vadd.f32 %v910, %v998
        %1000 = vmatmul.bf16.gmra.mxu0 %v481
        %v1001 = vpop.f32.mrf.mxu0
        %v1002 = vadd.f32 %v913, %v1001
        %v1003 = vpop.f32.mrf.mxu0
        %v1004 = vadd.f32 %v915, %v1003
        %1005 = vmatmul.bf16.gmra.mxu0 %v483
        %v1006 = vpop.f32.mrf.mxu0
        %v1007 = vadd.f32 %v918, %v1006
        %v1008 = vpop.f32.mrf.mxu0
        %v1009 = vadd.f32 %v920, %v1008
        %1010 = vmatmul.bf16.gmra.mxu0 %v485
        %v1011 = vpop.f32.mrf.mxu0
        %v1012 = vadd.f32 %v923, %v1011
        %v1013 = vpop.f32.mrf.mxu0
        %v1014 = vadd.f32 %v925, %v1013
        %1015 = vmatmul.bf16.gmra.mxu0 %v487
        %v1016 = vpop.f32.mrf.mxu0
        %v1017 = vadd.f32 %v928, %v1016
        %v1018 = vpop.f32.mrf.mxu0
        %v1019 = vadd.f32 %v930, %v1018
        %1020 = vmatmul.bf16.gmra.mxu0 %v489
        %v1021 = vpop.f32.mrf.mxu0
        %v1022 = vadd.f32 %v933, %v1021
        %v1023 = vpop.f32.mrf.mxu0
        %v1024 = vadd.f32 %v935, %v1023
        %1025 = vmatmul.bf16.gmra.mxu0 %v491
        %v1026 = vpop.f32.mrf.mxu0
        %v1027 = vadd.f32 %v938, %v1026
        %v1028 = vpop.f32.mrf.mxu0
        %v1029 = vadd.f32 %v940, %v1028
        %1030 = vmatmul.bf16.gmra.mxu0 %v493
        %v1031 = vpop.f32.mrf.mxu0
        %v1032 = vadd.f32 %v943, %v1031
        %v1033 = vpop.f32.mrf.mxu0
        %v1034 = vadd.f32 %v945, %v1033
        %1035 = vmatmul.bf16.gmra.mxu0 %v495
        %v1036 = vpop.f32.mrf.mxu0
        %v1037 = vadd.f32 %v948, %v1036
        %v1038 = vpop.f32.mrf.mxu0
        %v1039 = vadd.f32 %v950, %v1038
        %1040 = vmatmul.bf16.gmra.mxu0 %v497
        %v1041 = vpop.f32.mrf.mxu0
        %v1042 = vadd.f32 %v953, %v1041
        %v1043 = vpop.f32.mrf.mxu0
        %v1044 = vadd.f32 %v955, %v1043
        %1045 = vdwg.mxu0
        %v1046 = vld [vmem:[%s290] sm:$0xff]
        %v1047 = vld [vmem:[%s290 + $0x8] sm:$0xff]
        %v1048 = vld [vmem:[%s290 + $0x10] sm:$0xff]
        %v1049 = vld [vmem:[%s290 + $0x18] sm:$0xff]
        %v1050 = vld [vmem:[%s290 + $0x20] sm:$0xff]
        %v1051 = vld [vmem:[%s290 + $0x28] sm:$0xff]
        %v1052 = vld [vmem:[%s290 + $0x30] sm:$0xff]
        %v1053 = vld [vmem:[%s290 + $0x38] sm:$0xff]
        %v1054 = vld [vmem:[%s290 + $0x40] sm:$0xff]
        %v1055 = vld [vmem:[%s290 + $0x48] sm:$0xff]
        %v1056 = vld [vmem:[%s290 + $0x50] sm:$0xff]
        %v1057 = vld [vmem:[%s290 + $0x58] sm:$0xff]
        %v1058 = vld [vmem:[%s290 + $0x60] sm:$0xff]
        %v1059 = vld [vmem:[%s290 + $0x68] sm:$0xff]
        %v1060 = vld [vmem:[%s290 + $0x70] sm:$0xff]
        %v1061 = vld [vmem:[%s290 + $0x78] sm:$0xff]
        %v1062 = vld [vmem:[%s290 + $0x80] sm:$0xff]
        %v1063 = vld [vmem:[%s290 + $0x88] sm:$0xff]
        %v1064 = vld [vmem:[%s290 + $0x90] sm:$0xff]
        %v1065 = vld [vmem:[%s290 + $0x98] sm:$0xff]
        %v1066 = vld [vmem:[%s290 + $0xa0] sm:$0xff]
        %v1067 = vld [vmem:[%s290 + $0xa8] sm:$0xff]
        %v1068 = vld [vmem:[%s290 + $0xb0] sm:$0xff]
        %v1069 = vld [vmem:[%s290 + $0xb8] sm:$0xff]
        %v1070 = vld [vmem:[%s290 + $0xc0] sm:$0xff]
        %v1071 = vld [vmem:[%s290 + $0xc8] sm:$0xff]
        %v1072 = vld [vmem:[%s290 + $0xd0] sm:$0xff]
        %v1073 = vld [vmem:[%s290 + $0xd8] sm:$0xff]
        %v1074 = vld [vmem:[%s290 + $0xe0] sm:$0xff]
        %v1075 = vld [vmem:[%s290 + $0xe8] sm:$0xff]
        %v1076 = vld [vmem:[%s290 + $0xf0] sm:$0xff]
        %v1077 = vld [vmem:[%s290 + $0xf8] sm:$0xff]
        %v1110 = vunpack.c.l.b16 %v1046
        %v1111 = vunpack.c.h.b16 %v1046
        %v1112 = vunpack.c.l.b16 %v1047
        %v1113 = vunpack.c.h.b16 %v1047
        %v1114 = vunpack.c.l.b16 %v1048
        %v1115 = vunpack.c.h.b16 %v1048
        %v1116 = vunpack.c.l.b16 %v1049
        %v1117 = vunpack.c.h.b16 %v1049
        %v1118 = vunpack.c.l.b16 %v1050
        %v1119 = vunpack.c.h.b16 %v1050
        %v1120 = vunpack.c.l.b16 %v1051
        %v1121 = vunpack.c.h.b16 %v1051
        %v1122 = vunpack.c.l.b16 %v1052
        %v1123 = vunpack.c.h.b16 %v1052
        %v1124 = vunpack.c.l.b16 %v1053
        %v1125 = vunpack.c.h.b16 %v1053
        %v1126 = vunpack.c.l.b16 %v1054
        %v1127 = vunpack.c.h.b16 %v1054
        %v1128 = vunpack.c.l.b16 %v1055
        %v1129 = vunpack.c.h.b16 %v1055
        %v1130 = vunpack.c.l.b16 %v1056
        %v1131 = vunpack.c.h.b16 %v1056
        %v1132 = vunpack.c.l.b16 %v1057
        %v1133 = vunpack.c.h.b16 %v1057
        %v1134 = vunpack.c.l.b16 %v1058
        %v1135 = vunpack.c.h.b16 %v1058
        %v1136 = vunpack.c.l.b16 %v1059
        %v1137 = vunpack.c.h.b16 %v1059
        %v1138 = vunpack.c.l.b16 %v1060
        %v1139 = vunpack.c.h.b16 %v1060
        %v1140 = vunpack.c.l.b16 %v1061
        %v1141 = vunpack.c.h.b16 %v1061
        %v1142 = vunpack.c.l.b16 %v1062
        %v1143 = vunpack.c.h.b16 %v1062
        %v1144 = vunpack.c.l.b16 %v1063
        %v1145 = vunpack.c.h.b16 %v1063
        %v1146 = vunpack.c.l.b16 %v1064
        %v1147 = vunpack.c.h.b16 %v1064
        %v1148 = vunpack.c.l.b16 %v1065
        %v1149 = vunpack.c.h.b16 %v1065
        %v1150 = vunpack.c.l.b16 %v1066
        %v1151 = vunpack.c.h.b16 %v1066
        %v1152 = vunpack.c.l.b16 %v1067
        %v1153 = vunpack.c.h.b16 %v1067
        %v1154 = vunpack.c.l.b16 %v1068
        %v1155 = vunpack.c.h.b16 %v1068
        %v1156 = vunpack.c.l.b16 %v1069
        %v1157 = vunpack.c.h.b16 %v1069
        %v1158 = vunpack.c.l.b16 %v1070
        %v1159 = vunpack.c.h.b16 %v1070
        %v1160 = vunpack.c.l.b16 %v1071
        %v1161 = vunpack.c.h.b16 %v1071
        %v1162 = vunpack.c.l.b16 %v1072
        %v1163 = vunpack.c.h.b16 %v1072
        %v1164 = vunpack.c.l.b16 %v1073
        %v1165 = vunpack.c.h.b16 %v1073
        %v1166 = vunpack.c.l.b16 %v1074
        %v1167 = vunpack.c.h.b16 %v1074
        %v1168 = vunpack.c.l.b16 %v1075
        %v1169 = vunpack.c.h.b16 %v1075
        %v1170 = vunpack.c.l.b16 %v1076
        %v1171 = vunpack.c.h.b16 %v1076
        %v1172 = vunpack.c.l.b16 %v1077
        %v1173 = vunpack.c.h.b16 %v1077
        %v1174 = vpack.c.b16 %v1112, %v1110
        %v1175 = vpack.c.b16 %v1113, %v1111
        %v1176 = vpack.c.b16 %v1116, %v1114
        %v1177 = vpack.c.b16 %v1117, %v1115
        %v1178 = vpack.c.b16 %v1120, %v1118
        %v1179 = vpack.c.b16 %v1121, %v1119
        %v1180 = vpack.c.b16 %v1124, %v1122
        %v1181 = vpack.c.b16 %v1125, %v1123
        %v1182 = vpack.c.b16 %v1128, %v1126
        %v1183 = vpack.c.b16 %v1129, %v1127
        %v1184 = vpack.c.b16 %v1132, %v1130
        %v1185 = vpack.c.b16 %v1133, %v1131
        %v1186 = vpack.c.b16 %v1136, %v1134
        %v1187 = vpack.c.b16 %v1137, %v1135
        %v1188 = vpack.c.b16 %v1140, %v1138
        %v1189 = vpack.c.b16 %v1141, %v1139
        %v1190 = vpack.c.b16 %v1144, %v1142
        %v1191 = vpack.c.b16 %v1145, %v1143
        %v1192 = vpack.c.b16 %v1148, %v1146
        %v1193 = vpack.c.b16 %v1149, %v1147
        %v1194 = vpack.c.b16 %v1152, %v1150
        %v1195 = vpack.c.b16 %v1153, %v1151
        %v1196 = vpack.c.b16 %v1156, %v1154
        %v1197 = vpack.c.b16 %v1157, %v1155
        %v1198 = vpack.c.b16 %v1160, %v1158
        %v1199 = vpack.c.b16 %v1161, %v1159
        %v1200 = vpack.c.b16 %v1164, %v1162
        %v1201 = vpack.c.b16 %v1165, %v1163
        %v1202 = vpack.c.b16 %v1168, %v1166
        %v1203 = vpack.c.b16 %v1169, %v1167
        %v1204 = vpack.c.b16 %v1172, %v1170
        %v1205 = vpack.c.b16 %v1173, %v1171
        %1238 = vmatpush.bf16.msra.mxu0 %v1188
        %1239 = vmatpush.bf16.msra.mxu0 %v1186
        %1240 = vmatpush.bf16.msra.mxu0 %v1184
        %1241 = vmatpush.bf16.msra.mxu0 %v1182
        %1242 = vmatpush.bf16.msra.mxu0 %v1180
        %1243 = vmatpush.bf16.msra.mxu0 %v1178
        %1244 = vmatpush.bf16.msra.mxu0 %v1176
        %1245 = vmatpush.bf16.msra.mxu0 %v1174
        %1246 = vmatmul.bf16.gmra.mxu0 %v466
        %v1247 = vpop.f32.mrf.mxu0
        %v1248 = vadd.f32 0.0, %v1247
        %v1249 = vpop.f32.mrf.mxu0
        %v1250 = vadd.f32 0.0, %v1249
        %1251 = vmatmul.bf16.gmra.mxu0 %v468
        %v1252 = vpop.f32.mrf.mxu0
        %v1253 = vadd.f32 0.0, %v1252
        %v1254 = vpop.f32.mrf.mxu0
        %v1255 = vadd.f32 0.0, %v1254
        %1256 = vmatmul.bf16.gmra.mxu0 %v470
        %v1257 = vpop.f32.mrf.mxu0
        %v1258 = vadd.f32 0.0, %v1257
        %v1259 = vpop.f32.mrf.mxu0
        %v1260 = vadd.f32 0.0, %v1259
        %1261 = vmatmul.bf16.gmra.mxu0 %v472
        %v1262 = vpop.f32.mrf.mxu0
        %v1263 = vadd.f32 0.0, %v1262
        %v1264 = vpop.f32.mrf.mxu0
        %v1265 = vadd.f32 0.0, %v1264
        %1266 = vmatmul.bf16.gmra.mxu0 %v474
        %v1267 = vpop.f32.mrf.mxu0
        %v1268 = vadd.f32 0.0, %v1267
        %v1269 = vpop.f32.mrf.mxu0
        %v1270 = vadd.f32 0.0, %v1269
        %1271 = vmatmul.bf16.gmra.mxu0 %v476
        %v1272 = vpop.f32.mrf.mxu0
        %v1273 = vadd.f32 0.0, %v1272
        %v1274 = vpop.f32.mrf.mxu0
        %v1275 = vadd.f32 0.0, %v1274
        %1276 = vmatmul.bf16.gmra.mxu0 %v478
        %v1277 = vpop.f32.mrf.mxu0
        %v1278 = vadd.f32 0.0, %v1277
        %v1279 = vpop.f32.mrf.mxu0
        %v1280 = vadd.f32 0.0, %v1279
        %1281 = vmatmul.bf16.gmra.mxu0 %v480
        %v1282 = vpop.f32.mrf.mxu0
        %v1283 = vadd.f32 0.0, %v1282
        %v1284 = vpop.f32.mrf.mxu0
        %v1285 = vadd.f32 0.0, %v1284
        %1286 = vmatmul.bf16.gmra.mxu0 %v482
        %v1287 = vpop.f32.mrf.mxu0
        %v1288 = vadd.f32 0.0, %v1287
        %v1289 = vpop.f32.mrf.mxu0
        %v1290 = vadd.f32 0.0, %v1289
        %1291 = vmatmul.bf16.gmra.mxu0 %v484
        %v1292 = vpop.f32.mrf.mxu0
        %v1293 = vadd.f32 0.0, %v1292
        %v1294 = vpop.f32.mrf.mxu0
        %v1295 = vadd.f32 0.0, %v1294
        %1296 = vmatmul.bf16.gmra.mxu0 %v486
        %v1297 = vpop.f32.mrf.mxu0
        %v1298 = vadd.f32 0.0, %v1297
        %v1299 = vpop.f32.mrf.mxu0
        %v1300 = vadd.f32 0.0, %v1299
        %1301 = vmatmul.bf16.gmra.mxu0 %v488
        %v1302 = vpop.f32.mrf.mxu0
        %v1303 = vadd.f32 0.0, %v1302
        %v1304 = vpop.f32.mrf.mxu0
        %v1305 = vadd.f32 0.0, %v1304
        %1306 = vmatmul.bf16.gmra.mxu0 %v490
        %v1307 = vpop.f32.mrf.mxu0
        %v1308 = vadd.f32 0.0, %v1307
        %v1309 = vpop.f32.mrf.mxu0
        %v1310 = vadd.f32 0.0, %v1309
        %1311 = vmatmul.bf16.gmra.mxu0 %v492
        %v1312 = vpop.f32.mrf.mxu0
        %v1313 = vadd.f32 0.0, %v1312
        %v1314 = vpop.f32.mrf.mxu0
        %v1315 = vadd.f32 0.0, %v1314
        %1316 = vmatmul.bf16.gmra.mxu0 %v494
        %v1317 = vpop.f32.mrf.mxu0
        %v1318 = vadd.f32 0.0, %v1317
        %v1319 = vpop.f32.mrf.mxu0
        %v1320 = vadd.f32 0.0, %v1319
        %1321 = vmatmul.bf16.gmra.mxu0 %v496
        %v1322 = vpop.f32.mrf.mxu0
        %v1323 = vadd.f32 0.0, %v1322
        %v1324 = vpop.f32.mrf.mxu0
        %v1325 = vadd.f32 0.0, %v1324
        %1326 = vdwg.mxu0
        %1327 = vmatpush.bf16.msra.mxu0 %v1204
        %1328 = vmatpush.bf16.msra.mxu0 %v1202
        %1329 = vmatpush.bf16.msra.mxu0 %v1200
        %1330 = vmatpush.bf16.msra.mxu0 %v1198
        %1331 = vmatpush.bf16.msra.mxu0 %v1196
        %1332 = vmatpush.bf16.msra.mxu0 %v1194
        %1333 = vmatpush.bf16.msra.mxu0 %v1192
        %1334 = vmatpush.bf16.msra.mxu0 %v1190
        %1335 = vmatmul.bf16.gmra.mxu0 %v467
        %v1336 = vpop.f32.mrf.mxu0
        %v1337 = vadd.f32 %v1248, %v1336
        %v1338 = vpop.f32.mrf.mxu0
        %v1339 = vadd.f32 %v1250, %v1338
        %1340 = vmatmul.bf16.gmra.mxu0 %v469
        %v1341 = vpop.f32.mrf.mxu0
        %v1342 = vadd.f32 %v1253, %v1341
        %v1343 = vpop.f32.mrf.mxu0
        %v1344 = vadd.f32 %v1255, %v1343
        %1345 = vmatmul.bf16.gmra.mxu0 %v471
        %v1346 = vpop.f32.mrf.mxu0
        %v1347 = vadd.f32 %v1258, %v1346
        %v1348 = vpop.f32.mrf.mxu0
        %v1349 = vadd.f32 %v1260, %v1348
        %1350 = vmatmul.bf16.gmra.mxu0 %v473
        %v1351 = vpop.f32.mrf.mxu0
        %v1352 = vadd.f32 %v1263, %v1351
        %v1353 = vpop.f32.mrf.mxu0
        %v1354 = vadd.f32 %v1265, %v1353
        %1355 = vmatmul.bf16.gmra.mxu0 %v475
        %v1356 = vpop.f32.mrf.mxu0
        %v1357 = vadd.f32 %v1268, %v1356
        %v1358 = vpop.f32.mrf.mxu0
        %v1359 = vadd.f32 %v1270, %v1358
        %1360 = vmatmul.bf16.gmra.mxu0 %v477
        %v1361 = vpop.f32.mrf.mxu0
        %v1362 = vadd.f32 %v1273, %v1361
        %v1363 = vpop.f32.mrf.mxu0
        %v1364 = vadd.f32 %v1275, %v1363
        %1365 = vmatmul.bf16.gmra.mxu0 %v479
        %v1366 = vpop.f32.mrf.mxu0
        %v1367 = vadd.f32 %v1278, %v1366
        %v1368 = vpop.f32.mrf.mxu0
        %v1369 = vadd.f32 %v1280, %v1368
        %1370 = vmatmul.bf16.gmra.mxu0 %v481
        %v1371 = vpop.f32.mrf.mxu0
        %v1372 = vadd.f32 %v1283, %v1371
        %v1373 = vpop.f32.mrf.mxu0
        %v1374 = vadd.f32 %v1285, %v1373
        %1375 = vmatmul.bf16.gmra.mxu0 %v483
        %v1376 = vpop.f32.mrf.mxu0
        %v1377 = vadd.f32 %v1288, %v1376
        %v1378 = vpop.f32.mrf.mxu0
        %v1379 = vadd.f32 %v1290, %v1378
        %1380 = vmatmul.bf16.gmra.mxu0 %v485
        %v1381 = vpop.f32.mrf.mxu0
        %v1382 = vadd.f32 %v1293, %v1381
        %v1383 = vpop.f32.mrf.mxu0
        %v1384 = vadd.f32 %v1295, %v1383
        %1385 = vmatmul.bf16.gmra.mxu0 %v487
        %v1386 = vpop.f32.mrf.mxu0
        %v1387 = vadd.f32 %v1298, %v1386
        %v1388 = vpop.f32.mrf.mxu0
        %v1389 = vadd.f32 %v1300, %v1388
        %1390 = vmatmul.bf16.gmra.mxu0 %v489
        %v1391 = vpop.f32.mrf.mxu0
        %v1392 = vadd.f32 %v1303, %v1391
        %v1393 = vpop.f32.mrf.mxu0
        %v1394 = vadd.f32 %v1305, %v1393
        %1395 = vmatmul.bf16.gmra.mxu0 %v491
        %v1396 = vpop.f32.mrf.mxu0
        %v1397 = vadd.f32 %v1308, %v1396
        %v1398 = vpop.f32.mrf.mxu0
        %v1399 = vadd.f32 %v1310, %v1398
        %1400 = vmatmul.bf16.gmra.mxu0 %v493
        %v1401 = vpop.f32.mrf.mxu0
        %v1402 = vadd.f32 %v1313, %v1401
        %v1403 = vpop.f32.mrf.mxu0
        %v1404 = vadd.f32 %v1315, %v1403
        %1405 = vmatmul.bf16.gmra.mxu0 %v495
        %v1406 = vpop.f32.mrf.mxu0
        %v1407 = vadd.f32 %v1318, %v1406
        %v1408 = vpop.f32.mrf.mxu0
        %v1409 = vadd.f32 %v1320, %v1408
        %1410 = vmatmul.bf16.gmra.mxu0 %v497
        %v1411 = vpop.f32.mrf.mxu0
        %v1412 = vadd.f32 %v1323, %v1411
        %v1413 = vpop.f32.mrf.mxu0
        %v1414 = vadd.f32 %v1325, %v1413
        %1415 = vdwg.mxu0
        %1416 = vmatpush.bf16.msra.mxu0 %v1189
        %1417 = vmatpush.bf16.msra.mxu0 %v1187
        %1418 = vmatpush.bf16.msra.mxu0 %v1185
        %1419 = vmatpush.bf16.msra.mxu0 %v1183
        %1420 = vmatpush.bf16.msra.mxu0 %v1181
        %1421 = vmatpush.bf16.msra.mxu0 %v1179
        %1422 = vmatpush.bf16.msra.mxu0 %v1177
        %1423 = vmatpush.bf16.msra.mxu0 %v1175
        %1424 = vmatmul.bf16.gmra.mxu0 %v466
        %v1425 = vpop.f32.mrf.mxu0
        %v1426 = vadd.f32 0.0, %v1425
        %v1427 = vpop.f32.mrf.mxu0
        %v1428 = vadd.f32 0.0, %v1427
        %1429 = vmatmul.bf16.gmra.mxu0 %v468
        %v1430 = vpop.f32.mrf.mxu0
        %v1431 = vadd.f32 0.0, %v1430
        %v1432 = vpop.f32.mrf.mxu0
        %v1433 = vadd.f32 0.0, %v1432
        %1434 = vmatmul.bf16.gmra.mxu0 %v470
        %v1435 = vpop.f32.mrf.mxu0
        %v1436 = vadd.f32 0.0, %v1435
        %v1437 = vpop.f32.mrf.mxu0
        %v1438 = vadd.f32 0.0, %v1437
        %1439 = vmatmul.bf16.gmra.mxu0 %v472
        %v1440 = vpop.f32.mrf.mxu0
        %v1441 = vadd.f32 0.0, %v1440
        %v1442 = vpop.f32.mrf.mxu0
        %v1443 = vadd.f32 0.0, %v1442
        %1444 = vmatmul.bf16.gmra.mxu0 %v474
        %v1445 = vpop.f32.mrf.mxu0
        %v1446 = vadd.f32 0.0, %v1445
        %v1447 = vpop.f32.mrf.mxu0
        %v1448 = vadd.f32 0.0, %v1447
        %1449 = vmatmul.bf16.gmra.mxu0 %v476
        %v1450 = vpop.f32.mrf.mxu0
        %v1451 = vadd.f32 0.0, %v1450
        %v1452 = vpop.f32.mrf.mxu0
        %v1453 = vadd.f32 0.0, %v1452
        %1454 = vmatmul.bf16.gmra.mxu0 %v478
        %v1455 = vpop.f32.mrf.mxu0
        %v1456 = vadd.f32 0.0, %v1455
        %v1457 = vpop.f32.mrf.mxu0
        %v1458 = vadd.f32 0.0, %v1457
        %1459 = vmatmul.bf16.gmra.mxu0 %v480
        %v1460 = vpop.f32.mrf.mxu0
        %v1461 = vadd.f32 0.0, %v1460
        %v1462 = vpop.f32.mrf.mxu0
        %v1463 = vadd.f32 0.0, %v1462
        %1464 = vmatmul.bf16.gmra.mxu0 %v482
        %v1465 = vpop.f32.mrf.mxu0
        %v1466 = vadd.f32 0.0, %v1465
        %v1467 = vpop.f32.mrf.mxu0
        %v1468 = vadd.f32 0.0, %v1467
        %1469 = vmatmul.bf16.gmra.mxu0 %v484
        %v1470 = vpop.f32.mrf.mxu0
        %v1471 = vadd.f32 0.0, %v1470
        %v1472 = vpop.f32.mrf.mxu0
        %v1473 = vadd.f32 0.0, %v1472
        %1474 = vmatmul.bf16.gmra.mxu0 %v486
        %v1475 = vpop.f32.mrf.mxu0
        %v1476 = vadd.f32 0.0, %v1475
        %v1477 = vpop.f32.mrf.mxu0
        %v1478 = vadd.f32 0.0, %v1477
        %1479 = vmatmul.bf16.gmra.mxu0 %v488
        %v1480 = vpop.f32.mrf.mxu0
        %v1481 = vadd.f32 0.0, %v1480
        %v1482 = vpop.f32.mrf.mxu0
        %v1483 = vadd.f32 0.0, %v1482
        %1484 = vmatmul.bf16.gmra.mxu0 %v490
        %v1485 = vpop.f32.mrf.mxu0
        %v1486 = vadd.f32 0.0, %v1485
        %v1487 = vpop.f32.mrf.mxu0
        %v1488 = vadd.f32 0.0, %v1487
        %1489 = vmatmul.bf16.gmra.mxu0 %v492
        %v1490 = vpop.f32.mrf.mxu0
        %v1491 = vadd.f32 0.0, %v1490
        %v1492 = vpop.f32.mrf.mxu0
        %v1493 = vadd.f32 0.0, %v1492
        %1494 = vmatmul.bf16.gmra.mxu0 %v494
        %v1495 = vpop.f32.mrf.mxu0
        %v1496 = vadd.f32 0.0, %v1495
        %v1497 = vpop.f32.mrf.mxu0
        %v1498 = vadd.f32 0.0, %v1497
        %1499 = vmatmul.bf16.gmra.mxu0 %v496
        %v1500 = vpop.f32.mrf.mxu0
        %v1501 = vadd.f32 0.0, %v1500
        %v1502 = vpop.f32.mrf.mxu0
        %v1503 = vadd.f32 0.0, %v1502
        %1504 = vdwg.mxu0
        %1505 = vmatpush.bf16.msra.mxu0 %v1205
        %1506 = vmatpush.bf16.msra.mxu0 %v1203
        %1507 = vmatpush.bf16.msra.mxu0 %v1201
        %1508 = vmatpush.bf16.msra.mxu0 %v1199
        %1509 = vmatpush.bf16.msra.mxu0 %v1197
        %1510 = vmatpush.bf16.msra.mxu0 %v1195
        %1511 = vmatpush.bf16.msra.mxu0 %v1193
        %1512 = vmatpush.bf16.msra.mxu0 %v1191
        %1513 = vmatmul.bf16.gmra.mxu0 %v467
        %v1514 = vpop.f32.mrf.mxu0
        %v1515 = vadd.f32 %v1426, %v1514
        %v1516 = vpop.f32.mrf.mxu0
        %v1517 = vadd.f32 %v1428, %v1516
        %1518 = vmatmul.bf16.gmra.mxu0 %v469
        %v1519 = vpop.f32.mrf.mxu0
        %v1520 = vadd.f32 %v1431, %v1519
        %v1521 = vpop.f32.mrf.mxu0
        %v1522 = vadd.f32 %v1433, %v1521
        %1523 = vmatmul.bf16.gmra.mxu0 %v471
        %v1524 = vpop.f32.mrf.mxu0
        %v1525 = vadd.f32 %v1436, %v1524
        %v1526 = vpop.f32.mrf.mxu0
        %v1527 = vadd.f32 %v1438, %v1526
        %1528 = vmatmul.bf16.gmra.mxu0 %v473
        %v1529 = vpop.f32.mrf.mxu0
        %v1530 = vadd.f32 %v1441, %v1529
        %v1531 = vpop.f32.mrf.mxu0
        %v1532 = vadd.f32 %v1443, %v1531
        %1533 = vmatmul.bf16.gmra.mxu0 %v475
        %v1534 = vpop.f32.mrf.mxu0
        %v1535 = vadd.f32 %v1446, %v1534
        %v1536 = vpop.f32.mrf.mxu0
        %v1537 = vadd.f32 %v1448, %v1536
        %1538 = vmatmul.bf16.gmra.mxu0 %v477
        %v1539 = vpop.f32.mrf.mxu0
        %v1540 = vadd.f32 %v1451, %v1539
        %v1541 = vpop.f32.mrf.mxu0
        %v1542 = vadd.f32 %v1453, %v1541
        %1543 = vmatmul.bf16.gmra.mxu0 %v479
        %v1544 = vpop.f32.mrf.mxu0
        %v1545 = vadd.f32 %v1456, %v1544
        %v1546 = vpop.f32.mrf.mxu0
        %v1547 = vadd.f32 %v1458, %v1546
        %1548 = vmatmul.bf16.gmra.mxu0 %v481
        %v1549 = vpop.f32.mrf.mxu0
        %v1550 = vadd.f32 %v1461, %v1549
        %v1551 = vpop.f32.mrf.mxu0
        %v1552 = vadd.f32 %v1463, %v1551
        %1553 = vmatmul.bf16.gmra.mxu0 %v483
        %v1554 = vpop.f32.mrf.mxu0
        %v1555 = vadd.f32 %v1466, %v1554
        %v1556 = vpop.f32.mrf.mxu0
        %v1557 = vadd.f32 %v1468, %v1556
        %1558 = vmatmul.bf16.gmra.mxu0 %v485
        %v1559 = vpop.f32.mrf.mxu0
        %v1560 = vadd.f32 %v1471, %v1559
        %v1561 = vpop.f32.mrf.mxu0
        %v1562 = vadd.f32 %v1473, %v1561
        %1563 = vmatmul.bf16.gmra.mxu0 %v487
        %v1564 = vpop.f32.mrf.mxu0
        %v1565 = vadd.f32 %v1476, %v1564
        %v1566 = vpop.f32.mrf.mxu0
        %v1567 = vadd.f32 %v1478, %v1566
        %1568 = vmatmul.bf16.gmra.mxu0 %v489
        %v1569 = vpop.f32.mrf.mxu0
        %v1570 = vadd.f32 %v1481, %v1569
        %v1571 = vpop.f32.mrf.mxu0
        %v1572 = vadd.f32 %v1483, %v1571
        %1573 = vmatmul.bf16.gmra.mxu0 %v491
        %v1574 = vpop.f32.mrf.mxu0
        %v1575 = vadd.f32 %v1486, %v1574
        %v1576 = vpop.f32.mrf.mxu0
        %v1577 = vadd.f32 %v1488, %v1576
        %1578 = vmatmul.bf16.gmra.mxu0 %v493
        %v1579 = vpop.f32.mrf.mxu0
        %v1580 = vadd.f32 %v1491, %v1579
        %v1581 = vpop.f32.mrf.mxu0
        %v1582 = vadd.f32 %v1493, %v1581
        %1583 = vmatmul.bf16.gmra.mxu0 %v495
        %v1584 = vpop.f32.mrf.mxu0
        %v1585 = vadd.f32 %v1496, %v1584
        %v1586 = vpop.f32.mrf.mxu0
        %v1587 = vadd.f32 %v1498, %v1586
        %1588 = vmatmul.bf16.gmra.mxu0 %v497
        %v1589 = vpop.f32.mrf.mxu0
        %v1590 = vadd.f32 %v1501, %v1589
        %v1591 = vpop.f32.mrf.mxu0
        %v1592 = vadd.f32 %v1503, %v1591
        %1593 = vdwg.mxu0
        %v1594 = vxor.u32 %v789, 2147483648
        %v1595 = vxor.u32 %v967, 2147483648
        %v1596 = vxor.u32 %v791, 2147483648
        %v1597 = vxor.u32 %v969, 2147483648
        %v1598 = vxor.u32 %v794, 2147483648
        %v1599 = vxor.u32 %v972, 2147483648
        %v1600 = vxor.u32 %v796, 2147483648
        %v1601 = vxor.u32 %v974, 2147483648
        %v1602 = vxor.u32 %v799, 2147483648
        %v1603 = vxor.u32 %v977, 2147483648
        %v1604 = vxor.u32 %v801, 2147483648
        %v1605 = vxor.u32 %v979, 2147483648
        %v1606 = vxor.u32 %v804, 2147483648
        %v1607 = vxor.u32 %v982, 2147483648
        %v1608 = vxor.u32 %v806, 2147483648
        %v1609 = vxor.u32 %v984, 2147483648
        %v1610 = vxor.u32 %v809, 2147483648
        %v1611 = vxor.u32 %v987, 2147483648
        %v1612 = vxor.u32 %v811, 2147483648
        %v1613 = vxor.u32 %v989, 2147483648
        %v1614 = vxor.u32 %v814, 2147483648
        %v1615 = vxor.u32 %v992, 2147483648
        %v1616 = vxor.u32 %v816, 2147483648
        %v1617 = vxor.u32 %v994, 2147483648
        %v1618 = vxor.u32 %v819, 2147483648
        %v1619 = vxor.u32 %v997, 2147483648
        %v1620 = vxor.u32 %v821, 2147483648
        %v1621 = vxor.u32 %v999, 2147483648
        %v1622 = vxor.u32 %v824, 2147483648
        %v1623 = vxor.u32 %v1002, 2147483648
        %v1624 = vxor.u32 %v826, 2147483648
        %v1625 = vxor.u32 %v1004, 2147483648
        %v1626 = vxor.u32 %v829, 2147483648
        %v1627 = vxor.u32 %v1007, 2147483648
        %v1628 = vxor.u32 %v831, 2147483648
        %v1629 = vxor.u32 %v1009, 2147483648
        %v1630 = vxor.u32 %v834, 2147483648
        %v1631 = vxor.u32 %v1012, 2147483648
        %v1632 = vxor.u32 %v836, 2147483648
        %v1633 = vxor.u32 %v1014, 2147483648
        %v1634 = vxor.u32 %v839, 2147483648
        %v1635 = vxor.u32 %v1017, 2147483648
        %v1636 = vxor.u32 %v841, 2147483648
        %v1637 = vxor.u32 %v1019, 2147483648
        %v1638 = vxor.u32 %v844, 2147483648
        %v1639 = vxor.u32 %v1022, 2147483648
        %v1640 = vxor.u32 %v846, 2147483648
        %v1641 = vxor.u32 %v1024, 2147483648
        %v1642 = vxor.u32 %v849, 2147483648
        %v1643 = vxor.u32 %v1027, 2147483648
        %v1644 = vxor.u32 %v851, 2147483648
        %v1645 = vxor.u32 %v1029, 2147483648
        %v1646 = vxor.u32 %v854, 2147483648
        %v1647 = vxor.u32 %v1032, 2147483648
        %v1648 = vxor.u32 %v856, 2147483648
        %v1649 = vxor.u32 %v1034, 2147483648
        %v1650 = vxor.u32 %v859, 2147483648
        %v1651 = vxor.u32 %v1037, 2147483648
        %v1652 = vxor.u32 %v861, 2147483648
        %v1653 = vxor.u32 %v1039, 2147483648
        %v1654 = vxor.u32 %v864, 2147483648
        %v1655 = vxor.u32 %v1042, 2147483648
        %v1656 = vxor.u32 %v866, 2147483648
        %v1657 = vxor.u32 %v1044, 2147483648
        %v1658 = vmul.f32 %v1594, 1.442695
        %v1659 = vpow.pop %v1658
        %v1660 = vmul.f32 %v1595, 1.442695
        %v1661 = vpow.pop %v1660
        %v1662 = vmul.f32 %v1596, 1.442695
        %v1663 = vpow.pop %v1662
        %v1664 = vmul.f32 %v1597, 1.442695
        %v1665 = vpow.pop %v1664
        %v1666 = vmul.f32 %v1598, 1.442695
        %v1667 = vpow.pop %v1666
        %v1668 = vmul.f32 %v1599, 1.442695
        %v1669 = vpow.pop %v1668
        %v1670 = vmul.f32 %v1600, 1.442695
        %v1671 = vpow.pop %v1670
        %v1672 = vmul.f32 %v1601, 1.442695
        %v1673 = vpow.pop %v1672
        %v1674 = vmul.f32 %v1602, 1.442695
        %v1675 = vpow.pop %v1674
        %v1676 = vmul.f32 %v1603, 1.442695
        %v1677 = vpow.pop %v1676
        %v1678 = vmul.f32 %v1604, 1.442695
        %v1679 = vpow.pop %v1678
        %v1680 = vmul.f32 %v1605, 1.442695
        %v1681 = vpow.pop %v1680
        %v1682 = vmul.f32 %v1606, 1.442695
        %v1683 = vpow.pop %v1682
        %v1684 = vmul.f32 %v1607, 1.442695
        %v1685 = vpow.pop %v1684
        %v1686 = vmul.f32 %v1608, 1.442695
        %v1687 = vpow.pop %v1686
        %v1688 = vmul.f32 %v1609, 1.442695
        %v1689 = vpow.pop %v1688
        %v1690 = vmul.f32 %v1610, 1.442695
        %v1691 = vpow.pop %v1690
        %v1692 = vmul.f32 %v1611, 1.442695
        %v1693 = vpow.pop %v1692
        %v1694 = vmul.f32 %v1612, 1.442695
        %v1695 = vpow.pop %v1694
        %v1696 = vmul.f32 %v1613, 1.442695
        %v1697 = vpow.pop %v1696
        %v1698 = vmul.f32 %v1614, 1.442695
        %v1699 = vpow.pop %v1698
        %v1700 = vmul.f32 %v1615, 1.442695
        %v1701 = vpow.pop %v1700
        %v1702 = vmul.f32 %v1616, 1.442695
        %v1703 = vpow.pop %v1702
        %v1704 = vmul.f32 %v1617, 1.442695
        %v1705 = vpow.pop %v1704
        %v1706 = vmul.f32 %v1618, 1.442695
        %v1707 = vpow.pop %v1706
        %v1708 = vmul.f32 %v1619, 1.442695
        %v1709 = vpow.pop %v1708
        %v1710 = vmul.f32 %v1620, 1.442695
        %v1711 = vpow.pop %v1710
        %v1712 = vmul.f32 %v1621, 1.442695
        %v1713 = vpow.pop %v1712
        %v1714 = vmul.f32 %v1622, 1.442695
        %v1715 = vpow.pop %v1714
        %v1716 = vmul.f32 %v1623, 1.442695
        %v1717 = vpow.pop %v1716
        %v1718 = vmul.f32 %v1624, 1.442695
        %v1719 = vpow.pop %v1718
        %v1720 = vmul.f32 %v1625, 1.442695
        %v1721 = vpow.pop %v1720
        %v1722 = vmul.f32 %v1626, 1.442695
        %v1723 = vpow.pop %v1722
        %v1724 = vmul.f32 %v1627, 1.442695
        %v1725 = vpow.pop %v1724
        %v1726 = vmul.f32 %v1628, 1.442695
        %v1727 = vpow.pop %v1726
        %v1728 = vmul.f32 %v1629, 1.442695
        %v1729 = vpow.pop %v1728
        %v1730 = vmul.f32 %v1630, 1.442695
        %v1731 = vpow.pop %v1730
        %v1732 = vmul.f32 %v1631, 1.442695
        %v1733 = vpow.pop %v1732
        %v1734 = vmul.f32 %v1632, 1.442695
        %v1735 = vpow.pop %v1734
        %v1736 = vmul.f32 %v1633, 1.442695
        %v1737 = vpow.pop %v1736
        %v1738 = vmul.f32 %v1634, 1.442695
        %v1739 = vpow.pop %v1738
        %v1740 = vmul.f32 %v1635, 1.442695
        %v1741 = vpow.pop %v1740
        %v1742 = vmul.f32 %v1636, 1.442695
        %v1743 = vpow.pop %v1742
        %v1744 = vmul.f32 %v1637, 1.442695
        %v1745 = vpow.pop %v1744
        %v1746 = vmul.f32 %v1638, 1.442695
        %v1747 = vpow.pop %v1746
        %v1748 = vmul.f32 %v1639, 1.442695
        %v1749 = vpow.pop %v1748
        %v1750 = vmul.f32 %v1640, 1.442695
        %v1751 = vpow.pop %v1750
        %v1752 = vmul.f32 %v1641, 1.442695
        %v1753 = vpow.pop %v1752
        %v1754 = vmul.f32 %v1642, 1.442695
        %v1755 = vpow.pop %v1754
        %v1756 = vmul.f32 %v1643, 1.442695
        %v1757 = vpow.pop %v1756
        %v1758 = vmul.f32 %v1644, 1.442695
        %v1759 = vpow.pop %v1758
        %v1760 = vmul.f32 %v1645, 1.442695
        %v1761 = vpow.pop %v1760
        %v1762 = vmul.f32 %v1646, 1.442695
        %v1763 = vpow.pop %v1762
        %v1764 = vmul.f32 %v1647, 1.442695
        %v1765 = vpow.pop %v1764
        %v1766 = vmul.f32 %v1648, 1.442695
        %v1767 = vpow.pop %v1766
        %v1768 = vmul.f32 %v1649, 1.442695
        %v1769 = vpow.pop %v1768
        %v1770 = vmul.f32 %v1650, 1.442695
        %v1771 = vpow.pop %v1770
        %v1772 = vmul.f32 %v1651, 1.442695
        %v1773 = vpow.pop %v1772
        %v1774 = vmul.f32 %v1652, 1.442695
        %v1775 = vpow.pop %v1774
        %v1776 = vmul.f32 %v1653, 1.442695
        %v1777 = vpow.pop %v1776
        %v1778 = vmul.f32 %v1654, 1.442695
        %v1779 = vpow.pop %v1778
        %v1780 = vmul.f32 %v1655, 1.442695
        %v1781 = vpow.pop %v1780
        %v1782 = vmul.f32 %v1656, 1.442695
        %v1783 = vpow.pop %v1782
        %v1784 = vmul.f32 %v1657, 1.442695
        %v1785 = vpow.pop %v1784
        %v1786 = vadd.f32 %v1659, 1.0
        %v1787 = vadd.f32 %v1661, 1.0
        %v1788 = vadd.f32 %v1663, 1.0
        %v1789 = vadd.f32 %v1665, 1.0
        %v1790 = vadd.f32 %v1667, 1.0
        %v1791 = vadd.f32 %v1669, 1.0
        %v1792 = vadd.f32 %v1671, 1.0
        %v1793 = vadd.f32 %v1673, 1.0
        %v1794 = vadd.f32 %v1675, 1.0
        %v1795 = vadd.f32 %v1677, 1.0
        %v1796 = vadd.f32 %v1679, 1.0
        %v1797 = vadd.f32 %v1681, 1.0
        %v1798 = vadd.f32 %v1683, 1.0
        %v1799 = vadd.f32 %v1685, 1.0
        %v1800 = vadd.f32 %v1687, 1.0
        %v1801 = vadd.f32 %v1689, 1.0
        %v1802 = vadd.f32 %v1691, 1.0
        %v1803 = vadd.f32 %v1693, 1.0
        %v1804 = vadd.f32 %v1695, 1.0
        %v1805 = vadd.f32 %v1697, 1.0
        %v1806 = vadd.f32 %v1699, 1.0
        %v1807 = vadd.f32 %v1701, 1.0
        %v1808 = vadd.f32 %v1703, 1.0
        %v1809 = vadd.f32 %v1705, 1.0
        %v1810 = vadd.f32 %v1707, 1.0
        %v1811 = vadd.f32 %v1709, 1.0
        %v1812 = vadd.f32 %v1711, 1.0
        %v1813 = vadd.f32 %v1713, 1.0
        %v1814 = vadd.f32 %v1715, 1.0
        %v1815 = vadd.f32 %v1717, 1.0
        %v1816 = vadd.f32 %v1719, 1.0
        %v1817 = vadd.f32 %v1721, 1.0
        %v1818 = vadd.f32 %v1723, 1.0
        %v1819 = vadd.f32 %v1725, 1.0
        %v1820 = vadd.f32 %v1727, 1.0
        %v1821 = vadd.f32 %v1729, 1.0
        %v1822 = vadd.f32 %v1731, 1.0
        %v1823 = vadd.f32 %v1733, 1.0
        %v1824 = vadd.f32 %v1735, 1.0
        %v1825 = vadd.f32 %v1737, 1.0
        %v1826 = vadd.f32 %v1739, 1.0
        %v1827 = vadd.f32 %v1741, 1.0
        %v1828 = vadd.f32 %v1743, 1.0
        %v1829 = vadd.f32 %v1745, 1.0
        %v1830 = vadd.f32 %v1747, 1.0
        %v1831 = vadd.f32 %v1749, 1.0
        %v1832 = vadd.f32 %v1751, 1.0
        %v1833 = vadd.f32 %v1753, 1.0
        %v1834 = vadd.f32 %v1755, 1.0
        %v1835 = vadd.f32 %v1757, 1.0
        %v1836 = vadd.f32 %v1759, 1.0
        %v1837 = vadd.f32 %v1761, 1.0
        %v1838 = vadd.f32 %v1763, 1.0
        %v1839 = vadd.f32 %v1765, 1.0
        %v1840 = vadd.f32 %v1767, 1.0
        %v1841 = vadd.f32 %v1769, 1.0
        %v1842 = vadd.f32 %v1771, 1.0
        %v1843 = vadd.f32 %v1773, 1.0
        %v1844 = vadd.f32 %v1775, 1.0
        %v1845 = vadd.f32 %v1777, 1.0
        %v1846 = vadd.f32 %v1779, 1.0
        %v1847 = vadd.f32 %v1781, 1.0
        %v1848 = vadd.f32 %v1783, 1.0
        %v1849 = vadd.f32 %v1785, 1.0
        %v1850 = vrcp.pop %v1786
        %v1851 = vmul.f32 %v1786, %v1850
        %v1852 = vsub.f32 1.0, %v1851
        %v1853 = vmul.f32 %v1850, %v1852
        %v1854 = vadd.f32 %v1850, %v1853
        %vm1855 = vweird.f32 %v1786
        %vm1856 = vweird.f32 %v1850
        %vm1857 = vmor %vm1855, %vm1856
        %v1858 = vsel %vm1857, %v1850, %v1854
        %v1859 = vand.u32 2147483647, %v1786
        %vm1860 = vcmp.eq.f32.partialorder %v1859, 8.507059e+37
        %v1861 = vand.u32 %v1786, 2147483648
        %v1862 = vor.u32 1.1754944e-38, %v1861
        %v1863 = vsel %vm1860, %v1862, %v1858
        %v1864 = vmul.f32 1.0, %v1863
        %v1865 = vrcp.pop %v1787
        %v1866 = vmul.f32 %v1787, %v1865
        %v1867 = vsub.f32 1.0, %v1866
        %v1868 = vmul.f32 %v1865, %v1867
        %v1869 = vadd.f32 %v1865, %v1868
        %vm1870 = vweird.f32 %v1787
        %vm1871 = vweird.f32 %v1865
        %vm1872 = vmor %vm1870, %vm1871
        %v1873 = vsel %vm1872, %v1865, %v1869
        %v1874 = vand.u32 2147483647, %v1787
        %vm1875 = vcmp.eq.f32.partialorder %v1874, 8.507059e+37
        %v1876 = vand.u32 %v1787, 2147483648
        %v1877 = vor.u32 1.1754944e-38, %v1876
        %v1878 = vsel %vm1875, %v1877, %v1873
        %v1879 = vmul.f32 1.0, %v1878
        %v1880 = vrcp.pop %v1788
        %v1881 = vmul.f32 %v1788, %v1880
        %v1882 = vsub.f32 1.0, %v1881
        %v1883 = vmul.f32 %v1880, %v1882
        %v1884 = vadd.f32 %v1880, %v1883
        %vm1885 = vweird.f32 %v1788
        %vm1886 = vweird.f32 %v1880
        %vm1887 = vmor %vm1885, %vm1886
        %v1888 = vsel %vm1887, %v1880, %v1884
        %v1889 = vand.u32 2147483647, %v1788
        %vm1890 = vcmp.eq.f32.partialorder %v1889, 8.507059e+37
        %v1891 = vand.u32 %v1788, 2147483648
        %v1892 = vor.u32 1.1754944e-38, %v1891
        %v1893 = vsel %vm1890, %v1892, %v1888
        %v1894 = vmul.f32 1.0, %v1893
        %v1895 = vrcp.pop %v1789
        %v1896 = vmul.f32 %v1789, %v1895
        %v1897 = vsub.f32 1.0, %v1896
        %v1898 = vmul.f32 %v1895, %v1897
        %v1899 = vadd.f32 %v1895, %v1898
        %vm1900 = vweird.f32 %v1789
        %vm1901 = vweird.f32 %v1895
        %vm1902 = vmor %vm1900, %vm1901
        %v1903 = vsel %vm1902, %v1895, %v1899
        %v1904 = vand.u32 2147483647, %v1789
        %vm1905 = vcmp.eq.f32.partialorder %v1904, 8.507059e+37
        %v1906 = vand.u32 %v1789, 2147483648
        %v1907 = vor.u32 1.1754944e-38, %v1906
        %v1908 = vsel %vm1905, %v1907, %v1903
        %v1909 = vmul.f32 1.0, %v1908
        %v1910 = vrcp.pop %v1790
        %v1911 = vmul.f32 %v1790, %v1910
        %v1912 = vsub.f32 1.0, %v1911
        %v1913 = vmul.f32 %v1910, %v1912
        %v1914 = vadd.f32 %v1910, %v1913
        %vm1915 = vweird.f32 %v1790
        %vm1916 = vweird.f32 %v1910
        %vm1917 = vmor %vm1915, %vm1916
        %v1918 = vsel %vm1917, %v1910, %v1914
        %v1919 = vand.u32 2147483647, %v1790
        %vm1920 = vcmp.eq.f32.partialorder %v1919, 8.507059e+37
        %v1921 = vand.u32 %v1790, 2147483648
        %v1922 = vor.u32 1.1754944e-38, %v1921
        %v1923 = vsel %vm1920, %v1922, %v1918
        %v1924 = vmul.f32 1.0, %v1923
        %v1925 = vrcp.pop %v1791
        %v1926 = vmul.f32 %v1791, %v1925
        %v1927 = vsub.f32 1.0, %v1926
        %v1928 = vmul.f32 %v1925, %v1927
        %v1929 = vadd.f32 %v1925, %v1928
        %vm1930 = vweird.f32 %v1791
        %vm1931 = vweird.f32 %v1925
        %vm1932 = vmor %vm1930, %vm1931
        %v1933 = vsel %vm1932, %v1925, %v1929
        %v1934 = vand.u32 2147483647, %v1791
        %vm1935 = vcmp.eq.f32.partialorder %v1934, 8.507059e+37
        %v1936 = vand.u32 %v1791, 2147483648
        %v1937 = vor.u32 1.1754944e-38, %v1936
        %v1938 = vsel %vm1935, %v1937, %v1933
        %v1939 = vmul.f32 1.0, %v1938
        %v1940 = vrcp.pop %v1792
        %v1941 = vmul.f32 %v1792, %v1940
        %v1942 = vsub.f32 1.0, %v1941
        %v1943 = vmul.f32 %v1940, %v1942
        %v1944 = vadd.f32 %v1940, %v1943
        %vm1945 = vweird.f32 %v1792
        %vm1946 = vweird.f32 %v1940
        %vm1947 = vmor %vm1945, %vm1946
        %v1948 = vsel %vm1947, %v1940, %v1944
        %v1949 = vand.u32 2147483647, %v1792
        %vm1950 = vcmp.eq.f32.partialorder %v1949, 8.507059e+37
        %v1951 = vand.u32 %v1792, 2147483648
        %v1952 = vor.u32 1.1754944e-38, %v1951
        %v1953 = vsel %vm1950, %v1952, %v1948
        %v1954 = vmul.f32 1.0, %v1953
        %v1955 = vrcp.pop %v1793
        %v1956 = vmul.f32 %v1793, %v1955
        %v1957 = vsub.f32 1.0, %v1956
        %v1958 = vmul.f32 %v1955, %v1957
        %v1959 = vadd.f32 %v1955, %v1958
        %vm1960 = vweird.f32 %v1793
        %vm1961 = vweird.f32 %v1955
        %vm1962 = vmor %vm1960, %vm1961
        %v1963 = vsel %vm1962, %v1955, %v1959
        %v1964 = vand.u32 2147483647, %v1793
        %vm1965 = vcmp.eq.f32.partialorder %v1964, 8.507059e+37
        %v1966 = vand.u32 %v1793, 2147483648
        %v1967 = vor.u32 1.1754944e-38, %v1966
        %v1968 = vsel %vm1965, %v1967, %v1963
        %v1969 = vmul.f32 1.0, %v1968
        %v1970 = vrcp.pop %v1794
        %v1971 = vmul.f32 %v1794, %v1970
        %v1972 = vsub.f32 1.0, %v1971
        %v1973 = vmul.f32 %v1970, %v1972
        %v1974 = vadd.f32 %v1970, %v1973
        %vm1975 = vweird.f32 %v1794
        %vm1976 = vweird.f32 %v1970
        %vm1977 = vmor %vm1975, %vm1976
        %v1978 = vsel %vm1977, %v1970, %v1974
        %v1979 = vand.u32 2147483647, %v1794
        %vm1980 = vcmp.eq.f32.partialorder %v1979, 8.507059e+37
        %v1981 = vand.u32 %v1794, 2147483648
        %v1982 = vor.u32 1.1754944e-38, %v1981
        %v1983 = vsel %vm1980, %v1982, %v1978
        %v1984 = vmul.f32 1.0, %v1983
        %v1985 = vrcp.pop %v1795
        %v1986 = vmul.f32 %v1795, %v1985
        %v1987 = vsub.f32 1.0, %v1986
        %v1988 = vmul.f32 %v1985, %v1987
        %v1989 = vadd.f32 %v1985, %v1988
        %vm1990 = vweird.f32 %v1795
        %vm1991 = vweird.f32 %v1985
        %vm1992 = vmor %vm1990, %vm1991
        %v1993 = vsel %vm1992, %v1985, %v1989
        %v1994 = vand.u32 2147483647, %v1795
        %vm1995 = vcmp.eq.f32.partialorder %v1994, 8.507059e+37
        %v1996 = vand.u32 %v1795, 2147483648
        %v1997 = vor.u32 1.1754944e-38, %v1996
        %v1998 = vsel %vm1995, %v1997, %v1993
        %v1999 = vmul.f32 1.0, %v1998
        %v2000 = vrcp.pop %v1796
        %v2001 = vmul.f32 %v1796, %v2000
        %v2002 = vsub.f32 1.0, %v2001
        %v2003 = vmul.f32 %v2000, %v2002
        %v2004 = vadd.f32 %v2000, %v2003
        %vm2005 = vweird.f32 %v1796
        %vm2006 = vweird.f32 %v2000
        %vm2007 = vmor %vm2005, %vm2006
        %v2008 = vsel %vm2007, %v2000, %v2004
        %v2009 = vand.u32 2147483647, %v1796
        %vm2010 = vcmp.eq.f32.partialorder %v2009, 8.507059e+37
        %v2011 = vand.u32 %v1796, 2147483648
        %v2012 = vor.u32 1.1754944e-38, %v2011
        %v2013 = vsel %vm2010, %v2012, %v2008
        %v2014 = vmul.f32 1.0, %v2013
        %v2015 = vrcp.pop %v1797
        %v2016 = vmul.f32 %v1797, %v2015
        %v2017 = vsub.f32 1.0, %v2016
        %v2018 = vmul.f32 %v2015, %v2017
        %v2019 = vadd.f32 %v2015, %v2018
        %vm2020 = vweird.f32 %v1797
        %vm2021 = vweird.f32 %v2015
        %vm2022 = vmor %vm2020, %vm2021
        %v2023 = vsel %vm2022, %v2015, %v2019
        %v2024 = vand.u32 2147483647, %v1797
        %vm2025 = vcmp.eq.f32.partialorder %v2024, 8.507059e+37
        %v2026 = vand.u32 %v1797, 2147483648
        %v2027 = vor.u32 1.1754944e-38, %v2026
        %v2028 = vsel %vm2025, %v2027, %v2023
        %v2029 = vmul.f32 1.0, %v2028
        %v2030 = vrcp.pop %v1798
        %v2031 = vmul.f32 %v1798, %v2030
        %v2032 = vsub.f32 1.0, %v2031
        %v2033 = vmul.f32 %v2030, %v2032
        %v2034 = vadd.f32 %v2030, %v2033
        %vm2035 = vweird.f32 %v1798
        %vm2036 = vweird.f32 %v2030
        %vm2037 = vmor %vm2035, %vm2036
        %v2038 = vsel %vm2037, %v2030, %v2034
        %v2039 = vand.u32 2147483647, %v1798
        %vm2040 = vcmp.eq.f32.partialorder %v2039, 8.507059e+37
        %v2041 = vand.u32 %v1798, 2147483648
        %v2042 = vor.u32 1.1754944e-38, %v2041
        %v2043 = vsel %vm2040, %v2042, %v2038
        %v2044 = vmul.f32 1.0, %v2043
        %v2045 = vrcp.pop %v1799
        %v2046 = vmul.f32 %v1799, %v2045
        %v2047 = vsub.f32 1.0, %v2046
        %v2048 = vmul.f32 %v2045, %v2047
        %v2049 = vadd.f32 %v2045, %v2048
        %vm2050 = vweird.f32 %v1799
        %vm2051 = vweird.f32 %v2045
        %vm2052 = vmor %vm2050, %vm2051
        %v2053 = vsel %vm2052, %v2045, %v2049
        %v2054 = vand.u32 2147483647, %v1799
        %vm2055 = vcmp.eq.f32.partialorder %v2054, 8.507059e+37
        %v2056 = vand.u32 %v1799, 2147483648
        %v2057 = vor.u32 1.1754944e-38, %v2056
        %v2058 = vsel %vm2055, %v2057, %v2053
        %v2059 = vmul.f32 1.0, %v2058
        %v2060 = vrcp.pop %v1800
        %v2061 = vmul.f32 %v1800, %v2060
        %v2062 = vsub.f32 1.0, %v2061
        %v2063 = vmul.f32 %v2060, %v2062
        %v2064 = vadd.f32 %v2060, %v2063
        %vm2065 = vweird.f32 %v1800
        %vm2066 = vweird.f32 %v2060
        %vm2067 = vmor %vm2065, %vm2066
        %v2068 = vsel %vm2067, %v2060, %v2064
        %v2069 = vand.u32 2147483647, %v1800
        %vm2070 = vcmp.eq.f32.partialorder %v2069, 8.507059e+37
        %v2071 = vand.u32 %v1800, 2147483648
        %v2072 = vor.u32 1.1754944e-38, %v2071
        %v2073 = vsel %vm2070, %v2072, %v2068
        %v2074 = vmul.f32 1.0, %v2073
        %v2075 = vrcp.pop %v1801
        %v2076 = vmul.f32 %v1801, %v2075
        %v2077 = vsub.f32 1.0, %v2076
        %v2078 = vmul.f32 %v2075, %v2077
        %v2079 = vadd.f32 %v2075, %v2078
        %vm2080 = vweird.f32 %v1801
        %vm2081 = vweird.f32 %v2075
        %vm2082 = vmor %vm2080, %vm2081
        %v2083 = vsel %vm2082, %v2075, %v2079
        %v2084 = vand.u32 2147483647, %v1801
        %vm2085 = vcmp.eq.f32.partialorder %v2084, 8.507059e+37
        %v2086 = vand.u32 %v1801, 2147483648
        %v2087 = vor.u32 1.1754944e-38, %v2086
        %v2088 = vsel %vm2085, %v2087, %v2083
        %v2089 = vmul.f32 1.0, %v2088
        %v2090 = vrcp.pop %v1802
        %v2091 = vmul.f32 %v1802, %v2090
        %v2092 = vsub.f32 1.0, %v2091
        %v2093 = vmul.f32 %v2090, %v2092
        %v2094 = vadd.f32 %v2090, %v2093
        %vm2095 = vweird.f32 %v1802
        %vm2096 = vweird.f32 %v2090
        %vm2097 = vmor %vm2095, %vm2096
        %v2098 = vsel %vm2097, %v2090, %v2094
        %v2099 = vand.u32 2147483647, %v1802
        %vm2100 = vcmp.eq.f32.partialorder %v2099, 8.507059e+37
        %v2101 = vand.u32 %v1802, 2147483648
        %v2102 = vor.u32 1.1754944e-38, %v2101
        %v2103 = vsel %vm2100, %v2102, %v2098
        %v2104 = vmul.f32 1.0, %v2103
        %v2105 = vrcp.pop %v1803
        %v2106 = vmul.f32 %v1803, %v2105
        %v2107 = vsub.f32 1.0, %v2106
        %v2108 = vmul.f32 %v2105, %v2107
        %v2109 = vadd.f32 %v2105, %v2108
        %vm2110 = vweird.f32 %v1803
        %vm2111 = vweird.f32 %v2105
        %vm2112 = vmor %vm2110, %vm2111
        %v2113 = vsel %vm2112, %v2105, %v2109
        %v2114 = vand.u32 2147483647, %v1803
        %vm2115 = vcmp.eq.f32.partialorder %v2114, 8.507059e+37
        %v2116 = vand.u32 %v1803, 2147483648
        %v2117 = vor.u32 1.1754944e-38, %v2116
        %v2118 = vsel %vm2115, %v2117, %v2113
        %v2119 = vmul.f32 1.0, %v2118
        %v2120 = vrcp.pop %v1804
        %v2121 = vmul.f32 %v1804, %v2120
        %v2122 = vsub.f32 1.0, %v2121
        %v2123 = vmul.f32 %v2120, %v2122
        %v2124 = vadd.f32 %v2120, %v2123
        %vm2125 = vweird.f32 %v1804
        %vm2126 = vweird.f32 %v2120
        %vm2127 = vmor %vm2125, %vm2126
        %v2128 = vsel %vm2127, %v2120, %v2124
        %v2129 = vand.u32 2147483647, %v1804
        %vm2130 = vcmp.eq.f32.partialorder %v2129, 8.507059e+37
        %v2131 = vand.u32 %v1804, 2147483648
        %v2132 = vor.u32 1.1754944e-38, %v2131
        %v2133 = vsel %vm2130, %v2132, %v2128
        %v2134 = vmul.f32 1.0, %v2133
        %v2135 = vrcp.pop %v1805
        %v2136 = vmul.f32 %v1805, %v2135
        %v2137 = vsub.f32 1.0, %v2136
        %v2138 = vmul.f32 %v2135, %v2137
        %v2139 = vadd.f32 %v2135, %v2138
        %vm2140 = vweird.f32 %v1805
        %vm2141 = vweird.f32 %v2135
        %vm2142 = vmor %vm2140, %vm2141
        %v2143 = vsel %vm2142, %v2135, %v2139
        %v2144 = vand.u32 2147483647, %v1805
        %vm2145 = vcmp.eq.f32.partialorder %v2144, 8.507059e+37
        %v2146 = vand.u32 %v1805, 2147483648
        %v2147 = vor.u32 1.1754944e-38, %v2146
        %v2148 = vsel %vm2145, %v2147, %v2143
        %v2149 = vmul.f32 1.0, %v2148
        %v2150 = vrcp.pop %v1806
        %v2151 = vmul.f32 %v1806, %v2150
        %v2152 = vsub.f32 1.0, %v2151
        %v2153 = vmul.f32 %v2150, %v2152
        %v2154 = vadd.f32 %v2150, %v2153
        %vm2155 = vweird.f32 %v1806
        %vm2156 = vweird.f32 %v2150
        %vm2157 = vmor %vm2155, %vm2156
        %v2158 = vsel %vm2157, %v2150, %v2154
        %v2159 = vand.u32 2147483647, %v1806
        %vm2160 = vcmp.eq.f32.partialorder %v2159, 8.507059e+37
        %v2161 = vand.u32 %v1806, 2147483648
        %v2162 = vor.u32 1.1754944e-38, %v2161
        %v2163 = vsel %vm2160, %v2162, %v2158
        %v2164 = vmul.f32 1.0, %v2163
        %v2165 = vrcp.pop %v1807
        %v2166 = vmul.f32 %v1807, %v2165
        %v2167 = vsub.f32 1.0, %v2166
        %v2168 = vmul.f32 %v2165, %v2167
        %v2169 = vadd.f32 %v2165, %v2168
        %vm2170 = vweird.f32 %v1807
        %vm2171 = vweird.f32 %v2165
        %vm2172 = vmor %vm2170, %vm2171
        %v2173 = vsel %vm2172, %v2165, %v2169
        %v2174 = vand.u32 2147483647, %v1807
        %vm2175 = vcmp.eq.f32.partialorder %v2174, 8.507059e+37
        %v2176 = vand.u32 %v1807, 2147483648
        %v2177 = vor.u32 1.1754944e-38, %v2176
        %v2178 = vsel %vm2175, %v2177, %v2173
        %v2179 = vmul.f32 1.0, %v2178
        %v2180 = vrcp.pop %v1808
        %v2181 = vmul.f32 %v1808, %v2180
        %v2182 = vsub.f32 1.0, %v2181
        %v2183 = vmul.f32 %v2180, %v2182
        %v2184 = vadd.f32 %v2180, %v2183
        %vm2185 = vweird.f32 %v1808
        %vm2186 = vweird.f32 %v2180
        %vm2187 = vmor %vm2185, %vm2186
        %v2188 = vsel %vm2187, %v2180, %v2184
        %v2189 = vand.u32 2147483647, %v1808
        %vm2190 = vcmp.eq.f32.partialorder %v2189, 8.507059e+37
        %v2191 = vand.u32 %v1808, 2147483648
        %v2192 = vor.u32 1.1754944e-38, %v2191
        %v2193 = vsel %vm2190, %v2192, %v2188
        %v2194 = vmul.f32 1.0, %v2193
        %v2195 = vrcp.pop %v1809
        %v2196 = vmul.f32 %v1809, %v2195
        %v2197 = vsub.f32 1.0, %v2196
        %v2198 = vmul.f32 %v2195, %v2197
        %v2199 = vadd.f32 %v2195, %v2198
        %vm2200 = vweird.f32 %v1809
        %vm2201 = vweird.f32 %v2195
        %vm2202 = vmor %vm2200, %vm2201
        %v2203 = vsel %vm2202, %v2195, %v2199
        %v2204 = vand.u32 2147483647, %v1809
        %vm2205 = vcmp.eq.f32.partialorder %v2204, 8.507059e+37
        %v2206 = vand.u32 %v1809, 2147483648
        %v2207 = vor.u32 1.1754944e-38, %v2206
        %v2208 = vsel %vm2205, %v2207, %v2203
        %v2209 = vmul.f32 1.0, %v2208
        %v2210 = vrcp.pop %v1810
        %v2211 = vmul.f32 %v1810, %v2210
        %v2212 = vsub.f32 1.0, %v2211
        %v2213 = vmul.f32 %v2210, %v2212
        %v2214 = vadd.f32 %v2210, %v2213
        %vm2215 = vweird.f32 %v1810
        %vm2216 = vweird.f32 %v2210
        %vm2217 = vmor %vm2215, %vm2216
        %v2218 = vsel %vm2217, %v2210, %v2214
        %v2219 = vand.u32 2147483647, %v1810
        %vm2220 = vcmp.eq.f32.partialorder %v2219, 8.507059e+37
        %v2221 = vand.u32 %v1810, 2147483648
        %v2222 = vor.u32 1.1754944e-38, %v2221
        %v2223 = vsel %vm2220, %v2222, %v2218
        %v2224 = vmul.f32 1.0, %v2223
        %v2225 = vrcp.pop %v1811
        %v2226 = vmul.f32 %v1811, %v2225
        %v2227 = vsub.f32 1.0, %v2226
        %v2228 = vmul.f32 %v2225, %v2227
        %v2229 = vadd.f32 %v2225, %v2228
        %vm2230 = vweird.f32 %v1811
        %vm2231 = vweird.f32 %v2225
        %vm2232 = vmor %vm2230, %vm2231
        %v2233 = vsel %vm2232, %v2225, %v2229
        %v2234 = vand.u32 2147483647, %v1811
        %vm2235 = vcmp.eq.f32.partialorder %v2234, 8.507059e+37
        %v2236 = vand.u32 %v1811, 2147483648
        %v2237 = vor.u32 1.1754944e-38, %v2236
        %v2238 = vsel %vm2235, %v2237, %v2233
        %v2239 = vmul.f32 1.0, %v2238
        %v2240 = vrcp.pop %v1812
        %v2241 = vmul.f32 %v1812, %v2240
        %v2242 = vsub.f32 1.0, %v2241
        %v2243 = vmul.f32 %v2240, %v2242
        %v2244 = vadd.f32 %v2240, %v2243
        %vm2245 = vweird.f32 %v1812
        %vm2246 = vweird.f32 %v2240
        %vm2247 = vmor %vm2245, %vm2246
        %v2248 = vsel %vm2247, %v2240, %v2244
        %v2249 = vand.u32 2147483647, %v1812
        %vm2250 = vcmp.eq.f32.partialorder %v2249, 8.507059e+37
        %v2251 = vand.u32 %v1812, 2147483648
        %v2252 = vor.u32 1.1754944e-38, %v2251
        %v2253 = vsel %vm2250, %v2252, %v2248
        %v2254 = vmul.f32 1.0, %v2253
        %v2255 = vrcp.pop %v1813
        %v2256 = vmul.f32 %v1813, %v2255
        %v2257 = vsub.f32 1.0, %v2256
        %v2258 = vmul.f32 %v2255, %v2257
        %v2259 = vadd.f32 %v2255, %v2258
        %vm2260 = vweird.f32 %v1813
        %vm2261 = vweird.f32 %v2255
        %vm2262 = vmor %vm2260, %vm2261
        %v2263 = vsel %vm2262, %v2255, %v2259
        %v2264 = vand.u32 2147483647, %v1813
        %vm2265 = vcmp.eq.f32.partialorder %v2264, 8.507059e+37
        %v2266 = vand.u32 %v1813, 2147483648
        %v2267 = vor.u32 1.1754944e-38, %v2266
        %v2268 = vsel %vm2265, %v2267, %v2263
        %v2269 = vmul.f32 1.0, %v2268
        %v2270 = vrcp.pop %v1814
        %v2271 = vmul.f32 %v1814, %v2270
        %v2272 = vsub.f32 1.0, %v2271
        %v2273 = vmul.f32 %v2270, %v2272
        %v2274 = vadd.f32 %v2270, %v2273
        %vm2275 = vweird.f32 %v1814
        %vm2276 = vweird.f32 %v2270
        %vm2277 = vmor %vm2275, %vm2276
        %v2278 = vsel %vm2277, %v2270, %v2274
        %v2279 = vand.u32 2147483647, %v1814
        %vm2280 = vcmp.eq.f32.partialorder %v2279, 8.507059e+37
        %v2281 = vand.u32 %v1814, 2147483648
        %v2282 = vor.u32 1.1754944e-38, %v2281
        %v2283 = vsel %vm2280, %v2282, %v2278
        %v2284 = vmul.f32 1.0, %v2283
        %v2285 = vrcp.pop %v1815
        %v2286 = vmul.f32 %v1815, %v2285
        %v2287 = vsub.f32 1.0, %v2286
        %v2288 = vmul.f32 %v2285, %v2287
        %v2289 = vadd.f32 %v2285, %v2288
        %vm2290 = vweird.f32 %v1815
        %vm2291 = vweird.f32 %v2285
        %vm2292 = vmor %vm2290, %vm2291
        %v2293 = vsel %vm2292, %v2285, %v2289
        %v2294 = vand.u32 2147483647, %v1815
        %vm2295 = vcmp.eq.f32.partialorder %v2294, 8.507059e+37
        %v2296 = vand.u32 %v1815, 2147483648
        %v2297 = vor.u32 1.1754944e-38, %v2296
        %v2298 = vsel %vm2295, %v2297, %v2293
        %v2299 = vmul.f32 1.0, %v2298
        %v2300 = vrcp.pop %v1816
        %v2301 = vmul.f32 %v1816, %v2300
        %v2302 = vsub.f32 1.0, %v2301
        %v2303 = vmul.f32 %v2300, %v2302
        %v2304 = vadd.f32 %v2300, %v2303
        %vm2305 = vweird.f32 %v1816
        %vm2306 = vweird.f32 %v2300
        %vm2307 = vmor %vm2305, %vm2306
        %v2308 = vsel %vm2307, %v2300, %v2304
        %v2309 = vand.u32 2147483647, %v1816
        %vm2310 = vcmp.eq.f32.partialorder %v2309, 8.507059e+37
        %v2311 = vand.u32 %v1816, 2147483648
        %v2312 = vor.u32 1.1754944e-38, %v2311
        %v2313 = vsel %vm2310, %v2312, %v2308
        %v2314 = vmul.f32 1.0, %v2313
        %v2315 = vrcp.pop %v1817
        %v2316 = vmul.f32 %v1817, %v2315
        %v2317 = vsub.f32 1.0, %v2316
        %v2318 = vmul.f32 %v2315, %v2317
        %v2319 = vadd.f32 %v2315, %v2318
        %vm2320 = vweird.f32 %v1817
        %vm2321 = vweird.f32 %v2315
        %vm2322 = vmor %vm2320, %vm2321
        %v2323 = vsel %vm2322, %v2315, %v2319
        %v2324 = vand.u32 2147483647, %v1817
        %vm2325 = vcmp.eq.f32.partialorder %v2324, 8.507059e+37
        %v2326 = vand.u32 %v1817, 2147483648
        %v2327 = vor.u32 1.1754944e-38, %v2326
        %v2328 = vsel %vm2325, %v2327, %v2323
        %v2329 = vmul.f32 1.0, %v2328
        %v2330 = vrcp.pop %v1818
        %v2331 = vmul.f32 %v1818, %v2330
        %v2332 = vsub.f32 1.0, %v2331
        %v2333 = vmul.f32 %v2330, %v2332
        %v2334 = vadd.f32 %v2330, %v2333
        %vm2335 = vweird.f32 %v1818
        %vm2336 = vweird.f32 %v2330
        %vm2337 = vmor %vm2335, %vm2336
        %v2338 = vsel %vm2337, %v2330, %v2334
        %v2339 = vand.u32 2147483647, %v1818
        %vm2340 = vcmp.eq.f32.partialorder %v2339, 8.507059e+37
        %v2341 = vand.u32 %v1818, 2147483648
        %v2342 = vor.u32 1.1754944e-38, %v2341
        %v2343 = vsel %vm2340, %v2342, %v2338
        %v2344 = vmul.f32 1.0, %v2343
        %v2345 = vrcp.pop %v1819
        %v2346 = vmul.f32 %v1819, %v2345
        %v2347 = vsub.f32 1.0, %v2346
        %v2348 = vmul.f32 %v2345, %v2347
        %v2349 = vadd.f32 %v2345, %v2348
        %vm2350 = vweird.f32 %v1819
        %vm2351 = vweird.f32 %v2345
        %vm2352 = vmor %vm2350, %vm2351
        %v2353 = vsel %vm2352, %v2345, %v2349
        %v2354 = vand.u32 2147483647, %v1819
        %vm2355 = vcmp.eq.f32.partialorder %v2354, 8.507059e+37
        %v2356 = vand.u32 %v1819, 2147483648
        %v2357 = vor.u32 1.1754944e-38, %v2356
        %v2358 = vsel %vm2355, %v2357, %v2353
        %v2359 = vmul.f32 1.0, %v2358
        %v2360 = vrcp.pop %v1820
        %v2361 = vmul.f32 %v1820, %v2360
        %v2362 = vsub.f32 1.0, %v2361
        %v2363 = vmul.f32 %v2360, %v2362
        %v2364 = vadd.f32 %v2360, %v2363
        %vm2365 = vweird.f32 %v1820
        %vm2366 = vweird.f32 %v2360
        %vm2367 = vmor %vm2365, %vm2366
        %v2368 = vsel %vm2367, %v2360, %v2364
        %v2369 = vand.u32 2147483647, %v1820
        %vm2370 = vcmp.eq.f32.partialorder %v2369, 8.507059e+37
        %v2371 = vand.u32 %v1820, 2147483648
        %v2372 = vor.u32 1.1754944e-38, %v2371
        %v2373 = vsel %vm2370, %v2372, %v2368
        %v2374 = vmul.f32 1.0, %v2373
        %v2375 = vrcp.pop %v1821
        %v2376 = vmul.f32 %v1821, %v2375
        %v2377 = vsub.f32 1.0, %v2376
        %v2378 = vmul.f32 %v2375, %v2377
        %v2379 = vadd.f32 %v2375, %v2378
        %vm2380 = vweird.f32 %v1821
        %vm2381 = vweird.f32 %v2375
        %vm2382 = vmor %vm2380, %vm2381
        %v2383 = vsel %vm2382, %v2375, %v2379
        %v2384 = vand.u32 2147483647, %v1821
        %vm2385 = vcmp.eq.f32.partialorder %v2384, 8.507059e+37
        %v2386 = vand.u32 %v1821, 2147483648
        %v2387 = vor.u32 1.1754944e-38, %v2386
        %v2388 = vsel %vm2385, %v2387, %v2383
        %v2389 = vmul.f32 1.0, %v2388
        %v2390 = vrcp.pop %v1822
        %v2391 = vmul.f32 %v1822, %v2390
        %v2392 = vsub.f32 1.0, %v2391
        %v2393 = vmul.f32 %v2390, %v2392
        %v2394 = vadd.f32 %v2390, %v2393
        %vm2395 = vweird.f32 %v1822
        %vm2396 = vweird.f32 %v2390
        %vm2397 = vmor %vm2395, %vm2396
        %v2398 = vsel %vm2397, %v2390, %v2394
        %v2399 = vand.u32 2147483647, %v1822
        %vm2400 = vcmp.eq.f32.partialorder %v2399, 8.507059e+37
        %v2401 = vand.u32 %v1822, 2147483648
        %v2402 = vor.u32 1.1754944e-38, %v2401
        %v2403 = vsel %vm2400, %v2402, %v2398
        %v2404 = vmul.f32 1.0, %v2403
        %v2405 = vrcp.pop %v1823
        %v2406 = vmul.f32 %v1823, %v2405
        %v2407 = vsub.f32 1.0, %v2406
        %v2408 = vmul.f32 %v2405, %v2407
        %v2409 = vadd.f32 %v2405, %v2408
        %vm2410 = vweird.f32 %v1823
        %vm2411 = vweird.f32 %v2405
        %vm2412 = vmor %vm2410, %vm2411
        %v2413 = vsel %vm2412, %v2405, %v2409
        %v2414 = vand.u32 2147483647, %v1823
        %vm2415 = vcmp.eq.f32.partialorder %v2414, 8.507059e+37
        %v2416 = vand.u32 %v1823, 2147483648
        %v2417 = vor.u32 1.1754944e-38, %v2416
        %v2418 = vsel %vm2415, %v2417, %v2413
        %v2419 = vmul.f32 1.0, %v2418
        %v2420 = vrcp.pop %v1824
        %v2421 = vmul.f32 %v1824, %v2420
        %v2422 = vsub.f32 1.0, %v2421
        %v2423 = vmul.f32 %v2420, %v2422
        %v2424 = vadd.f32 %v2420, %v2423
        %vm2425 = vweird.f32 %v1824
        %vm2426 = vweird.f32 %v2420
        %vm2427 = vmor %vm2425, %vm2426
        %v2428 = vsel %vm2427, %v2420, %v2424
        %v2429 = vand.u32 2147483647, %v1824
        %vm2430 = vcmp.eq.f32.partialorder %v2429, 8.507059e+37
        %v2431 = vand.u32 %v1824, 2147483648
        %v2432 = vor.u32 1.1754944e-38, %v2431
        %v2433 = vsel %vm2430, %v2432, %v2428
        %v2434 = vmul.f32 1.0, %v2433
        %v2435 = vrcp.pop %v1825
        %v2436 = vmul.f32 %v1825, %v2435
        %v2437 = vsub.f32 1.0, %v2436
        %v2438 = vmul.f32 %v2435, %v2437
        %v2439 = vadd.f32 %v2435, %v2438
        %vm2440 = vweird.f32 %v1825
        %vm2441 = vweird.f32 %v2435
        %vm2442 = vmor %vm2440, %vm2441
        %v2443 = vsel %vm2442, %v2435, %v2439
        %v2444 = vand.u32 2147483647, %v1825
        %vm2445 = vcmp.eq.f32.partialorder %v2444, 8.507059e+37
        %v2446 = vand.u32 %v1825, 2147483648
        %v2447 = vor.u32 1.1754944e-38, %v2446
        %v2448 = vsel %vm2445, %v2447, %v2443
        %v2449 = vmul.f32 1.0, %v2448
        %v2450 = vrcp.pop %v1826
        %v2451 = vmul.f32 %v1826, %v2450
        %v2452 = vsub.f32 1.0, %v2451
        %v2453 = vmul.f32 %v2450, %v2452
        %v2454 = vadd.f32 %v2450, %v2453
        %vm2455 = vweird.f32 %v1826
        %vm2456 = vweird.f32 %v2450
        %vm2457 = vmor %vm2455, %vm2456
        %v2458 = vsel %vm2457, %v2450, %v2454
        %v2459 = vand.u32 2147483647, %v1826
        %vm2460 = vcmp.eq.f32.partialorder %v2459, 8.507059e+37
        %v2461 = vand.u32 %v1826, 2147483648
        %v2462 = vor.u32 1.1754944e-38, %v2461
        %v2463 = vsel %vm2460, %v2462, %v2458
        %v2464 = vmul.f32 1.0, %v2463
        %v2465 = vrcp.pop %v1827
        %v2466 = vmul.f32 %v1827, %v2465
        %v2467 = vsub.f32 1.0, %v2466
        %v2468 = vmul.f32 %v2465, %v2467
        %v2469 = vadd.f32 %v2465, %v2468
        %vm2470 = vweird.f32 %v1827
        %vm2471 = vweird.f32 %v2465
        %vm2472 = vmor %vm2470, %vm2471
        %v2473 = vsel %vm2472, %v2465, %v2469
        %v2474 = vand.u32 2147483647, %v1827
        %vm2475 = vcmp.eq.f32.partialorder %v2474, 8.507059e+37
        %v2476 = vand.u32 %v1827, 2147483648
        %v2477 = vor.u32 1.1754944e-38, %v2476
        %v2478 = vsel %vm2475, %v2477, %v2473
        %v2479 = vmul.f32 1.0, %v2478
        %v2480 = vrcp.pop %v1828
        %v2481 = vmul.f32 %v1828, %v2480
        %v2482 = vsub.f32 1.0, %v2481
        %v2483 = vmul.f32 %v2480, %v2482
        %v2484 = vadd.f32 %v2480, %v2483
        %vm2485 = vweird.f32 %v1828
        %vm2486 = vweird.f32 %v2480
        %vm2487 = vmor %vm2485, %vm2486
        %v2488 = vsel %vm2487, %v2480, %v2484
        %v2489 = vand.u32 2147483647, %v1828
        %vm2490 = vcmp.eq.f32.partialorder %v2489, 8.507059e+37
        %v2491 = vand.u32 %v1828, 2147483648
        %v2492 = vor.u32 1.1754944e-38, %v2491
        %v2493 = vsel %vm2490, %v2492, %v2488
        %v2494 = vmul.f32 1.0, %v2493
        %v2495 = vrcp.pop %v1829
        %v2496 = vmul.f32 %v1829, %v2495
        %v2497 = vsub.f32 1.0, %v2496
        %v2498 = vmul.f32 %v2495, %v2497
        %v2499 = vadd.f32 %v2495, %v2498
        %vm2500 = vweird.f32 %v1829
        %vm2501 = vweird.f32 %v2495
        %vm2502 = vmor %vm2500, %vm2501
        %v2503 = vsel %vm2502, %v2495, %v2499
        %v2504 = vand.u32 2147483647, %v1829
        %vm2505 = vcmp.eq.f32.partialorder %v2504, 8.507059e+37
        %v2506 = vand.u32 %v1829, 2147483648
        %v2507 = vor.u32 1.1754944e-38, %v2506
        %v2508 = vsel %vm2505, %v2507, %v2503
        %v2509 = vmul.f32 1.0, %v2508
        %v2510 = vrcp.pop %v1830
        %v2511 = vmul.f32 %v1830, %v2510
        %v2512 = vsub.f32 1.0, %v2511
        %v2513 = vmul.f32 %v2510, %v2512
        %v2514 = vadd.f32 %v2510, %v2513
        %vm2515 = vweird.f32 %v1830
        %vm2516 = vweird.f32 %v2510
        %vm2517 = vmor %vm2515, %vm2516
        %v2518 = vsel %vm2517, %v2510, %v2514
        %v2519 = vand.u32 2147483647, %v1830
        %vm2520 = vcmp.eq.f32.partialorder %v2519, 8.507059e+37
        %v2521 = vand.u32 %v1830, 2147483648
        %v2522 = vor.u32 1.1754944e-38, %v2521
        %v2523 = vsel %vm2520, %v2522, %v2518
        %v2524 = vmul.f32 1.0, %v2523
        %v2525 = vrcp.pop %v1831
        %v2526 = vmul.f32 %v1831, %v2525
        %v2527 = vsub.f32 1.0, %v2526
        %v2528 = vmul.f32 %v2525, %v2527
        %v2529 = vadd.f32 %v2525, %v2528
        %vm2530 = vweird.f32 %v1831
        %vm2531 = vweird.f32 %v2525
        %vm2532 = vmor %vm2530, %vm2531
        %v2533 = vsel %vm2532, %v2525, %v2529
        %v2534 = vand.u32 2147483647, %v1831
        %vm2535 = vcmp.eq.f32.partialorder %v2534, 8.507059e+37
        %v2536 = vand.u32 %v1831, 2147483648
        %v2537 = vor.u32 1.1754944e-38, %v2536
        %v2538 = vsel %vm2535, %v2537, %v2533
        %v2539 = vmul.f32 1.0, %v2538
        %v2540 = vrcp.pop %v1832
        %v2541 = vmul.f32 %v1832, %v2540
        %v2542 = vsub.f32 1.0, %v2541
        %v2543 = vmul.f32 %v2540, %v2542
        %v2544 = vadd.f32 %v2540, %v2543
        %vm2545 = vweird.f32 %v1832
        %vm2546 = vweird.f32 %v2540
        %vm2547 = vmor %vm2545, %vm2546
        %v2548 = vsel %vm2547, %v2540, %v2544
        %v2549 = vand.u32 2147483647, %v1832
        %vm2550 = vcmp.eq.f32.partialorder %v2549, 8.507059e+37
        %v2551 = vand.u32 %v1832, 2147483648
        %v2552 = vor.u32 1.1754944e-38, %v2551
        %v2553 = vsel %vm2550, %v2552, %v2548
        %v2554 = vmul.f32 1.0, %v2553
        %v2555 = vrcp.pop %v1833
        %v2556 = vmul.f32 %v1833, %v2555
        %v2557 = vsub.f32 1.0, %v2556
        %v2558 = vmul.f32 %v2555, %v2557
        %v2559 = vadd.f32 %v2555, %v2558
        %vm2560 = vweird.f32 %v1833
        %vm2561 = vweird.f32 %v2555
        %vm2562 = vmor %vm2560, %vm2561
        %v2563 = vsel %vm2562, %v2555, %v2559
        %v2564 = vand.u32 2147483647, %v1833
        %vm2565 = vcmp.eq.f32.partialorder %v2564, 8.507059e+37
        %v2566 = vand.u32 %v1833, 2147483648
        %v2567 = vor.u32 1.1754944e-38, %v2566
        %v2568 = vsel %vm2565, %v2567, %v2563
        %v2569 = vmul.f32 1.0, %v2568
        %v2570 = vrcp.pop %v1834
        %v2571 = vmul.f32 %v1834, %v2570
        %v2572 = vsub.f32 1.0, %v2571
        %v2573 = vmul.f32 %v2570, %v2572
        %v2574 = vadd.f32 %v2570, %v2573
        %vm2575 = vweird.f32 %v1834
        %vm2576 = vweird.f32 %v2570
        %vm2577 = vmor %vm2575, %vm2576
        %v2578 = vsel %vm2577, %v2570, %v2574
        %v2579 = vand.u32 2147483647, %v1834
        %vm2580 = vcmp.eq.f32.partialorder %v2579, 8.507059e+37
        %v2581 = vand.u32 %v1834, 2147483648
        %v2582 = vor.u32 1.1754944e-38, %v2581
        %v2583 = vsel %vm2580, %v2582, %v2578
        %v2584 = vmul.f32 1.0, %v2583
        %v2585 = vrcp.pop %v1835
        %v2586 = vmul.f32 %v1835, %v2585
        %v2587 = vsub.f32 1.0, %v2586
        %v2588 = vmul.f32 %v2585, %v2587
        %v2589 = vadd.f32 %v2585, %v2588
        %vm2590 = vweird.f32 %v1835
        %vm2591 = vweird.f32 %v2585
        %vm2592 = vmor %vm2590, %vm2591
        %v2593 = vsel %vm2592, %v2585, %v2589
        %v2594 = vand.u32 2147483647, %v1835
        %vm2595 = vcmp.eq.f32.partialorder %v2594, 8.507059e+37
        %v2596 = vand.u32 %v1835, 2147483648
        %v2597 = vor.u32 1.1754944e-38, %v2596
        %v2598 = vsel %vm2595, %v2597, %v2593
        %v2599 = vmul.f32 1.0, %v2598
        %v2600 = vrcp.pop %v1836
        %v2601 = vmul.f32 %v1836, %v2600
        %v2602 = vsub.f32 1.0, %v2601
        %v2603 = vmul.f32 %v2600, %v2602
        %v2604 = vadd.f32 %v2600, %v2603
        %vm2605 = vweird.f32 %v1836
        %vm2606 = vweird.f32 %v2600
        %vm2607 = vmor %vm2605, %vm2606
        %v2608 = vsel %vm2607, %v2600, %v2604
        %v2609 = vand.u32 2147483647, %v1836
        %vm2610 = vcmp.eq.f32.partialorder %v2609, 8.507059e+37
        %v2611 = vand.u32 %v1836, 2147483648
        %v2612 = vor.u32 1.1754944e-38, %v2611
        %v2613 = vsel %vm2610, %v2612, %v2608
        %v2614 = vmul.f32 1.0, %v2613
        %v2615 = vrcp.pop %v1837
        %v2616 = vmul.f32 %v1837, %v2615
        %v2617 = vsub.f32 1.0, %v2616
        %v2618 = vmul.f32 %v2615, %v2617
        %v2619 = vadd.f32 %v2615, %v2618
        %vm2620 = vweird.f32 %v1837
        %vm2621 = vweird.f32 %v2615
        %vm2622 = vmor %vm2620, %vm2621
        %v2623 = vsel %vm2622, %v2615, %v2619
        %v2624 = vand.u32 2147483647, %v1837
        %vm2625 = vcmp.eq.f32.partialorder %v2624, 8.507059e+37
        %v2626 = vand.u32 %v1837, 2147483648
        %v2627 = vor.u32 1.1754944e-38, %v2626
        %v2628 = vsel %vm2625, %v2627, %v2623
        %v2629 = vmul.f32 1.0, %v2628
        %v2630 = vrcp.pop %v1838
        %v2631 = vmul.f32 %v1838, %v2630
        %v2632 = vsub.f32 1.0, %v2631
        %v2633 = vmul.f32 %v2630, %v2632
        %v2634 = vadd.f32 %v2630, %v2633
        %vm2635 = vweird.f32 %v1838
        %vm2636 = vweird.f32 %v2630
        %vm2637 = vmor %vm2635, %vm2636
        %v2638 = vsel %vm2637, %v2630, %v2634
        %v2639 = vand.u32 2147483647, %v1838
        %vm2640 = vcmp.eq.f32.partialorder %v2639, 8.507059e+37
        %v2641 = vand.u32 %v1838, 2147483648
        %v2642 = vor.u32 1.1754944e-38, %v2641
        %v2643 = vsel %vm2640, %v2642, %v2638
        %v2644 = vmul.f32 1.0, %v2643
        %v2645 = vrcp.pop %v1839
        %v2646 = vmul.f32 %v1839, %v2645
        %v2647 = vsub.f32 1.0, %v2646
        %v2648 = vmul.f32 %v2645, %v2647
        %v2649 = vadd.f32 %v2645, %v2648
        %vm2650 = vweird.f32 %v1839
        %vm2651 = vweird.f32 %v2645
        %vm2652 = vmor %vm2650, %vm2651
        %v2653 = vsel %vm2652, %v2645, %v2649
        %v2654 = vand.u32 2147483647, %v1839
        %vm2655 = vcmp.eq.f32.partialorder %v2654, 8.507059e+37
        %v2656 = vand.u32 %v1839, 2147483648
        %v2657 = vor.u32 1.1754944e-38, %v2656
        %v2658 = vsel %vm2655, %v2657, %v2653
        %v2659 = vmul.f32 1.0, %v2658
        %v2660 = vrcp.pop %v1840
        %v2661 = vmul.f32 %v1840, %v2660
        %v2662 = vsub.f32 1.0, %v2661
        %v2663 = vmul.f32 %v2660, %v2662
        %v2664 = vadd.f32 %v2660, %v2663
        %vm2665 = vweird.f32 %v1840
        %vm2666 = vweird.f32 %v2660
        %vm2667 = vmor %vm2665, %vm2666
        %v2668 = vsel %vm2667, %v2660, %v2664
        %v2669 = vand.u32 2147483647, %v1840
        %vm2670 = vcmp.eq.f32.partialorder %v2669, 8.507059e+37
        %v2671 = vand.u32 %v1840, 2147483648
        %v2672 = vor.u32 1.1754944e-38, %v2671
        %v2673 = vsel %vm2670, %v2672, %v2668
        %v2674 = vmul.f32 1.0, %v2673
        %v2675 = vrcp.pop %v1841
        %v2676 = vmul.f32 %v1841, %v2675
        %v2677 = vsub.f32 1.0, %v2676
        %v2678 = vmul.f32 %v2675, %v2677
        %v2679 = vadd.f32 %v2675, %v2678
        %vm2680 = vweird.f32 %v1841
        %vm2681 = vweird.f32 %v2675
        %vm2682 = vmor %vm2680, %vm2681
        %v2683 = vsel %vm2682, %v2675, %v2679
        %v2684 = vand.u32 2147483647, %v1841
        %vm2685 = vcmp.eq.f32.partialorder %v2684, 8.507059e+37
        %v2686 = vand.u32 %v1841, 2147483648
        %v2687 = vor.u32 1.1754944e-38, %v2686
        %v2688 = vsel %vm2685, %v2687, %v2683
        %v2689 = vmul.f32 1.0, %v2688
        %v2690 = vrcp.pop %v1842
        %v2691 = vmul.f32 %v1842, %v2690
        %v2692 = vsub.f32 1.0, %v2691
        %v2693 = vmul.f32 %v2690, %v2692
        %v2694 = vadd.f32 %v2690, %v2693
        %vm2695 = vweird.f32 %v1842
        %vm2696 = vweird.f32 %v2690
        %vm2697 = vmor %vm2695, %vm2696
        %v2698 = vsel %vm2697, %v2690, %v2694
        %v2699 = vand.u32 2147483647, %v1842
        %vm2700 = vcmp.eq.f32.partialorder %v2699, 8.507059e+37
        %v2701 = vand.u32 %v1842, 2147483648
        %v2702 = vor.u32 1.1754944e-38, %v2701
        %v2703 = vsel %vm2700, %v2702, %v2698
        %v2704 = vmul.f32 1.0, %v2703
        %v2705 = vrcp.pop %v1843
        %v2706 = vmul.f32 %v1843, %v2705
        %v2707 = vsub.f32 1.0, %v2706
        %v2708 = vmul.f32 %v2705, %v2707
        %v2709 = vadd.f32 %v2705, %v2708
        %vm2710 = vweird.f32 %v1843
        %vm2711 = vweird.f32 %v2705
        %vm2712 = vmor %vm2710, %vm2711
        %v2713 = vsel %vm2712, %v2705, %v2709
        %v2714 = vand.u32 2147483647, %v1843
        %vm2715 = vcmp.eq.f32.partialorder %v2714, 8.507059e+37
        %v2716 = vand.u32 %v1843, 2147483648
        %v2717 = vor.u32 1.1754944e-38, %v2716
        %v2718 = vsel %vm2715, %v2717, %v2713
        %v2719 = vmul.f32 1.0, %v2718
        %v2720 = vrcp.pop %v1844
        %v2721 = vmul.f32 %v1844, %v2720
        %v2722 = vsub.f32 1.0, %v2721
        %v2723 = vmul.f32 %v2720, %v2722
        %v2724 = vadd.f32 %v2720, %v2723
        %vm2725 = vweird.f32 %v1844
        %vm2726 = vweird.f32 %v2720
        %vm2727 = vmor %vm2725, %vm2726
        %v2728 = vsel %vm2727, %v2720, %v2724
        %v2729 = vand.u32 2147483647, %v1844
        %vm2730 = vcmp.eq.f32.partialorder %v2729, 8.507059e+37
        %v2731 = vand.u32 %v1844, 2147483648
        %v2732 = vor.u32 1.1754944e-38, %v2731
        %v2733 = vsel %vm2730, %v2732, %v2728
        %v2734 = vmul.f32 1.0, %v2733
        %v2735 = vrcp.pop %v1845
        %v2736 = vmul.f32 %v1845, %v2735
        %v2737 = vsub.f32 1.0, %v2736
        %v2738 = vmul.f32 %v2735, %v2737
        %v2739 = vadd.f32 %v2735, %v2738
        %vm2740 = vweird.f32 %v1845
        %vm2741 = vweird.f32 %v2735
        %vm2742 = vmor %vm2740, %vm2741
        %v2743 = vsel %vm2742, %v2735, %v2739
        %v2744 = vand.u32 2147483647, %v1845
        %vm2745 = vcmp.eq.f32.partialorder %v2744, 8.507059e+37
        %v2746 = vand.u32 %v1845, 2147483648
        %v2747 = vor.u32 1.1754944e-38, %v2746
        %v2748 = vsel %vm2745, %v2747, %v2743
        %v2749 = vmul.f32 1.0, %v2748
        %v2750 = vrcp.pop %v1846
        %v2751 = vmul.f32 %v1846, %v2750
        %v2752 = vsub.f32 1.0, %v2751
        %v2753 = vmul.f32 %v2750, %v2752
        %v2754 = vadd.f32 %v2750, %v2753
        %vm2755 = vweird.f32 %v1846
        %vm2756 = vweird.f32 %v2750
        %vm2757 = vmor %vm2755, %vm2756
        %v2758 = vsel %vm2757, %v2750, %v2754
        %v2759 = vand.u32 2147483647, %v1846
        %vm2760 = vcmp.eq.f32.partialorder %v2759, 8.507059e+37
        %v2761 = vand.u32 %v1846, 2147483648
        %v2762 = vor.u32 1.1754944e-38, %v2761
        %v2763 = vsel %vm2760, %v2762, %v2758
        %v2764 = vmul.f32 1.0, %v2763
        %v2765 = vrcp.pop %v1847
        %v2766 = vmul.f32 %v1847, %v2765
        %v2767 = vsub.f32 1.0, %v2766
        %v2768 = vmul.f32 %v2765, %v2767
        %v2769 = vadd.f32 %v2765, %v2768
        %vm2770 = vweird.f32 %v1847
        %vm2771 = vweird.f32 %v2765
        %vm2772 = vmor %vm2770, %vm2771
        %v2773 = vsel %vm2772, %v2765, %v2769
        %v2774 = vand.u32 2147483647, %v1847
        %vm2775 = vcmp.eq.f32.partialorder %v2774, 8.507059e+37
        %v2776 = vand.u32 %v1847, 2147483648
        %v2777 = vor.u32 1.1754944e-38, %v2776
        %v2778 = vsel %vm2775, %v2777, %v2773
        %v2779 = vmul.f32 1.0, %v2778
        %v2780 = vrcp.pop %v1848
        %v2781 = vmul.f32 %v1848, %v2780
        %v2782 = vsub.f32 1.0, %v2781
        %v2783 = vmul.f32 %v2780, %v2782
        %v2784 = vadd.f32 %v2780, %v2783
        %vm2785 = vweird.f32 %v1848
        %vm2786 = vweird.f32 %v2780
        %vm2787 = vmor %vm2785, %vm2786
        %v2788 = vsel %vm2787, %v2780, %v2784
        %v2789 = vand.u32 2147483647, %v1848
        %vm2790 = vcmp.eq.f32.partialorder %v2789, 8.507059e+37
        %v2791 = vand.u32 %v1848, 2147483648
        %v2792 = vor.u32 1.1754944e-38, %v2791
        %v2793 = vsel %vm2790, %v2792, %v2788
        %v2794 = vmul.f32 1.0, %v2793
        %v2795 = vrcp.pop %v1849
        %v2796 = vmul.f32 %v1849, %v2795
        %v2797 = vsub.f32 1.0, %v2796
        %v2798 = vmul.f32 %v2795, %v2797
        %v2799 = vadd.f32 %v2795, %v2798
        %vm2800 = vweird.f32 %v1849
        %vm2801 = vweird.f32 %v2795
        %vm2802 = vmor %vm2800, %vm2801
        %v2803 = vsel %vm2802, %v2795, %v2799
        %v2804 = vand.u32 2147483647, %v1849
        %vm2805 = vcmp.eq.f32.partialorder %v2804, 8.507059e+37
        %v2806 = vand.u32 %v1849, 2147483648
        %v2807 = vor.u32 1.1754944e-38, %v2806
        %v2808 = vsel %vm2805, %v2807, %v2803
        %v2809 = vmul.f32 1.0, %v2808
        %v2810 = vmul.f32 %v789, %v1864
        %v2811 = vmul.f32 %v967, %v1879
        %v2812 = vmul.f32 %v791, %v1894
        %v2813 = vmul.f32 %v969, %v1909
        %v2814 = vmul.f32 %v794, %v1924
        %v2815 = vmul.f32 %v972, %v1939
        %v2816 = vmul.f32 %v796, %v1954
        %v2817 = vmul.f32 %v974, %v1969
        %v2818 = vmul.f32 %v799, %v1984
        %v2819 = vmul.f32 %v977, %v1999
        %v2820 = vmul.f32 %v801, %v2014
        %v2821 = vmul.f32 %v979, %v2029
        %v2822 = vmul.f32 %v804, %v2044
        %v2823 = vmul.f32 %v982, %v2059
        %v2824 = vmul.f32 %v806, %v2074
        %v2825 = vmul.f32 %v984, %v2089
        %v2826 = vmul.f32 %v809, %v2104
        %v2827 = vmul.f32 %v987, %v2119
        %v2828 = vmul.f32 %v811, %v2134
        %v2829 = vmul.f32 %v989, %v2149
        %v2830 = vmul.f32 %v814, %v2164
        %v2831 = vmul.f32 %v992, %v2179
        %v2832 = vmul.f32 %v816, %v2194
        %v2833 = vmul.f32 %v994, %v2209
        %v2834 = vmul.f32 %v819, %v2224
        %v2835 = vmul.f32 %v997, %v2239
        %v2836 = vmul.f32 %v821, %v2254
        %v2837 = vmul.f32 %v999, %v2269
        %v2838 = vmul.f32 %v824, %v2284
        %v2839 = vmul.f32 %v1002, %v2299
        %v2840 = vmul.f32 %v826, %v2314
        %v2841 = vmul.f32 %v1004, %v2329
        %v2842 = vmul.f32 %v829, %v2344
        %v2843 = vmul.f32 %v1007, %v2359
        %v2844 = vmul.f32 %v831, %v2374
        %v2845 = vmul.f32 %v1009, %v2389
        %v2846 = vmul.f32 %v834, %v2404
        %v2847 = vmul.f32 %v1012, %v2419
        %v2848 = vmul.f32 %v836, %v2434
        %v2849 = vmul.f32 %v1014, %v2449
        %v2850 = vmul.f32 %v839, %v2464
        %v2851 = vmul.f32 %v1017, %v2479
        %v2852 = vmul.f32 %v841, %v2494
        %v2853 = vmul.f32 %v1019, %v2509
        %v2854 = vmul.f32 %v844, %v2524
        %v2855 = vmul.f32 %v1022, %v2539
        %v2856 = vmul.f32 %v846, %v2554
        %v2857 = vmul.f32 %v1024, %v2569
        %v2858 = vmul.f32 %v849, %v2584
        %v2859 = vmul.f32 %v1027, %v2599
        %v2860 = vmul.f32 %v851, %v2614
        %v2861 = vmul.f32 %v1029, %v2629
        %v2862 = vmul.f32 %v854, %v2644
        %v2863 = vmul.f32 %v1032, %v2659
        %v2864 = vmul.f32 %v856, %v2674
        %v2865 = vmul.f32 %v1034, %v2689
        %v2866 = vmul.f32 %v859, %v2704
        %v2867 = vmul.f32 %v1037, %v2719
        %v2868 = vmul.f32 %v861, %v2734
        %v2869 = vmul.f32 %v1039, %v2749
        %v2870 = vmul.f32 %v864, %v2764
        %v2871 = vmul.f32 %v1042, %v2779
        %v2872 = vmul.f32 %v866, %v2794
        %v2873 = vmul.f32 %v1044, %v2809
        %v2874 = vmul.f32 %v2810, %v1337
        %v2875 = vmul.f32 %v2811, %v1515
        %v2876 = vmul.f32 %v2812, %v1339
        %v2877 = vmul.f32 %v2813, %v1517
        %v2878 = vmul.f32 %v2814, %v1342
        %v2879 = vmul.f32 %v2815, %v1520
        %v2880 = vmul.f32 %v2816, %v1344
        %v2881 = vmul.f32 %v2817, %v1522
        %v2882 = vmul.f32 %v2818, %v1347
        %v2883 = vmul.f32 %v2819, %v1525
        %v2884 = vmul.f32 %v2820, %v1349
        %v2885 = vmul.f32 %v2821, %v1527
        %v2886 = vmul.f32 %v2822, %v1352
        %v2887 = vmul.f32 %v2823, %v1530
        %v2888 = vmul.f32 %v2824, %v1354
        %v2889 = vmul.f32 %v2825, %v1532
        %v2890 = vmul.f32 %v2826, %v1357
        %v2891 = vmul.f32 %v2827, %v1535
        %v2892 = vmul.f32 %v2828, %v1359
        %v2893 = vmul.f32 %v2829, %v1537
        %v2894 = vmul.f32 %v2830, %v1362
        %v2895 = vmul.f32 %v2831, %v1540
        %v2896 = vmul.f32 %v2832, %v1364
        %v2897 = vmul.f32 %v2833, %v1542
        %v2898 = vmul.f32 %v2834, %v1367
        %v2899 = vmul.f32 %v2835, %v1545
        %v2900 = vmul.f32 %v2836, %v1369
        %v2901 = vmul.f32 %v2837, %v1547
        %v2902 = vmul.f32 %v2838, %v1372
        %v2903 = vmul.f32 %v2839, %v1550
        %v2904 = vmul.f32 %v2840, %v1374
        %v2905 = vmul.f32 %v2841, %v1552
        %v2906 = vmul.f32 %v2842, %v1377
        %v2907 = vmul.f32 %v2843, %v1555
        %v2908 = vmul.f32 %v2844, %v1379
        %v2909 = vmul.f32 %v2845, %v1557
        %v2910 = vmul.f32 %v2846, %v1382
        %v2911 = vmul.f32 %v2847, %v1560
        %v2912 = vmul.f32 %v2848, %v1384
        %v2913 = vmul.f32 %v2849, %v1562
        %v2914 = vmul.f32 %v2850, %v1387
        %v2915 = vmul.f32 %v2851, %v1565
        %v2916 = vmul.f32 %v2852, %v1389
        %v2917 = vmul.f32 %v2853, %v1567
        %v2918 = vmul.f32 %v2854, %v1392
        %v2919 = vmul.f32 %v2855, %v1570
        %v2920 = vmul.f32 %v2856, %v1394
        %v2921 = vmul.f32 %v2857, %v1572
        %v2922 = vmul.f32 %v2858, %v1397
        %v2923 = vmul.f32 %v2859, %v1575
        %v2924 = vmul.f32 %v2860, %v1399
        %v2925 = vmul.f32 %v2861, %v1577
        %v2926 = vmul.f32 %v2862, %v1402
        %v2927 = vmul.f32 %v2863, %v1580
        %v2928 = vmul.f32 %v2864, %v1404
        %v2929 = vmul.f32 %v2865, %v1582
        %v2930 = vmul.f32 %v2866, %v1407
        %v2931 = vmul.f32 %v2867, %v1585
        %v2932 = vmul.f32 %v2868, %v1409
        %v2933 = vmul.f32 %v2869, %v1587
        %v2934 = vmul.f32 %v2870, %v1412
        %v2935 = vmul.f32 %v2871, %v1590
        %v2936 = vmul.f32 %v2872, %v1414
        %v2937 = vmul.f32 %v2873, %v1592
        %v2938 = vld [vmem:[#allocation10] sm:$0xff]
        %v2939 = vld [vmem:[#allocation10 + $0x8] sm:$0xff]
        %v2940 = vld [vmem:[#allocation10 + $0x10] sm:$0xff]
        %v2941 = vld [vmem:[#allocation10 + $0x18] sm:$0xff]
        %v2942 = vld [vmem:[#allocation10 + $0x20] sm:$0xff]
        %v2943 = vld [vmem:[#allocation10 + $0x28] sm:$0xff]
        %v2944 = vld [vmem:[#allocation10 + $0x30] sm:$0xff]
        %v2945 = vld [vmem:[#allocation10 + $0x38] sm:$0xff]
        %v2946 = vld [vmem:[#allocation10 + $0x40] sm:$0xff]
        %v2947 = vld [vmem:[#allocation10 + $0x48] sm:$0xff]
        %v2948 = vld [vmem:[#allocation10 + $0x50] sm:$0xff]
        %v2949 = vld [vmem:[#allocation10 + $0x58] sm:$0xff]
        %v2950 = vld [vmem:[#allocation10 + $0x60] sm:$0xff]
        %v2951 = vld [vmem:[#allocation10 + $0x68] sm:$0xff]
        %v2952 = vld [vmem:[#allocation10 + $0x70] sm:$0xff]
        %v2953 = vld [vmem:[#allocation10 + $0x78] sm:$0xff]
        %v2954 = vld [vmem:[#allocation10 + $0x80] sm:$0xff]
        %v2955 = vld [vmem:[#allocation10 + $0x88] sm:$0xff]
        %v2956 = vld [vmem:[#allocation10 + $0x90] sm:$0xff]
        %v2957 = vld [vmem:[#allocation10 + $0x98] sm:$0xff]
        %v2958 = vld [vmem:[#allocation10 + $0xa0] sm:$0xff]
        %v2959 = vld [vmem:[#allocation10 + $0xa8] sm:$0xff]
        %v2960 = vld [vmem:[#allocation10 + $0xb0] sm:$0xff]
        %v2961 = vld [vmem:[#allocation10 + $0xb8] sm:$0xff]
        %v2962 = vld [vmem:[#allocation10 + $0xc0] sm:$0xff]
        %v2963 = vld [vmem:[#allocation10 + $0xc8] sm:$0xff]
        %v2964 = vld [vmem:[#allocation10 + $0xd0] sm:$0xff]
        %v2965 = vld [vmem:[#allocation10 + $0xd8] sm:$0xff]
        %v2966 = vld [vmem:[#allocation10 + $0xe0] sm:$0xff]
        %v2967 = vld [vmem:[#allocation10 + $0xe8] sm:$0xff]
        %v2968 = vld [vmem:[#allocation10 + $0xf0] sm:$0xff]
        %v2969 = vld [vmem:[#allocation10 + $0xf8] sm:$0xff]
        %v2970 = vld [vmem:[#allocation10 + $0x100] sm:$0xff]
        %v2971 = vld [vmem:[#allocation10 + $0x108] sm:$0xff]
        %v2972 = vld [vmem:[#allocation10 + $0x110] sm:$0xff]
        %v2973 = vld [vmem:[#allocation10 + $0x118] sm:$0xff]
        %v2974 = vld [vmem:[#allocation10 + $0x120] sm:$0xff]
        %v2975 = vld [vmem:[#allocation10 + $0x128] sm:$0xff]
        %v2976 = vld [vmem:[#allocation10 + $0x130] sm:$0xff]
        %v2977 = vld [vmem:[#allocation10 + $0x138] sm:$0xff]
        %v2978 = vld [vmem:[#allocation10 + $0x140] sm:$0xff]
        %v2979 = vld [vmem:[#allocation10 + $0x148] sm:$0xff]
        %v2980 = vld [vmem:[#allocation10 + $0x150] sm:$0xff]
        %v2981 = vld [vmem:[#allocation10 + $0x158] sm:$0xff]
        %v2982 = vld [vmem:[#allocation10 + $0x160] sm:$0xff]
        %v2983 = vld [vmem:[#allocation10 + $0x168] sm:$0xff]
        %v2984 = vld [vmem:[#allocation10 + $0x170] sm:$0xff]
        %v2985 = vld [vmem:[#allocation10 + $0x178] sm:$0xff]
        %v2986 = vld [vmem:[#allocation10 + $0x180] sm:$0xff]
        %v2987 = vld [vmem:[#allocation10 + $0x188] sm:$0xff]
        %v2988 = vld [vmem:[#allocation10 + $0x190] sm:$0xff]
        %v2989 = vld [vmem:[#allocation10 + $0x198] sm:$0xff]
        %v2990 = vld [vmem:[#allocation10 + $0x1a0] sm:$0xff]
        %v2991 = vld [vmem:[#allocation10 + $0x1a8] sm:$0xff]
        %v2992 = vld [vmem:[#allocation10 + $0x1b0] sm:$0xff]
        %v2993 = vld [vmem:[#allocation10 + $0x1b8] sm:$0xff]
        %v2994 = vld [vmem:[#allocation10 + $0x1c0] sm:$0xff]
        %v2995 = vld [vmem:[#allocation10 + $0x1c8] sm:$0xff]
        %v2996 = vld [vmem:[#allocation10 + $0x1d0] sm:$0xff]
        %v2997 = vld [vmem:[#allocation10 + $0x1d8] sm:$0xff]
        %v2998 = vld [vmem:[#allocation10 + $0x1e0] sm:$0xff]
        %v2999 = vld [vmem:[#allocation10 + $0x1e8] sm:$0xff]
        %v3000 = vld [vmem:[#allocation10 + $0x1f0] sm:$0xff]
        %v3001 = vld [vmem:[#allocation10 + $0x1f8] sm:$0xff]
        %v3002 = vpack.c.bf16 %v2876, %v2874
        %v3003 = vpack.c.bf16 %v2877, %v2875
        %v3004 = vpack.c.bf16 %v2880, %v2878
        %v3005 = vpack.c.bf16 %v2881, %v2879
        %v3006 = vpack.c.bf16 %v2884, %v2882
        %v3007 = vpack.c.bf16 %v2885, %v2883
        %v3008 = vpack.c.bf16 %v2888, %v2886
        %v3009 = vpack.c.bf16 %v2889, %v2887
        %v3010 = vpack.c.bf16 %v2892, %v2890
        %v3011 = vpack.c.bf16 %v2893, %v2891
        %v3012 = vpack.c.bf16 %v2896, %v2894
        %v3013 = vpack.c.bf16 %v2897, %v2895
        %v3014 = vpack.c.bf16 %v2900, %v2898
        %v3015 = vpack.c.bf16 %v2901, %v2899
        %v3016 = vpack.c.bf16 %v2904, %v2902
        %v3017 = vpack.c.bf16 %v2905, %v2903
        %v3018 = vpack.c.bf16 %v2908, %v2906
        %v3019 = vpack.c.bf16 %v2909, %v2907
        %v3020 = vpack.c.bf16 %v2912, %v2910
        %v3021 = vpack.c.bf16 %v2913, %v2911
        %v3022 = vpack.c.bf16 %v2916, %v2914
        %v3023 = vpack.c.bf16 %v2917, %v2915
        %v3024 = vpack.c.bf16 %v2920, %v2918
        %v3025 = vpack.c.bf16 %v2921, %v2919
        %v3026 = vpack.c.bf16 %v2924, %v2922
        %v3027 = vpack.c.bf16 %v2925, %v2923
        %v3028 = vpack.c.bf16 %v2928, %v2926
        %v3029 = vpack.c.bf16 %v2929, %v2927
        %v3030 = vpack.c.bf16 %v2932, %v2930
        %v3031 = vpack.c.bf16 %v2933, %v2931
        %v3032 = vpack.c.bf16 %v2936, %v2934
        %v3033 = vpack.c.bf16 %v2937, %v2935
        %v3034 = vld [vmem:[%s300] sm:$0xff]
        %v3035 = vld [vmem:[%s300 + $0x8] sm:$0xff]
        %v3036 = vld [vmem:[%s300 + $0x10] sm:$0xff]
        %v3037 = vld [vmem:[%s300 + $0x18] sm:$0xff]
        %v3038 = vld [vmem:[%s300 + $0x20] sm:$0xff]
        %v3039 = vld [vmem:[%s300 + $0x28] sm:$0xff]
        %v3040 = vld [vmem:[%s300 + $0x30] sm:$0xff]
        %v3041 = vld [vmem:[%s300 + $0x38] sm:$0xff]
        %v3042 = vld [vmem:[%s300 + $0x40] sm:$0xff]
        %v3043 = vld [vmem:[%s300 + $0x48] sm:$0xff]
        %v3044 = vld [vmem:[%s300 + $0x50] sm:$0xff]
        %v3045 = vld [vmem:[%s300 + $0x58] sm:$0xff]
        %v3046 = vld [vmem:[%s300 + $0x60] sm:$0xff]
        %v3047 = vld [vmem:[%s300 + $0x68] sm:$0xff]
        %v3048 = vld [vmem:[%s300 + $0x70] sm:$0xff]
        %v3049 = vld [vmem:[%s300 + $0x78] sm:$0xff]
        %v3050 = vld [vmem:[%s300 + $0x80] sm:$0xff]
        %v3051 = vld [vmem:[%s300 + $0x88] sm:$0xff]
        %v3052 = vld [vmem:[%s300 + $0x90] sm:$0xff]
        %v3053 = vld [vmem:[%s300 + $0x98] sm:$0xff]
        %v3054 = vld [vmem:[%s300 + $0xa0] sm:$0xff]
        %v3055 = vld [vmem:[%s300 + $0xa8] sm:$0xff]
        %v3056 = vld [vmem:[%s300 + $0xb0] sm:$0xff]
        %v3057 = vld [vmem:[%s300 + $0xb8] sm:$0xff]
        %v3058 = vld [vmem:[%s300 + $0xc0] sm:$0xff]
        %v3059 = vld [vmem:[%s300 + $0xc8] sm:$0xff]
        %v3060 = vld [vmem:[%s300 + $0xd0] sm:$0xff]
        %v3061 = vld [vmem:[%s300 + $0xd8] sm:$0xff]
        %v3062 = vld [vmem:[%s300 + $0xe0] sm:$0xff]
        %v3063 = vld [vmem:[%s300 + $0xe8] sm:$0xff]
        %v3064 = vld [vmem:[%s300 + $0xf0] sm:$0xff]
        %v3065 = vld [vmem:[%s300 + $0xf8] sm:$0xff]
        %v3098 = vunpack.c.l.b16 %v3034
        %v3099 = vunpack.c.h.b16 %v3034
        %v3100 = vunpack.c.l.b16 %v3035
        %v3101 = vunpack.c.h.b16 %v3035
        %v3102 = vunpack.c.l.b16 %v3036
        %v3103 = vunpack.c.h.b16 %v3036
        %v3104 = vunpack.c.l.b16 %v3037
        %v3105 = vunpack.c.h.b16 %v3037
        %v3106 = vunpack.c.l.b16 %v3038
        %v3107 = vunpack.c.h.b16 %v3038
        %v3108 = vunpack.c.l.b16 %v3039
        %v3109 = vunpack.c.h.b16 %v3039
        %v3110 = vunpack.c.l.b16 %v3040
        %v3111 = vunpack.c.h.b16 %v3040
        %v3112 = vunpack.c.l.b16 %v3041
        %v3113 = vunpack.c.h.b16 %v3041
        %v3114 = vunpack.c.l.b16 %v3042
        %v3115 = vunpack.c.h.b16 %v3042
        %v3116 = vunpack.c.l.b16 %v3043
        %v3117 = vunpack.c.h.b16 %v3043
        %v3118 = vunpack.c.l.b16 %v3044
        %v3119 = vunpack.c.h.b16 %v3044
        %v3120 = vunpack.c.l.b16 %v3045
        %v3121 = vunpack.c.h.b16 %v3045
        %v3122 = vunpack.c.l.b16 %v3046
        %v3123 = vunpack.c.h.b16 %v3046
        %v3124 = vunpack.c.l.b16 %v3047
        %v3125 = vunpack.c.h.b16 %v3047
        %v3126 = vunpack.c.l.b16 %v3048
        %v3127 = vunpack.c.h.b16 %v3048
        %v3128 = vunpack.c.l.b16 %v3049
        %v3129 = vunpack.c.h.b16 %v3049
        %v3130 = vunpack.c.l.b16 %v3050
        %v3131 = vunpack.c.h.b16 %v3050
        %v3132 = vunpack.c.l.b16 %v3051
        %v3133 = vunpack.c.h.b16 %v3051
        %v3134 = vunpack.c.l.b16 %v3052
        %v3135 = vunpack.c.h.b16 %v3052
        %v3136 = vunpack.c.l.b16 %v3053
        %v3137 = vunpack.c.h.b16 %v3053
        %v3138 = vunpack.c.l.b16 %v3054
        %v3139 = vunpack.c.h.b16 %v3054
        %v3140 = vunpack.c.l.b16 %v3055
        %v3141 = vunpack.c.h.b16 %v3055
        %v3142 = vunpack.c.l.b16 %v3056
        %v3143 = vunpack.c.h.b16 %v3056
        %v3144 = vunpack.c.l.b16 %v3057
        %v3145 = vunpack.c.h.b16 %v3057
        %v3146 = vunpack.c.l.b16 %v3058
        %v3147 = vunpack.c.h.b16 %v3058
        %v3148 = vunpack.c.l.b16 %v3059
        %v3149 = vunpack.c.h.b16 %v3059
        %v3150 = vunpack.c.l.b16 %v3060
        %v3151 = vunpack.c.h.b16 %v3060
        %v3152 = vunpack.c.l.b16 %v3061
        %v3153 = vunpack.c.h.b16 %v3061
        %v3154 = vunpack.c.l.b16 %v3062
        %v3155 = vunpack.c.h.b16 %v3062
        %v3156 = vunpack.c.l.b16 %v3063
        %v3157 = vunpack.c.h.b16 %v3063
        %v3158 = vunpack.c.l.b16 %v3064
        %v3159 = vunpack.c.h.b16 %v3064
        %v3160 = vunpack.c.l.b16 %v3065
        %v3161 = vunpack.c.h.b16 %v3065
        %v3162 = vpack.c.b16 %v3100, %v3098
        %v3163 = vpack.c.b16 %v3101, %v3099
        %v3164 = vpack.c.b16 %v3104, %v3102
        %v3165 = vpack.c.b16 %v3105, %v3103
        %v3166 = vpack.c.b16 %v3108, %v3106
        %v3167 = vpack.c.b16 %v3109, %v3107
        %v3168 = vpack.c.b16 %v3112, %v3110
        %v3169 = vpack.c.b16 %v3113, %v3111
        %v3170 = vpack.c.b16 %v3116, %v3114
        %v3171 = vpack.c.b16 %v3117, %v3115
        %v3172 = vpack.c.b16 %v3120, %v3118
        %v3173 = vpack.c.b16 %v3121, %v3119
        %v3174 = vpack.c.b16 %v3124, %v3122
        %v3175 = vpack.c.b16 %v3125, %v3123
        %v3176 = vpack.c.b16 %v3128, %v3126
        %v3177 = vpack.c.b16 %v3129, %v3127
        %v3178 = vpack.c.b16 %v3132, %v3130
        %v3179 = vpack.c.b16 %v3133, %v3131
        %v3180 = vpack.c.b16 %v3136, %v3134
        %v3181 = vpack.c.b16 %v3137, %v3135
        %v3182 = vpack.c.b16 %v3140, %v3138
        %v3183 = vpack.c.b16 %v3141, %v3139
        %v3184 = vpack.c.b16 %v3144, %v3142
        %v3185 = vpack.c.b16 %v3145, %v3143
        %v3186 = vpack.c.b16 %v3148, %v3146
        %v3187 = vpack.c.b16 %v3149, %v3147
        %v3188 = vpack.c.b16 %v3152, %v3150
        %v3189 = vpack.c.b16 %v3153, %v3151
        %v3190 = vpack.c.b16 %v3156, %v3154
        %v3191 = vpack.c.b16 %v3157, %v3155
        %v3192 = vpack.c.b16 %v3160, %v3158
        %v3193 = vpack.c.b16 %v3161, %v3159
        %3226 = vmatpush.bf16.msra.mxu0 %v3176
        %3227 = vmatpush.bf16.msra.mxu0 %v3174
        %3228 = vmatpush.bf16.msra.mxu0 %v3172
        %3229 = vmatpush.bf16.msra.mxu0 %v3170
        %3230 = vmatpush.bf16.msra.mxu0 %v3168
        %3231 = vmatpush.bf16.msra.mxu0 %v3166
        %3232 = vmatpush.bf16.msra.mxu0 %v3164
        %3233 = vmatpush.bf16.msra.mxu0 %v3162
        %3234 = vmatmul.bf16.gmra.mxu0 %v3002
        %v3235 = vpop.f32.mrf.mxu0
        %v3236 = vadd.f32 0.0, %v3235
        %v3237 = vpop.f32.mrf.mxu0
        %v3238 = vadd.f32 0.0, %v3237
        %3239 = vmatmul.bf16.gmra.mxu0 %v3004
        %v3240 = vpop.f32.mrf.mxu0
        %v3241 = vadd.f32 0.0, %v3240
        %v3242 = vpop.f32.mrf.mxu0
        %v3243 = vadd.f32 0.0, %v3242
        %3244 = vmatmul.bf16.gmra.mxu0 %v3006
        %v3245 = vpop.f32.mrf.mxu0
        %v3246 = vadd.f32 0.0, %v3245
        %v3247 = vpop.f32.mrf.mxu0
        %v3248 = vadd.f32 0.0, %v3247
        %3249 = vmatmul.bf16.gmra.mxu0 %v3008
        %v3250 = vpop.f32.mrf.mxu0
        %v3251 = vadd.f32 0.0, %v3250
        %v3252 = vpop.f32.mrf.mxu0
        %v3253 = vadd.f32 0.0, %v3252
        %3254 = vmatmul.bf16.gmra.mxu0 %v3010
        %v3255 = vpop.f32.mrf.mxu0
        %v3256 = vadd.f32 0.0, %v3255
        %v3257 = vpop.f32.mrf.mxu0
        %v3258 = vadd.f32 0.0, %v3257
        %3259 = vmatmul.bf16.gmra.mxu0 %v3012
        %v3260 = vpop.f32.mrf.mxu0
        %v3261 = vadd.f32 0.0, %v3260
        %v3262 = vpop.f32.mrf.mxu0
        %v3263 = vadd.f32 0.0, %v3262
        %3264 = vmatmul.bf16.gmra.mxu0 %v3014
        %v3265 = vpop.f32.mrf.mxu0
        %v3266 = vadd.f32 0.0, %v3265
        %v3267 = vpop.f32.mrf.mxu0
        %v3268 = vadd.f32 0.0, %v3267
        %3269 = vmatmul.bf16.gmra.mxu0 %v3016
        %v3270 = vpop.f32.mrf.mxu0
        %v3271 = vadd.f32 0.0, %v3270
        %v3272 = vpop.f32.mrf.mxu0
        %v3273 = vadd.f32 0.0, %v3272
        %3274 = vmatmul.bf16.gmra.mxu0 %v3018
        %v3275 = vpop.f32.mrf.mxu0
        %v3276 = vadd.f32 0.0, %v3275
        %v3277 = vpop.f32.mrf.mxu0
        %v3278 = vadd.f32 0.0, %v3277
        %3279 = vmatmul.bf16.gmra.mxu0 %v3020
        %v3280 = vpop.f32.mrf.mxu0
        %v3281 = vadd.f32 0.0, %v3280
        %v3282 = vpop.f32.mrf.mxu0
        %v3283 = vadd.f32 0.0, %v3282
        %3284 = vmatmul.bf16.gmra.mxu0 %v3022
        %v3285 = vpop.f32.mrf.mxu0
        %v3286 = vadd.f32 0.0, %v3285
        %v3287 = vpop.f32.mrf.mxu0
        %v3288 = vadd.f32 0.0, %v3287
        %3289 = vmatmul.bf16.gmra.mxu0 %v3024
        %v3290 = vpop.f32.mrf.mxu0
        %v3291 = vadd.f32 0.0, %v3290
        %v3292 = vpop.f32.mrf.mxu0
        %v3293 = vadd.f32 0.0, %v3292
        %3294 = vmatmul.bf16.gmra.mxu0 %v3026
        %v3295 = vpop.f32.mrf.mxu0
        %v3296 = vadd.f32 0.0, %v3295
        %v3297 = vpop.f32.mrf.mxu0
        %v3298 = vadd.f32 0.0, %v3297
        %3299 = vmatmul.bf16.gmra.mxu0 %v3028
        %v3300 = vpop.f32.mrf.mxu0
        %v3301 = vadd.f32 0.0, %v3300
        %v3302 = vpop.f32.mrf.mxu0
        %v3303 = vadd.f32 0.0, %v3302
        %3304 = vmatmul.bf16.gmra.mxu0 %v3030
        %v3305 = vpop.f32.mrf.mxu0
        %v3306 = vadd.f32 0.0, %v3305
        %v3307 = vpop.f32.mrf.mxu0
        %v3308 = vadd.f32 0.0, %v3307
        %3309 = vmatmul.bf16.gmra.mxu0 %v3032
        %v3310 = vpop.f32.mrf.mxu0
        %v3311 = vadd.f32 0.0, %v3310
        %v3312 = vpop.f32.mrf.mxu0
        %v3313 = vadd.f32 0.0, %v3312
        %3314 = vdwg.mxu0
        %3315 = vmatpush.bf16.msra.mxu0 %v3192
        %3316 = vmatpush.bf16.msra.mxu0 %v3190
        %3317 = vmatpush.bf16.msra.mxu0 %v3188
        %3318 = vmatpush.bf16.msra.mxu0 %v3186
        %3319 = vmatpush.bf16.msra.mxu0 %v3184
        %3320 = vmatpush.bf16.msra.mxu0 %v3182
        %3321 = vmatpush.bf16.msra.mxu0 %v3180
        %3322 = vmatpush.bf16.msra.mxu0 %v3178
        %3323 = vmatmul.bf16.gmra.mxu0 %v3003
        %v3324 = vpop.f32.mrf.mxu0
        %v3325 = vadd.f32 %v3236, %v3324
        %v3326 = vpop.f32.mrf.mxu0
        %v3327 = vadd.f32 %v3238, %v3326
        %3328 = vmatmul.bf16.gmra.mxu0 %v3005
        %v3329 = vpop.f32.mrf.mxu0
        %v3330 = vadd.f32 %v3241, %v3329
        %v3331 = vpop.f32.mrf.mxu0
        %v3332 = vadd.f32 %v3243, %v3331
        %3333 = vmatmul.bf16.gmra.mxu0 %v3007
        %v3334 = vpop.f32.mrf.mxu0
        %v3335 = vadd.f32 %v3246, %v3334
        %v3336 = vpop.f32.mrf.mxu0
        %v3337 = vadd.f32 %v3248, %v3336
        %3338 = vmatmul.bf16.gmra.mxu0 %v3009
        %v3339 = vpop.f32.mrf.mxu0
        %v3340 = vadd.f32 %v3251, %v3339
        %v3341 = vpop.f32.mrf.mxu0
        %v3342 = vadd.f32 %v3253, %v3341
        %3343 = vmatmul.bf16.gmra.mxu0 %v3011
        %v3344 = vpop.f32.mrf.mxu0
        %v3345 = vadd.f32 %v3256, %v3344
        %v3346 = vpop.f32.mrf.mxu0
        %v3347 = vadd.f32 %v3258, %v3346
        %3348 = vmatmul.bf16.gmra.mxu0 %v3013
        %v3349 = vpop.f32.mrf.mxu0
        %v3350 = vadd.f32 %v3261, %v3349
        %v3351 = vpop.f32.mrf.mxu0
        %v3352 = vadd.f32 %v3263, %v3351
        %3353 = vmatmul.bf16.gmra.mxu0 %v3015
        %v3354 = vpop.f32.mrf.mxu0
        %v3355 = vadd.f32 %v3266, %v3354
        %v3356 = vpop.f32.mrf.mxu0
        %v3357 = vadd.f32 %v3268, %v3356
        %3358 = vmatmul.bf16.gmra.mxu0 %v3017
        %v3359 = vpop.f32.mrf.mxu0
        %v3360 = vadd.f32 %v3271, %v3359
        %v3361 = vpop.f32.mrf.mxu0
        %v3362 = vadd.f32 %v3273, %v3361
        %3363 = vmatmul.bf16.gmra.mxu0 %v3019
        %v3364 = vpop.f32.mrf.mxu0
        %v3365 = vadd.f32 %v3276, %v3364
        %v3366 = vpop.f32.mrf.mxu0
        %v3367 = vadd.f32 %v3278, %v3366
        %3368 = vmatmul.bf16.gmra.mxu0 %v3021
        %v3369 = vpop.f32.mrf.mxu0
        %v3370 = vadd.f32 %v3281, %v3369
        %v3371 = vpop.f32.mrf.mxu0
        %v3372 = vadd.f32 %v3283, %v3371
        %3373 = vmatmul.bf16.gmra.mxu0 %v3023
        %v3374 = vpop.f32.mrf.mxu0
        %v3375 = vadd.f32 %v3286, %v3374
        %v3376 = vpop.f32.mrf.mxu0
        %v3377 = vadd.f32 %v3288, %v3376
        %3378 = vmatmul.bf16.gmra.mxu0 %v3025
        %v3379 = vpop.f32.mrf.mxu0
        %v3380 = vadd.f32 %v3291, %v3379
        %v3381 = vpop.f32.mrf.mxu0
        %v3382 = vadd.f32 %v3293, %v3381
        %3383 = vmatmul.bf16.gmra.mxu0 %v3027
        %v3384 = vpop.f32.mrf.mxu0
        %v3385 = vadd.f32 %v3296, %v3384
        %v3386 = vpop.f32.mrf.mxu0
        %v3387 = vadd.f32 %v3298, %v3386
        %3388 = vmatmul.bf16.gmra.mxu0 %v3029
        %v3389 = vpop.f32.mrf.mxu0
        %v3390 = vadd.f32 %v3301, %v3389
        %v3391 = vpop.f32.mrf.mxu0
        %v3392 = vadd.f32 %v3303, %v3391
        %3393 = vmatmul.bf16.gmra.mxu0 %v3031
        %v3394 = vpop.f32.mrf.mxu0
        %v3395 = vadd.f32 %v3306, %v3394
        %v3396 = vpop.f32.mrf.mxu0
        %v3397 = vadd.f32 %v3308, %v3396
        %3398 = vmatmul.bf16.gmra.mxu0 %v3033
        %v3399 = vpop.f32.mrf.mxu0
        %v3400 = vadd.f32 %v3311, %v3399
        %v3401 = vpop.f32.mrf.mxu0
        %v3402 = vadd.f32 %v3313, %v3401
        %3403 = vdwg.mxu0
        %3404 = vmatpush.bf16.msra.mxu0 %v3177
        %3405 = vmatpush.bf16.msra.mxu0 %v3175
        %3406 = vmatpush.bf16.msra.mxu0 %v3173
        %3407 = vmatpush.bf16.msra.mxu0 %v3171
        %3408 = vmatpush.bf16.msra.mxu0 %v3169
        %3409 = vmatpush.bf16.msra.mxu0 %v3167
        %3410 = vmatpush.bf16.msra.mxu0 %v3165
        %3411 = vmatpush.bf16.msra.mxu0 %v3163
        %3412 = vmatmul.bf16.gmra.mxu0 %v3002
        %v3413 = vpop.f32.mrf.mxu0
        %v3414 = vadd.f32 0.0, %v3413
        %v3415 = vpop.f32.mrf.mxu0
        %v3416 = vadd.f32 0.0, %v3415
        %3417 = vmatmul.bf16.gmra.mxu0 %v3004
        %v3418 = vpop.f32.mrf.mxu0
        %v3419 = vadd.f32 0.0, %v3418
        %v3420 = vpop.f32.mrf.mxu0
        %v3421 = vadd.f32 0.0, %v3420
        %3422 = vmatmul.bf16.gmra.mxu0 %v3006
        %v3423 = vpop.f32.mrf.mxu0
        %v3424 = vadd.f32 0.0, %v3423
        %v3425 = vpop.f32.mrf.mxu0
        %v3426 = vadd.f32 0.0, %v3425
        %3427 = vmatmul.bf16.gmra.mxu0 %v3008
        %v3428 = vpop.f32.mrf.mxu0
        %v3429 = vadd.f32 0.0, %v3428
        %v3430 = vpop.f32.mrf.mxu0
        %v3431 = vadd.f32 0.0, %v3430
        %3432 = vmatmul.bf16.gmra.mxu0 %v3010
        %v3433 = vpop.f32.mrf.mxu0
        %v3434 = vadd.f32 0.0, %v3433
        %v3435 = vpop.f32.mrf.mxu0
        %v3436 = vadd.f32 0.0, %v3435
        %3437 = vmatmul.bf16.gmra.mxu0 %v3012
        %v3438 = vpop.f32.mrf.mxu0
        %v3439 = vadd.f32 0.0, %v3438
        %v3440 = vpop.f32.mrf.mxu0
        %v3441 = vadd.f32 0.0, %v3440
        %3442 = vmatmul.bf16.gmra.mxu0 %v3014
        %v3443 = vpop.f32.mrf.mxu0
        %v3444 = vadd.f32 0.0, %v3443
        %v3445 = vpop.f32.mrf.mxu0
        %v3446 = vadd.f32 0.0, %v3445
        %3447 = vmatmul.bf16.gmra.mxu0 %v3016
        %v3448 = vpop.f32.mrf.mxu0
        %v3449 = vadd.f32 0.0, %v3448
        %v3450 = vpop.f32.mrf.mxu0
        %v3451 = vadd.f32 0.0, %v3450
        %3452 = vmatmul.bf16.gmra.mxu0 %v3018
        %v3453 = vpop.f32.mrf.mxu0
        %v3454 = vadd.f32 0.0, %v3453
        %v3455 = vpop.f32.mrf.mxu0
        %v3456 = vadd.f32 0.0, %v3455
        %3457 = vmatmul.bf16.gmra.mxu0 %v3020
        %v3458 = vpop.f32.mrf.mxu0
        %v3459 = vadd.f32 0.0, %v3458
        %v3460 = vpop.f32.mrf.mxu0
        %v3461 = vadd.f32 0.0, %v3460
        %3462 = vmatmul.bf16.gmra.mxu0 %v3022
        %v3463 = vpop.f32.mrf.mxu0
        %v3464 = vadd.f32 0.0, %v3463
        %v3465 = vpop.f32.mrf.mxu0
        %v3466 = vadd.f32 0.0, %v3465
        %3467 = vmatmul.bf16.gmra.mxu0 %v3024
        %v3468 = vpop.f32.mrf.mxu0
        %v3469 = vadd.f32 0.0, %v3468
        %v3470 = vpop.f32.mrf.mxu0
        %v3471 = vadd.f32 0.0, %v3470
        %3472 = vmatmul.bf16.gmra.mxu0 %v3026
        %v3473 = vpop.f32.mrf.mxu0
        %v3474 = vadd.f32 0.0, %v3473
        %v3475 = vpop.f32.mrf.mxu0
        %v3476 = vadd.f32 0.0, %v3475
        %3477 = vmatmul.bf16.gmra.mxu0 %v3028
        %v3478 = vpop.f32.mrf.mxu0
        %v3479 = vadd.f32 0.0, %v3478
        %v3480 = vpop.f32.mrf.mxu0
        %v3481 = vadd.f32 0.0, %v3480
        %3482 = vmatmul.bf16.gmra.mxu0 %v3030
        %v3483 = vpop.f32.mrf.mxu0
        %v3484 = vadd.f32 0.0, %v3483
        %v3485 = vpop.f32.mrf.mxu0
        %v3486 = vadd.f32 0.0, %v3485
        %3487 = vmatmul.bf16.gmra.mxu0 %v3032
        %v3488 = vpop.f32.mrf.mxu0
        %v3489 = vadd.f32 0.0, %v3488
        %v3490 = vpop.f32.mrf.mxu0
        %v3491 = vadd.f32 0.0, %v3490
        %3492 = vdwg.mxu0
        %3493 = vmatpush.bf16.msra.mxu0 %v3193
        %3494 = vmatpush.bf16.msra.mxu0 %v3191
        %3495 = vmatpush.bf16.msra.mxu0 %v3189
        %3496 = vmatpush.bf16.msra.mxu0 %v3187
        %3497 = vmatpush.bf16.msra.mxu0 %v3185
        %3498 = vmatpush.bf16.msra.mxu0 %v3183
        %3499 = vmatpush.bf16.msra.mxu0 %v3181
        %3500 = vmatpush.bf16.msra.mxu0 %v3179
        %3501 = vmatmul.bf16.gmra.mxu0 %v3003
        %v3502 = vpop.f32.mrf.mxu0
        %v3503 = vadd.f32 %v3414, %v3502
        %v3504 = vpop.f32.mrf.mxu0
        %v3505 = vadd.f32 %v3416, %v3504
        %3506 = vmatmul.bf16.gmra.mxu0 %v3005
        %v3507 = vpop.f32.mrf.mxu0
        %v3508 = vadd.f32 %v3419, %v3507
        %v3509 = vpop.f32.mrf.mxu0
        %v3510 = vadd.f32 %v3421, %v3509
        %3511 = vmatmul.bf16.gmra.mxu0 %v3007
        %v3512 = vpop.f32.mrf.mxu0
        %v3513 = vadd.f32 %v3424, %v3512
        %v3514 = vpop.f32.mrf.mxu0
        %v3515 = vadd.f32 %v3426, %v3514
        %3516 = vmatmul.bf16.gmra.mxu0 %v3009
        %v3517 = vpop.f32.mrf.mxu0
        %v3518 = vadd.f32 %v3429, %v3517
        %v3519 = vpop.f32.mrf.mxu0
        %v3520 = vadd.f32 %v3431, %v3519
        %3521 = vmatmul.bf16.gmra.mxu0 %v3011
        %v3522 = vpop.f32.mrf.mxu0
        %v3523 = vadd.f32 %v3434, %v3522
        %v3524 = vpop.f32.mrf.mxu0
        %v3525 = vadd.f32 %v3436, %v3524
        %3526 = vmatmul.bf16.gmra.mxu0 %v3013
        %v3527 = vpop.f32.mrf.mxu0
        %v3528 = vadd.f32 %v3439, %v3527
        %v3529 = vpop.f32.mrf.mxu0
        %v3530 = vadd.f32 %v3441, %v3529
        %3531 = vmatmul.bf16.gmra.mxu0 %v3015
        %v3532 = vpop.f32.mrf.mxu0
        %v3533 = vadd.f32 %v3444, %v3532
        %v3534 = vpop.f32.mrf.mxu0
        %v3535 = vadd.f32 %v3446, %v3534
        %3536 = vmatmul.bf16.gmra.mxu0 %v3017
        %v3537 = vpop.f32.mrf.mxu0
        %v3538 = vadd.f32 %v3449, %v3537
        %v3539 = vpop.f32.mrf.mxu0
        %v3540 = vadd.f32 %v3451, %v3539
        %3541 = vmatmul.bf16.gmra.mxu0 %v3019
        %v3542 = vpop.f32.mrf.mxu0
        %v3543 = vadd.f32 %v3454, %v3542
        %v3544 = vpop.f32.mrf.mxu0
        %v3545 = vadd.f32 %v3456, %v3544
        %3546 = vmatmul.bf16.gmra.mxu0 %v3021
        %v3547 = vpop.f32.mrf.mxu0
        %v3548 = vadd.f32 %v3459, %v3547
        %v3549 = vpop.f32.mrf.mxu0
        %v3550 = vadd.f32 %v3461, %v3549
        %3551 = vmatmul.bf16.gmra.mxu0 %v3023
        %v3552 = vpop.f32.mrf.mxu0
        %v3553 = vadd.f32 %v3464, %v3552
        %v3554 = vpop.f32.mrf.mxu0
        %v3555 = vadd.f32 %v3466, %v3554
        %3556 = vmatmul.bf16.gmra.mxu0 %v3025
        %v3557 = vpop.f32.mrf.mxu0
        %v3558 = vadd.f32 %v3469, %v3557
        %v3559 = vpop.f32.mrf.mxu0
        %v3560 = vadd.f32 %v3471, %v3559
        %3561 = vmatmul.bf16.gmra.mxu0 %v3027
        %v3562 = vpop.f32.mrf.mxu0
        %v3563 = vadd.f32 %v3474, %v3562
        %v3564 = vpop.f32.mrf.mxu0
        %v3565 = vadd.f32 %v3476, %v3564
        %3566 = vmatmul.bf16.gmra.mxu0 %v3029
        %v3567 = vpop.f32.mrf.mxu0
        %v3568 = vadd.f32 %v3479, %v3567
        %v3569 = vpop.f32.mrf.mxu0
        %v3570 = vadd.f32 %v3481, %v3569
        %3571 = vmatmul.bf16.gmra.mxu0 %v3031
        %v3572 = vpop.f32.mrf.mxu0
        %v3573 = vadd.f32 %v3484, %v3572
        %v3574 = vpop.f32.mrf.mxu0
        %v3575 = vadd.f32 %v3486, %v3574
        %3576 = vmatmul.bf16.gmra.mxu0 %v3033
        %v3577 = vpop.f32.mrf.mxu0
        %v3578 = vadd.f32 %v3489, %v3577
        %v3579 = vpop.f32.mrf.mxu0
        %v3580 = vadd.f32 %v3491, %v3579
        %3581 = vdwg.mxu0
        %v3582 = vadd.f32 %v2938, %v3325
        %v3583 = vadd.f32 %v2939, %v3503
        %v3584 = vadd.f32 %v2940, %v3327
        %v3585 = vadd.f32 %v2941, %v3505
        %v3586 = vadd.f32 %v2942, %v3330
        %v3587 = vadd.f32 %v2943, %v3508
        %v3588 = vadd.f32 %v2944, %v3332
        %v3589 = vadd.f32 %v2945, %v3510
        %v3590 = vadd.f32 %v2946, %v3335
        %v3591 = vadd.f32 %v2947, %v3513
        %v3592 = vadd.f32 %v2948, %v3337
        %v3593 = vadd.f32 %v2949, %v3515
        %v3594 = vadd.f32 %v2950, %v3340
        %v3595 = vadd.f32 %v2951, %v3518
        %v3596 = vadd.f32 %v2952, %v3342
        %v3597 = vadd.f32 %v2953, %v3520
        %v3598 = vadd.f32 %v2954, %v3345
        %v3599 = vadd.f32 %v2955, %v3523
        %v3600 = vadd.f32 %v2956, %v3347
        %v3601 = vadd.f32 %v2957, %v3525
        %v3602 = vadd.f32 %v2958, %v3350
        %v3603 = vadd.f32 %v2959, %v3528
        %v3604 = vadd.f32 %v2960, %v3352
        %v3605 = vadd.f32 %v2961, %v3530
        %v3606 = vadd.f32 %v2962, %v3355
        %v3607 = vadd.f32 %v2963, %v3533
        %v3608 = vadd.f32 %v2964, %v3357
        %v3609 = vadd.f32 %v2965, %v3535
        %v3610 = vadd.f32 %v2966, %v3360
        %v3611 = vadd.f32 %v2967, %v3538
        %v3612 = vadd.f32 %v2968, %v3362
        %v3613 = vadd.f32 %v2969, %v3540
        %v3614 = vadd.f32 %v2970, %v3365
        %v3615 = vadd.f32 %v2971, %v3543
        %v3616 = vadd.f32 %v2972, %v3367
        %v3617 = vadd.f32 %v2973, %v3545
        %v3618 = vadd.f32 %v2974, %v3370
        %v3619 = vadd.f32 %v2975, %v3548
        %v3620 = vadd.f32 %v2976, %v3372
        %v3621 = vadd.f32 %v2977, %v3550
        %v3622 = vadd.f32 %v2978, %v3375
        %v3623 = vadd.f32 %v2979, %v3553
        %v3624 = vadd.f32 %v2980, %v3377
        %v3625 = vadd.f32 %v2981, %v3555
        %v3626 = vadd.f32 %v2982, %v3380
        %v3627 = vadd.f32 %v2983, %v3558
        %v3628 = vadd.f32 %v2984, %v3382
        %v3629 = vadd.f32 %v2985, %v3560
        %v3630 = vadd.f32 %v2986, %v3385
        %v3631 = vadd.f32 %v2987, %v3563
        %v3632 = vadd.f32 %v2988, %v3387
        %v3633 = vadd.f32 %v2989, %v3565
        %v3634 = vadd.f32 %v2990, %v3390
        %v3635 = vadd.f32 %v2991, %v3568
        %v3636 = vadd.f32 %v2992, %v3392
        %v3637 = vadd.f32 %v2993, %v3570
        %v3638 = vadd.f32 %v2994, %v3395
        %v3639 = vadd.f32 %v2995, %v3573
        %v3640 = vadd.f32 %v2996, %v3397
        %v3641 = vadd.f32 %v2997, %v3575
        %v3642 = vadd.f32 %v2998, %v3400
        %v3643 = vadd.f32 %v2999, %v3578
        %v3644 = vadd.f32 %v3000, %v3402
        %v3645 = vadd.f32 %v3001, %v3580
        %3646 = vst [vmem:[#allocation10] sm:$0xff] %v3582
        %3647 = vst [vmem:[#allocation10 + $0x8] sm:$0xff] %v3583
        %3648 = vst [vmem:[#allocation10 + $0x10] sm:$0xff] %v3584
        %3649 = vst [vmem:[#allocation10 + $0x18] sm:$0xff] %v3585
        %3650 = vst [vmem:[#allocation10 + $0x20] sm:$0xff] %v3586
        %3651 = vst [vmem:[#allocation10 + $0x28] sm:$0xff] %v3587
        %3652 = vst [vmem:[#allocation10 + $0x30] sm:$0xff] %v3588
        %3653 = vst [vmem:[#allocation10 + $0x38] sm:$0xff] %v3589
        %3654 = vst [vmem:[#allocation10 + $0x40] sm:$0xff] %v3590
        %3655 = vst [vmem:[#allocation10 + $0x48] sm:$0xff] %v3591
        %3656 = vst [vmem:[#allocation10 + $0x50] sm:$0xff] %v3592
        %3657 = vst [vmem:[#allocation10 + $0x58] sm:$0xff] %v3593
        %3658 = vst [vmem:[#allocation10 + $0x60] sm:$0xff] %v3594
        %3659 = vst [vmem:[#allocation10 + $0x68] sm:$0xff] %v3595
        %3660 = vst [vmem:[#allocation10 + $0x70] sm:$0xff] %v3596
        %3661 = vst [vmem:[#allocation10 + $0x78] sm:$0xff] %v3597
        %3662 = vst [vmem:[#allocation10 + $0x80] sm:$0xff] %v3598
        %3663 = vst [vmem:[#allocation10 + $0x88] sm:$0xff] %v3599
        %3664 = vst [vmem:[#allocation10 + $0x90] sm:$0xff] %v3600
        %3665 = vst [vmem:[#allocation10 + $0x98] sm:$0xff] %v3601
        %3666 = vst [vmem:[#allocation10 + $0xa0] sm:$0xff] %v3602
        %3667 = vst [vmem:[#allocation10 + $0xa8] sm:$0xff] %v3603
        %3668 = vst [vmem:[#allocation10 + $0xb0] sm:$0xff] %v3604
        %3669 = vst [vmem:[#allocation10 + $0xb8] sm:$0xff] %v3605
        %3670 = vst [vmem:[#allocation10 + $0xc0] sm:$0xff] %v3606
        %3671 = vst [vmem:[#allocation10 + $0xc8] sm:$0xff] %v3607
        %3672 = vst [vmem:[#allocation10 + $0xd0] sm:$0xff] %v3608
        %3673 = vst [vmem:[#allocation10 + $0xd8] sm:$0xff] %v3609
        %3674 = vst [vmem:[#allocation10 + $0xe0] sm:$0xff] %v3610
        %3675 = vst [vmem:[#allocation10 + $0xe8] sm:$0xff] %v3611
        %3676 = vst [vmem:[#allocation10 + $0xf0] sm:$0xff] %v3612
        %3677 = vst [vmem:[#allocation10 + $0xf8] sm:$0xff] %v3613
        %3678 = vst [vmem:[#allocation10 + $0x100] sm:$0xff] %v3614
        %3679 = vst [vmem:[#allocation10 + $0x108] sm:$0xff] %v3615
        %3680 = vst [vmem:[#allocation10 + $0x110] sm:$0xff] %v3616
        %3681 = vst [vmem:[#allocation10 + $0x118] sm:$0xff] %v3617
        %3682 = vst [vmem:[#allocation10 + $0x120] sm:$0xff] %v3618
        %3683 = vst [vmem:[#allocation10 + $0x128] sm:$0xff] %v3619
        %3684 = vst [vmem:[#allocation10 + $0x130] sm:$0xff] %v3620
        %3685 = vst [vmem:[#allocation10 + $0x138] sm:$0xff] %v3621
        %3686 = vst [vmem:[#allocation10 + $0x140] sm:$0xff] %v3622
        %3687 = vst [vmem:[#allocation10 + $0x148] sm:$0xff] %v3623
        %3688 = vst [vmem:[#allocation10 + $0x150] sm:$0xff] %v3624
        %3689 = vst [vmem:[#allocation10 + $0x158] sm:$0xff] %v3625
        %3690 = vst [vmem:[#allocation10 + $0x160] sm:$0xff] %v3626
        %3691 = vst [vmem:[#allocation10 + $0x168] sm:$0xff] %v3627
        %3692 = vst [vmem:[#allocation10 + $0x170] sm:$0xff] %v3628
        %3693 = vst [vmem:[#allocation10 + $0x178] sm:$0xff] %v3629
        %3694 = vst [vmem:[#allocation10 + $0x180] sm:$0xff] %v3630
        %3695 = vst [vmem:[#allocation10 + $0x188] sm:$0xff] %v3631
        %3696 = vst [vmem:[#allocation10 + $0x190] sm:$0xff] %v3632
        %3697 = vst [vmem:[#allocation10 + $0x198] sm:$0xff] %v3633
        %3698 = vst [vmem:[#allocation10 + $0x1a0] sm:$0xff] %v3634
        %3699 = vst [vmem:[#allocation10 + $0x1a8] sm:$0xff] %v3635
        %3700 = vst [vmem:[#allocation10 + $0x1b0] sm:$0xff] %v3636
        %3701 = vst [vmem:[#allocation10 + $0x1b8] sm:$0xff] %v3637
        %3702 = vst [vmem:[#allocation10 + $0x1c0] sm:$0xff] %v3638
        %3703 = vst [vmem:[#allocation10 + $0x1c8] sm:$0xff] %v3639
        %3704 = vst [vmem:[#allocation10 + $0x1d0] sm:$0xff] %v3640
        %3705 = vst [vmem:[#allocation10 + $0x1d8] sm:$0xff] %v3641
        %3706 = vst [vmem:[#allocation10 + $0x1e0] sm:$0xff] %v3642
        %3707 = vst [vmem:[#allocation10 + $0x1e8] sm:$0xff] %v3643
        %3708 = vst [vmem:[#allocation10 + $0x1f0] sm:$0xff] %v3644
        %3709 = vst [vmem:[#allocation10 + $0x1f8] sm:$0xff] %v3645
        // Predicated region
        $region57: #{tpu_custom_call.1} parent=35 // pred_check
          %p3710 = pneg %p157
        $region58: #{tpu_custom_call.1} parent=35 // pred_check_branch
          %3712 = sbr.rel (%p3710) target = $region60
        $region59: #{tpu_custom_call.1} parent=35 // pred_region
          %s3713 = smul.u32 32, %s27
          %3715 = vsyncadd [#allocation4], 0
          %s3716 = smul.addr %s3713, 2
          %s3717 = smul.addr %s3716, 8
          %s3718 = scalar_lea.hbm %s4, %s3717
          %s3719 = sshll.u32 [#allocation10], 4
          %s3720 = int_to_ptr.vmem [resolvable:$true] %s3719
          %s3721 = sshll.u32 %s3718, 4
          %s3722 = int_to_ptr.hbm [resolvable:$true] %s3721
          %3727 = dma.vmem_to_hbm [thread:$0]  %s3720, 8192, %s3722, [#allocation4], 256, 256, 16
        $region60: #{tpu_custom_call.1} parent=35 // pred_fallthru
          _
        // Predicated region
        $region61: #{tpu_custom_call.1} parent=35 // pred_check
          %p3728 = pneg %p157
        $region62: #{tpu_custom_call.1} parent=35 // pred_check_branch
          %3730 = sbr.rel (%p3728) target = $region64
        $region63: #{tpu_custom_call.1} parent=35 // pred_region
          %3732 = dma.done [#allocation4], 8192
        $region64: #{tpu_custom_call.1} parent=35 // pred_fallthru
          _
      $region36: #{tpu_custom_call.1} parent=5 // pred_fallthru
        _
      %p3733 = scmp.le.s32.totalorder 2, %s18
      // Predicated region
      $region65: #{tpu_custom_call.1} parent=5 // pred_check
        %p3734 = pneg %p3733
      $region66: #{tpu_custom_call.1} parent=5 // pred_check_branch
        %3736 = sbr.rel (%p3734) target = $region68
      $region67: #{tpu_custom_call.1} parent=5 // pred_region
        %s3737 = ssub.s32 %s18, 2
      $region68: #{tpu_custom_call.1} parent=5 // pred_fallthru
        _
    $region6: #{tpu_custom_call.1} parent=1 // loop_footer
      %s22 = sadd.s32 1, %s18
    $region7: #{tpu_custom_call.1} parent=1 // loop_footer_branch
      %17 = sbr.rel target = $region3
    $region8: #{tpu_custom_call.1} parent=1 // loop_exit
      _
    %3738 = vsyncpa [#allocation3], 1
    %s3739 = scalar_lea.sflag [#allocation3], 1
    %3740 = vsyncpa %s3739, 1
    %3741 = vsyncpa [#allocation6], 1
    %s3742 = scalar_lea.sflag [#allocation6], 1
    %3743 = vsyncpa %s3742, 1
    %3744 = vsyncpa [#allocation9], 1
    %s3745 = scalar_lea.sflag [#allocation9], 1
    %3746 = vsyncpa %s3745, 1
    %3747 = vsyncpa [#allocation4], 1
    %s3748 = scalar_lea.sflag [#allocation4], 1
    %3749 = vsyncpa %s3748, 1

</llo_original>
